<compile_context>
chip_gen: v6e
topology: v6e:2x2x1
jax: 0.10.0
libtpu: 0.0.40
codegen_flags: <defaults>
</compile_context>

<pallas_src>
import functools
import numpy as np
import jax
import jax.numpy as jnp
from jax.experimental import pallas as pl
from jax.experimental.pallas import tpu as pltpu


# --------------------------- tiled matmul kernel ---------------------------

def _mm_kernel(a_ref, w_ref, b_ref, o_ref, acc_ref, *, relu):
    @pl.when(pl.program_id(2) == 0)
    def _():
        acc_ref[...] = jnp.zeros_like(acc_ref)

    acc_ref[...] += jnp.dot(a_ref[...], w_ref[...],
                            preferred_element_type=jnp.float32)

    @pl.when(pl.program_id(2) == pl.num_programs(2) - 1)
    def _():
        out = acc_ref[...] + b_ref[...]
        if relu:
            out = jnp.maximum(out, 0.0)
        o_ref[...] = out.astype(o_ref.dtype)


def pallas_matmul(a, w, b, *, relu, out_dtype, bm=256, bn=256, bk=512):
    """(M,K) @ (K,N) + bias, optional ReLU.  bf16 operands, f32 accumulate.

    No activation padding: block dims are either 128-multiples or equal to the
    full array dims (allowed by Mosaic), so there is no pad/slice HBM churn.
    """
    M, K = a.shape
    Kw, N = w.shape
    assert K == Kw, (K, Kw)
    bm = M if M <= bm else bm
    bn = N if N <= bn else bn
    if K <= bk or K % bk != 0:
        bk = K                                  # keep K exact (no K padding)
    grid = (pl.cdiv(M, bm), pl.cdiv(N, bn), K // bk)
    b2 = jnp.asarray(b, jnp.float32).reshape(1, N)
    return pl.pallas_call(
        functools.partial(_mm_kernel, relu=relu),
        out_shape=jax.ShapeDtypeStruct((M, N), out_dtype),
        grid=grid,
        in_specs=[pl.BlockSpec((bm, bk), lambda i, j, k: (i, k)),
                  pl.BlockSpec((bk, bn), lambda i, j, k: (k, j)),
                  pl.BlockSpec((1, bn), lambda i, j, k: (0, j))],
        out_specs=pl.BlockSpec((bm, bn), lambda i, j, k: (i, j)),
        scratch_shapes=[pltpu.VMEM((bm, bn), jnp.float32)],
        compiler_params=pltpu.CompilerParams(
            dimension_semantics=("parallel", "parallel", "arbitrary"),
            vmem_limit_bytes=32 * 1024 * 1024),
    )(a, w, b2)


# ------------------------------- conv glue --------------------------------

def _im2col(x, kh, kw, stride, padding):
    """x: NHWC (bf16) -> (N, oh, ow, kh*kw*C) with (i, j, c) flattening order."""
    N, H, W, C = x.shape
    xp = jnp.pad(x, ((0, 0), (padding, padding), (padding, padding), (0, 0)))
    oh = (H + 2 * padding - kh) // stride + 1
    ow = (W + 2 * padding - kw) // stride + 1
    cols = []
    for i in range(kh):
        for j in range(kw):
            cols.append(xp[:, i:i + stride * (oh - 1) + 1:stride,
                              j:j + stride * (ow - 1) + 1:stride, :])
    return jnp.concatenate(cols, axis=-1), oh, ow


def conv2d(x, w2d, b, kh, kw, stride, padding, out_dtype=jnp.bfloat16):
    """Conv2d + ReLU via im2col + tiled Pallas GEMM.  w2d: (kh*kw*cin, cout) bf16."""
    N = x.shape[0]
    cols, oh, ow = _im2col(x, kh, kw, stride, padding)
    M = N * oh * ow
    y = pallas_matmul(cols.reshape(M, -1), w2d, b, relu=True, out_dtype=out_dtype)
    return y.reshape(N, oh, ow, -1)


# --------------------------- fused BAM kernel ------------------------------

def _bam_kernel(x_ref, wc1_ref, bc1_ref, wc2_ref, bc2_ref,
                ws1_ref, bs1_ref, taps_ref, ws2_ref, bs2_ref,
                ws3_ref, bs3_ref, ws4_ref, bs4_ref, o_ref, *, n_taps, inv_hw):
    x = x_ref[0].astype(jnp.float32)                         # (HW, C), f32 math

    # channel attention: GAP -> FC(C,Cr) -> ReLU -> FC(Cr,C)   (BN == identity)
    avg = jnp.sum(x, axis=0, keepdims=True) * inv_hw          # (1, C)
    h = jnp.dot(avg, wc1_ref[...], preferred_element_type=jnp.float32) + bc1_ref[...]
    h = jnp.maximum(h, 0.0)
    ca = jnp.dot(h, wc2_ref[...], preferred_element_type=jnp.float32) + bc2_ref[...]

    # spatial attention: 1x1 (C->Cr) -> ReLU -> 2x dilated 3x3 -> ReLU -> Cr->1
    s = jnp.dot(x, ws1_ref[...], preferred_element_type=jnp.float32) + bs1_ref[...]
    s = jnp.maximum(s, 0.0)                                    # (HW, Cr)

    def dilated_conv(s_in, w_ref, b_ref):
        acc = jnp.zeros_like(s_in) + b_ref[...]
        for t in range(n_taps):       # static unroll; 0/1 shift matrices per tap
            shifted = jnp.dot(taps_ref[t], s_in,
                              preferred_element_type=jnp.float32)
            acc = acc + jnp.dot(shifted, w_ref[t],
                                preferred_element_type=jnp.float32)
        return jnp.maximum(acc, 0.0)

    s = dilated_conv(s, ws2_ref, bs2_ref)
    s = dilated_conv(s, ws3_ref, bs3_ref)
    # Cr -> 1 projection as a lane reduction (no padded N=1 matmul)
    sa = jnp.sum(s * ws4_ref[...], axis=-1, keepdims=True) + bs4_ref[...]   # (HW,1)

    att = jax.nn.sigmoid(ca + sa)                              # bcast -> (HW, C)
    o_ref[0] = (x * (1.0 + att)).astype(o_ref.dtype)


def bam_forward(p, x):
    """x: (N, H, W, C) bf16 -> gated output, same shape/dtype.  One kernel."""
    N, H, W, C = x.shape
    HW = H * W
    x2 = x.reshape(N, HW, C)
    taps = p['taps']
    T = taps.shape[0]
    Cr = p['c_fc1_w'].shape[1]

    full2 = lambda r, c: pl.BlockSpec((r, c), lambda n: (0, 0))
    full3 = lambda a, r, c: pl.BlockSpec((a, r, c), lambda n: (0, 0, 0))

    out = pl.pallas_call(
        functools.partial(_bam_kernel, n_taps=T, inv_hw=1.0 / HW),
        out_shape=jax.ShapeDtypeStruct((N, HW, C), x.dtype),
        grid=(N,),
        in_specs=[pl.BlockSpec((1, HW, C), lambda n: (n, 0, 0)),
                  full2(C, Cr), full2(1, Cr), full2(Cr, C), full2(1, C),
                  full2(C, Cr), full2(1, Cr),
                  full3(T, HW, HW),
                  full3(T, Cr, Cr), full2(1, Cr),
                  full3(T, Cr, Cr), full2(1, Cr),
                  full2(1, Cr), full2(1, 1)],
        out_specs=pl.BlockSpec((1, HW, C), lambda n: (n, 0, 0)),
        compiler_params=pltpu.CompilerParams(
            dimension_semantics=("parallel",),
            vmem_limit_bytes=32 * 1024 * 1024),
    )(x2, p['c_fc1_w'], p['c_fc1_b'], p['c_fc2_w'], p['c_fc2_b'],
      p['s1_w'], p['s1_b'], taps, p['s2_w'], p['s2_b'],
      p['s3_w'], p['s3_b'], p['s4_w'], p['s4_b'])
    return out.reshape(N, H, W, C)


# ------------------------------ DQN forward --------------------------------

def dqn_forward(params, x_nchw):
    x = jnp.transpose(x_nchw, (0, 2, 3, 1)).astype(jnp.bfloat16)   # NCHW -> NHWC once
    x = conv2d(x, params['conv1_w'], params['conv1_b'], 8, 8, stride=4, padding=2)
    x = bam_forward(params['bam1'], x)
    x = conv2d(x, params['conv2_w'], params['conv2_b'], 4, 4, stride=2, padding=1)
    x = bam_forward(params['bam2'], x)
    x = conv2d(x, params['conv3_w'], params['conv3_b'], 3, 3, stride=1, padding=1)
    N = x.shape[0]
    flat = x.reshape(N, -1)          # NHWC flatten; fc1_w rows permuted at init
    h = pallas_matmul(flat, params['fc1_w'], params['fc1_b'],
                      relu=True, out_dtype=jnp.bfloat16)
    out = pallas_matmul(h, params['fc2_w'], params['fc2_b'],
                        relu=False, out_dtype=jnp.float32)
    return out


# -------------------------------- params -----------------------------------

def _uinit(key, shape, fan_in):
    bound = 1.0 / np.sqrt(fan_in)
    return jax.random.uniform(key, shape, jnp.float32, -bound, bound)


def _dilated_tap_mats(H, W, dilation=4):
    """0/1 shift matrices for a padded dilated 3x3 conv; prune all-OOB taps."""
    mats, valid = [], []
    t = 0
    for ki in range(3):
        for kj in range(3):
            dy, dx = (ki - 1) * dilation, (kj - 1) * dilation
            m = np.zeros((H * W, H * W), np.float32)
            for y in range(H):
                for x in range(W):
                    yy, xx = y + dy, x + dx
                    if 0 <= yy < H and 0 <= xx < W:
                        m[y * W + x, yy * W + xx] = 1.0
            if m.any():
                mats.append(m)
                valid.append(t)
            t += 1
    return np.stack(mats, axis=0), np.array(valid)


def _init_bam(ki, C, H, W, r=16):
    Cr = max(C // r, 1)
    taps_np, valid = _dilated_tap_mats(H, W, dilation=4)
    p = {}
    p['c_fc1_w'] = _uinit(next(ki), (C, Cr), C)
    p['c_fc1_b'] = _uinit(next(ki), (1, Cr), C)
    p['c_fc2_w'] = _uinit(next(ki), (Cr, C), Cr)
    p['c_fc2_b'] = _uinit(next(ki), (1, C), Cr)
    p['s1_w'] = _uinit(next(ki), (C, Cr), C)               # 1x1 conv C->Cr
    p['s1_b'] = _uinit(next(ki), (1, Cr), C)
    p['s2_w'] = _uinit(next(ki), (9, Cr, Cr), Cr * 9)[valid]   # dilated 3x3 taps kept
    p['s2_b'] = _uinit(next(ki), (1, Cr), Cr * 9)
    p['s3_w'] = _uinit(next(ki), (9, Cr, Cr), Cr * 9)[valid]
    p['s3_b'] = _uinit(next(ki), (1, Cr), Cr * 9)
    p['s4_w'] = _uinit(next(ki), (1, Cr), Cr)               # 1x1 Cr->1 as row vector
    p['s4_b'] = _uinit(next(ki), (1, 1), Cr)
    p['taps'] = jnp.asarray(taps_np)
    return p


def init_params(key, input_dim, output_dim):
    cin, H, W = input_dim
    o = lambda n, k, s, p_: (n + 2 * p_ - k) // s + 1
    h1, w1 = o(H, 8, 4, 2), o(W, 8, 4, 2)
    h2, w2 = o(h1, 4, 2, 1), o(w1, 4, 2, 1)
    h3, w3 = o(h2, 3, 1, 1), o(w2, 3, 1, 1)
    conv_out = 64 * h3 * w3

    ki = iter(jax.random.split(key, 64))
    p = {}

    def conv_block(cin_, cout, k):
        fan = cin_ * k * k
        w = _uinit(next(ki), (k, k, cin_, cout), fan)              # HWIO
        b = _uinit(next(ki), (cout,), fan)
        return w.reshape(k * k * cin_, cout).astype(jnp.bfloat16), b.reshape(1, cout)

    p['conv1_w'], p['conv1_b'] = conv_block(cin, 32, 8)
    p['bam1'] = _init_bam(ki, 32, h1, w1)
    p['conv2_w'], p['conv2_b'] = conv_block(32, 64, 4)
    p['bam2'] = _init_bam(ki, 64, h2, w2)
    p['conv3_w'], p['conv3_b'] = conv_block(64, 64, 3)

    # fc1 created in the PyTorch (C*H*W) row order, then row-permuted once so the
    # kernel consumes the NHWC flatten directly (no activation transpose at runtime).
    fc1_w = _uinit(next(ki), (conv_out, 512), conv_out)
    perm = np.transpose(np.arange(conv_out).reshape(64, h3, w3), (1, 2, 0)).reshape(-1)
    p['fc1_w'] = fc1_w[perm].astype(jnp.bfloat16)
    p['fc1_b'] = _uinit(next(ki), (512,), conv_out).reshape(1, 512)
    p['fc2_w'] = _uinit(next(ki), (512, output_dim), 512).astype(jnp.bfloat16)
    p['fc2_b'] = _uinit(next(ki), (output_dim,), 512).reshape(1, output_dim)
    return p


if __name__ == "__main__":
    key = jax.random.PRNGKey(0)
    k_x, k_p = jax.random.split(key)
    batch, in_channels, H, W = 2, 4, 16, 16
    output_dim = 6
    params = init_params(k_p, (in_channels, H, W), output_dim)
    x = jax.random.normal(k_x, (batch, in_channels, H, W), jnp.float32)
    fwd = jax.jit(functools.partial(dqn_forward, params))
    out = fwd(x)
    jax.block_until_ready(out)
    assert out.shape == (batch, output_dim), out.shape
    assert bool(jnp.all(jnp.isfinite(out)))
    print("KERNEL_OK")
</pallas_src>

<mosaic_0001>
module attributes {stable_mosaic.version = 11 : i64} {
  func.func @_mm_kernel(%arg0: i32, %arg1: i32, %arg2: i32, %arg3: memref<32x256xbf16, #tpu.memory_space<vmem>>, %arg4: memref<256x32xbf16, #tpu.memory_space<vmem>>, %arg5: memref<1x32xf32, #tpu.memory_space<vmem>>, %arg6: memref<32x32xbf16, #tpu.memory_space<vmem>>, %arg7: memref<32x32xf32, #tpu.memory_space<vmem>>) attributes {dimension_semantics = [#tpu.dimension_semantics<parallel>, #tpu.dimension_semantics<parallel>, #tpu.dimension_semantics<arbitrary>], iteration_bounds = array<i64: 1, 1, 1>, scalar_prefetch = 0 : i64, scratch_operands = 1 : i64, tpu.core_type = #tpu.core_type<tc>, window_params = [{transform_indices = @transform_0, window_bounds = array<i64: 32, 256>}, {transform_indices = @transform_1, window_bounds = array<i64: 256, 32>}, {transform_indices = @transform_2, window_bounds = array<i64: 1, 32>}, {transform_indices = @transform_3, window_bounds = array<i64: 32, 32>}]} {
    %c0_i32 = arith.constant 0 : i32
    %0 = arith.cmpi eq, %arg2, %c0_i32 : i32
    %1 = arith.extui %0 : i1 to i32
    %c0_i32_0 = arith.constant 0 : i32
    %2 = arith.cmpi ne, %1, %c0_i32_0 : i32
    scf.if %2 {
      %cst_10 = arith.constant 0.000000e+00 : f32
      %12 = vector.broadcast %cst_10 : f32 to vector<32x32xf32>
      %c0_11 = arith.constant 0 : index
      %c0_12 = arith.constant 0 : index
      %13 = vector.load %arg7[%c0_11, %c0_12] : memref<32x32xf32, #tpu.memory_space<vmem>>, vector<32x32xf32>
      tpu.vector_store %arg7[%c0_11, %c0_12], %12 {strides = array<i32>} : memref<32x32xf32, #tpu.memory_space<vmem>>, vector<32x32xf32>,
    } else {
    }
    %c0 = arith.constant 0 : index
    %c0_1 = arith.constant 0 : index
    %3 = vector.load %arg7[%c0, %c0_1] : memref<32x32xf32, #tpu.memory_space<vmem>>, vector<32x32xf32>
    %c0_2 = arith.constant 0 : index
    %c0_3 = arith.constant 0 : index
    %4 = vector.load %arg3[%c0_2, %c0_3] : memref<32x256xbf16, #tpu.memory_space<vmem>>, vector<32x256xbf16>
    %c0_4 = arith.constant 0 : index
    %c0_5 = arith.constant 0 : index
    %5 = vector.load %arg4[%c0_4, %c0_5] : memref<256x32xbf16, #tpu.memory_space<vmem>>, vector<256x32xbf16>
    %cst = arith.constant dense<0.000000e+00> : vector<32x32xf32>
    %6 = tpu.matmul %4, %5, %cst {dimension_numbers = #tpu.dot_dimension_numbers<[1], [0], [0], [1], [0, 0, 1, 1], [], []>} : vector<32x256xbf16>, vector<256x32xbf16>, vector<32x32xf32> -> vector<32x32xf32>
    %7 = arith.addf %3, %6 : vector<32x32xf32>
    %c0_6 = arith.constant 0 : index
    %c0_7 = arith.constant 0 : index
    %8 = vector.load %arg7[%c0_6, %c0_7] : memref<32x32xf32, #tpu.memory_space<vmem>>, vector<32x32xf32>
    tpu.vector_store %arg7[%c0_6, %c0_7], %7 {strides = array<i32>} : memref<32x32xf32, #tpu.memory_space<vmem>>, vector<32x32xf32>,
    %c0_i32_8 = arith.constant 0 : i32
    %9 = arith.cmpi eq, %arg2, %c0_i32_8 : i32
    %10 = arith.extui %9 : i1 to i32
    %c0_i32_9 = arith.constant 0 : i32
    %11 = arith.cmpi ne, %10, %c0_i32_9 : i32
    scf.if %11 {
      %c0_10 = arith.constant 0 : index
      %c0_11 = arith.constant 0 : index
      %12 = vector.load %arg7[%c0_10, %c0_11] : memref<32x32xf32, #tpu.memory_space<vmem>>, vector<32x32xf32>
      %c0_12 = arith.constant 0 : index
      %c0_13 = arith.constant 0 : index
      %13 = vector.load %arg5[%c0_12, %c0_13] : memref<1x32xf32, #tpu.memory_space<vmem>>, vector<1x32xf32>
      %14 = vector.broadcast %13 : vector<1x32xf32> to vector<32x32xf32>
      %15 = arith.addf %12, %14 : vector<32x32xf32>
      %cst_14 = arith.constant 0.000000e+00 : f32
      %16 = vector.broadcast %cst_14 : f32 to vector<32x32xf32>
      %17 = arith.maximumf %15, %16 : vector<32x32xf32>
      %18 = arith.truncf %17 : vector<32x32xf32> to vector<32x32xbf16>
      %c0_15 = arith.constant 0 : index
      %c0_16 = arith.constant 0 : index
      %19 = vector.load %arg6[%c0_15, %c0_16] : memref<32x32xbf16, #tpu.memory_space<vmem>>, vector<32x32xbf16>
      tpu.vector_store %arg6[%c0_15, %c0_16], %18 {strides = array<i32>} : memref<32x32xbf16, #tpu.memory_space<vmem>>, vector<32x32xbf16>,
    } else {
    }
    return
  }
  func.func @transform_0(%arg0: i32, %arg1: i32, %arg2: i32) -> (i32, i32) {
    %c0_i32 = arith.constant 0 : i32
    return %arg0, %arg2 : i32, i32
  }
  func.func @transform_1(%arg0: i32, %arg1: i32, %arg2: i32) -> (i32, i32) {
    %c0_i32 = arith.constant 0 : i32
    return %arg2, %arg1 : i32, i32
  }
  func.func @transform_2(%arg0: i32, %arg1: i32, %arg2: i32) -> (i32, i32) {
    %c0_i32 = arith.constant 0 : i32
    %c0_i32_0 = arith.constant 0 : i32
    return %c0_i32, %arg1 : i32, i32
  }
  func.func @transform_3(%arg0: i32, %arg1: i32, %arg2: i32) -> (i32, i32) {
    %c0_i32 = arith.constant 0 : i32
    return %arg0, %arg1 : i32, i32
  }
}

module attributes {stable_mosaic.version = 11 : i64} {
  func.func @_bam_kernel(%arg0: i32, %arg1: memref<1x16x32xbf16, #tpu.memory_space<vmem>>, %arg2: memref<32x2xf32, #tpu.memory_space<vmem>>, %arg3: memref<1x2xf32, #tpu.memory_space<vmem>>, %arg4: memref<2x32xf32, #tpu.memory_space<vmem>>, %arg5: memref<1x32xf32, #tpu.memory_space<vmem>>, %arg6: memref<32x2xf32, #tpu.memory_space<vmem>>, %arg7: memref<1x2xf32, #tpu.memory_space<vmem>>, %arg8: memref<1x16x16xf32, #tpu.memory_space<vmem>>, %arg9: memref<1x2x2xf32, #tpu.memory_space<vmem>>, %arg10: memref<1x2xf32, #tpu.memory_space<vmem>>, %arg11: memref<1x2x2xf32, #tpu.memory_space<vmem>>, %arg12: memref<1x2xf32, #tpu.memory_space<vmem>>, %arg13: memref<1x2xf32, #tpu.memory_space<vmem>>, %arg14: memref<1x1xf32, #tpu.memory_space<vmem>>, %arg15: memref<1x16x32xbf16, #tpu.memory_space<vmem>>) attributes {dimension_semantics = [#tpu.dimension_semantics<parallel>], iteration_bounds = array<i64: 2>, scalar_prefetch = 0 : i64, scratch_operands = 0 : i64, tpu.core_type = #tpu.core_type<tc>, window_params = [{transform_indices = @transform_0, window_bounds = array<i64: 1, 16, 32>}, {pipeline_mode = #tpu.pipeline_mode<synchronous>, transform_indices = @transform_1, window_bounds = array<i64: 32, 2>}, {pipeline_mode = #tpu.pipeline_mode<synchronous>, transform_indices = @transform_2, window_bounds = array<i64: 1, 2>}, {pipeline_mode = #tpu.pipeline_mode<synchronous>, transform_indices = @transform_3, window_bounds = array<i64: 2, 32>}, {pipeline_mode = #tpu.pipeline_mode<synchronous>, transform_indices = @transform_4, window_bounds = array<i64: 1, 32>}, {pipeline_mode = #tpu.pipeline_mode<synchronous>, transform_indices = @transform_5, window_bounds = array<i64: 32, 2>}, {pipeline_mode = #tpu.pipeline_mode<synchronous>, transform_indices = @transform_6, window_bounds = array<i64: 1, 2>}, {pipeline_mode = #tpu.pipeline_mode<synchronous>, transform_indices = @transform_7, window_bounds = array<i64: 1, 16, 16>}, {pipeline_mode = #tpu.pipeline_mode<synchronous>, transform_indices = @transform_8, window_bounds = array<i64: 1, 2, 2>}, {pipeline_mode = #tpu.pipeline_mode<synchronous>, transform_indices = @transform_9, window_bounds = array<i64: 1, 2>}, {pipeline_mode = #tpu.pipeline_mode<synchronous>, transform_indices = @transform_10, window_bounds = array<i64: 1, 2, 2>}, {pipeline_mode = #tpu.pipeline_mode<synchronous>, transform_indices = @transform_11, window_bounds = array<i64: 1, 2>}, {pipeline_mode = #tpu.pipeline_mode<synchronous>, transform_indices = @transform_12, window_bounds = array<i64: 1, 2>}, {pipeline_mode = #tpu.pipeline_mode<synchronous>, transform_indices = @transform_13, window_bounds = array<i64: 1, 1>}, {transform_indices = @transform_14, window_bounds = array<i64: 1, 16, 32>}]} {
    %c0 = arith.constant 0 : index
    %c0_0 = arith.constant 0 : index
    %c0_1 = arith.constant 0 : index
    %0 = vector.load %arg1[%c0, %c0_0, %c0_1] : memref<1x16x32xbf16, #tpu.memory_space<vmem>>, vector<1x16x32xbf16>
    %1 = vector.shape_cast %0 : vector<1x16x32xbf16> to vector<16x32xbf16>
    %2 = arith.extf %1 : vector<16x32xbf16> to vector<16x32xf32>
    %cst = arith.constant dense<0.000000e+00> : vector<32xf32>
    %3 = vector.multi_reduction <add>, %2, %cst [0] : vector<16x32xf32> to vector<32xf32>
    %4 = vector.shape_cast %3 : vector<32xf32> to vector<1x32xf32>
    %cst_2 = arith.constant 6.250000e-02 : f32
    %5 = vector.broadcast %cst_2 : f32 to vector<1x32xf32>
    %6 = arith.mulf %4, %5 : vector<1x32xf32>
    %c0_3 = arith.constant 0 : index
    %c0_4 = arith.constant 0 : index
    %7 = vector.load %arg2[%c0_3, %c0_4] : memref<32x2xf32, #tpu.memory_space<vmem>>, vector<32x2xf32>
    %cst_5 = arith.constant dense<0.000000e+00> : vector<1x2xf32>
    %8 = tpu.matmul %6, %7, %cst_5 {dimension_numbers = #tpu.dot_dimension_numbers<[1], [0], [0], [1], [0, 0, 1, 1], [], []>} : vector<1x32xf32>, vector<32x2xf32>, vector<1x2xf32> -> vector<1x2xf32>
    %c0_6 = arith.constant 0 : index
    %c0_7 = arith.constant 0 : index
    %9 = vector.load %arg3[%c0_6, %c0_7] : memref<1x2xf32, #tpu.memory_space<vmem>>, vector<1x2xf32>
    %10 = arith.addf %8, %9 : vector<1x2xf32>
    %cst_8 = arith.constant 0.000000e+00 : f32
    %11 = vector.broadcast %cst_8 : f32 to vector<1x2xf32>
    %12 = arith.maximumf %10, %11 : vector<1x2xf32>
    %c0_9 = arith.constant 0 : index
    %c0_10 = arith.constant 0 : index
    %13 = vector.load %arg4[%c0_9, %c0_10] : memref<2x32xf32, #tpu.memory_space<vmem>>, vector<2x32xf32>
    %cst_11 = arith.constant dense<0.000000e+00> : vector<1x32xf32>
    %14 = tpu.matmul %12, %13, %cst_11 {dimension_numbers = #tpu.dot_dimension_numbers<[1], [0], [0], [1], [0, 0, 1, 1], [], []>} : vector<1x2xf32>, vector<2x32xf32>, vector<1x32xf32> -> vector<1x32xf32>
    %c0_12 = arith.constant 0 : index
    %c0_13 = arith.constant 0 : index
    %15 = vector.load %arg5[%c0_12, %c0_13] : memref<1x32xf32, #tpu.memory_space<vmem>>, vector<1x32xf32>
    %16 = arith.addf %14, %15 : vector<1x32xf32>
    %c0_14 = arith.constant 0 : index
    %c0_15 = arith.constant 0 : index
    %17 = vector.load %arg6[%c0_14, %c0_15] : memref<32x2xf32, #tpu.memory_space<vmem>>, vector<32x2xf32>
    %cst_16 = arith.constant dense<0.000000e+00> : vector<16x2xf32>
    %18 = tpu.matmul %2, %17, %cst_16 {dimension_numbers = #tpu.dot_dimension_numbers<[1], [0], [0], [1], [0, 0, 1, 1], [], []>} : vector<16x32xf32>, vector<32x2xf32>, vector<16x2xf32> -> vector<16x2xf32>
    %c0_17 = arith.constant 0 : index
    %c0_18 = arith.constant 0 : index
    %19 = vector.load %arg7[%c0_17, %c0_18] : memref<1x2xf32, #tpu.memory_space<vmem>>, vector<1x2xf32>
    %20 = vector.broadcast %19 : vector<1x2xf32> to vector<16x2xf32>
    %21 = arith.addf %18, %20 : vector<16x2xf32>
    %cst_19 = arith.constant 0.000000e+00 : f32
    %22 = vector.broadcast %cst_19 : f32 to vector<16x2xf32>
    %23 = arith.maximumf %21, %22 : vector<16x2xf32>
    %cst_20 = arith.constant 0.000000e+00 : f32
    %24 = vector.broadcast %cst_20 : f32 to vector<16x2xf32>
    %c0_21 = arith.constant 0 : index
    %c0_22 = arith.constant 0 : index
    %25 = vector.load %arg10[%c0_21, %c0_22] : memref<1x2xf32, #tpu.memory_space<vmem>>, vector<1x2xf32>
    %26 = vector.broadcast %25 : vector<1x2xf32> to vector<16x2xf32>
    %27 = arith.addf %24, %26 : vector<16x2xf32>
    %c0_23 = arith.constant 0 : index
    %c0_24 = arith.constant 0 : index
    %c0_25 = arith.constant 0 : index
    %28 = vector.load %arg8[%c0_23, %c0_24, %c0_25] : memref<1x16x16xf32, #tpu.memory_space<vmem>>, vector<1x16x16xf32>
    %29 = vector.shape_cast %28 : vector<1x16x16xf32> to vector<16x16xf32>
    %cst_26 = arith.constant dense<0.000000e+00> : vector<16x2xf32>
    %30 = tpu.matmul %29, %23, %cst_26 {dimension_numbers = #tpu.dot_dimension_numbers<[1], [0], [0], [1], [0, 0, 1, 1], [], []>} : vector<16x16xf32>, vector<16x2xf32>, vector<16x2xf32> -> vector<16x2xf32>
    %c0_27 = arith.constant 0 : index
    %c0_28 = arith.constant 0 : index
    %c0_29 = arith.constant 0 : index
    %31 = vector.load %arg9[%c0_27, %c0_28, %c0_29] : memref<1x2x2xf32, #tpu.memory_space<vmem>>, vector<1x2x2xf32>
    %32 = vector.shape_cast %31 : vector<1x2x2xf32> to vector<2x2xf32>
    %cst_30 = arith.constant dense<0.000000e+00> : vector<16x2xf32>
    %33 = tpu.matmul %30, %32, %cst_30 {dimension_numbers = #tpu.dot_dimension_numbers<[1], [0], [0], [1], [0, 0, 1, 1], [], []>} : vector<16x2xf32>, vector<2x2xf32>, vector<16x2xf32> -> vector<16x2xf32>
    %34 = arith.addf %27, %33 : vector<16x2xf32>
    %cst_31 = arith.constant 0.000000e+00 : f32
    %35 = vector.broadcast %cst_31 : f32 to vector<16x2xf32>
    %36 = arith.maximumf %34, %35 : vector<16x2xf32>
    %cst_32 = arith.constant 0.000000e+00 : f32
    %37 = vector.broadcast %cst_32 : f32 to vector<16x2xf32>
    %c0_33 = arith.constant 0 : index
    %c0_34 = arith.constant 0 : index
    %38 = vector.load %arg12[%c0_33, %c0_34] : memref<1x2xf32, #tpu.memory_space<vmem>>, vector<1x2xf32>
    %39 = vector.broadcast %38 : vector<1x2xf32> to vector<16x2xf32>
    %40 = arith.addf %37, %39 : vector<16x2xf32>
    %c0_35 = arith.constant 0 : index
    %c0_36 = arith.constant 0 : index
    %c0_37 = arith.constant 0 : index
    %41 = vector.load %arg8[%c0_35, %c0_36, %c0_37] : memref<1x16x16xf32, #tpu.memory_space<vmem>>, vector<1x16x16xf32>
    %42 = vector.shape_cast %41 : vector<1x16x16xf32> to vector<16x16xf32>
    %cst_38 = arith.constant dense<0.000000e+00> : vector<16x2xf32>
    %43 = tpu.matmul %42, %36, %cst_38 {dimension_numbers = #tpu.dot_dimension_numbers<[1], [0], [0], [1], [0, 0, 1, 1], [], []>} : vector<16x16xf32>, vector<16x2xf32>, vector<16x2xf32> -> vector<16x2xf32>
    %c0_39 = arith.constant 0 : index
    %c0_40 = arith.constant 0 : index
    %c0_41 = arith.constant 0 : index
    %44 = vector.load %arg11[%c0_39, %c0_40, %c0_41] : memref<1x2x2xf32, #tpu.memory_space<vmem>>, vector<1x2x2xf32>
    %45 = vector.shape_cast %44 : vector<1x2x2xf32> to vector<2x2xf32>
    %cst_42 = arith.constant dense<0.000000e+00> : vector<16x2xf32>
    %46 = tpu.matmul %43, %45, %cst_42 {dimension_numbers = #tpu.dot_dimension_numbers<[1], [0], [0], [1], [0, 0, 1, 1], [], []>} : vector<16x2xf32>, vector<2x2xf32>, vector<16x2xf32> -> vector<16x2xf32>
    %47 = arith.addf %40, %46 : vector<16x2xf32>
    %cst_43 = arith.constant 0.000000e+00 : f32
    %48 = vector.broadcast %cst_43 : f32 to vector<16x2xf32>
    %49 = arith.maximumf %47, %48 : vector<16x2xf32>
    %c0_44 = arith.constant 0 : index
    %c0_45 = arith.constant 0 : index
    %50 = vector.load %arg13[%c0_44, %c0_45] : memref<1x2xf32, #tpu.memory_space<vmem>>, vector<1x2xf32>
    %51 = vector.broadcast %50 : vector<1x2xf32> to vector<16x2xf32>
    %52 = arith.mulf %49, %51 : vector<16x2xf32>
    %cst_46 = arith.constant dense<0.000000e+00> : vector<16xf32>
    %53 = vector.multi_reduction <add>, %52, %cst_46 [1] : vector<16x2xf32> to vector<16xf32>
    %54 = vector.shape_cast %53 : vector<16xf32> to vector<16x1xf32>
    %c0_47 = arith.constant 0 : index
    %c0_48 = arith.constant 0 : index
    %55 = vector.load %arg14[%c0_47, %c0_48] : memref<1x1xf32, #tpu.memory_space<vmem>>, vector<1x1xf32>
    %56 = vector.broadcast %55 : vector<1x1xf32> to vector<16x1xf32>
    %57 = arith.addf %54, %56 : vector<16x1xf32>
    %58 = vector.broadcast %16 : vector<1x32xf32> to vector<16x32xf32>
    %59 = vector.broadcast %57 : vector<16x1xf32> to vector<16x32xf32>
    %60 = arith.addf %58, %59 : vector<16x32xf32>
    %61 = arith.negf %60 : vector<16x32xf32>
    %62 = math.exp %61 : vector<16x32xf32>
    %cst_49 = arith.constant 1.000000e+00 : f32
    %63 = vector.broadcast %cst_49 : f32 to vector<16x32xf32>
    %64 = arith.addf %63, %62 : vector<16x32xf32>
    %65 = arith.divf %63, %64 : vector<16x32xf32>
    %cst_50 = arith.constant 1.000000e+00 : f32
    %66 = vector.broadcast %cst_50 : f32 to vector<16x32xf32>
    %67 = arith.addf %66, %65 : vector<16x32xf32>
    %68 = arith.mulf %2, %67 : vector<16x32xf32>
    %69 = arith.truncf %68 : vector<16x32xf32> to vector<16x32xbf16>
    %c0_51 = arith.constant 0 : index
    %c0_52 = arith.constant 0 : index
    %c0_53 = arith.constant 0 : index
    %70 = vector.load %arg15[%c0_51, %c0_52, %c0_53] : memref<1x16x32xbf16, #tpu.memory_space<vmem>>, vector<1x16x32xbf16>
    %71 = vector.shape_cast %70 : vector<1x16x32xbf16> to vector<16x32xbf16>
    %72 = vector.shape_cast %69 : vector<16x32xbf16> to vector<1x16x32xbf16>
    tpu.vector_store %arg15[%c0_51, %c0_52, %c0_53], %72 {strides = array<i32>} : memref<1x16x32xbf16, #tpu.memory_space<vmem>>, vector<1x16x32xbf16>,
    return
  }
  func.func @transform_0(%arg0: i32) -> (i32, i32, i32) {
    %c0_i32 = arith.constant 0 : i32
    %c0_i32_0 = arith.constant 0 : i32
    %c0_i32_1 = arith.constant 0 : i32
    return %arg0, %c0_i32, %c0_i32_0 : i32, i32, i32
  }
  func.func @transform_1(%arg0: i32) -> (i32, i32) {
    %c0_i32 = arith.constant 0 : i32
    %c0_i32_0 = arith.constant 0 : i32
    %c0_i32_1 = arith.constant 0 : i32
    return %c0_i32, %c0_i32_0 : i32, i32
  }
  func.func @transform_2(%arg0: i32) -> (i32, i32) {
    %c0_i32 = arith.constant 0 : i32
    %c0_i32_0 = arith.constant 0 : i32
    %c0_i32_1 = arith.constant 0 : i32
    return %c0_i32, %c0_i32_0 : i32, i32
  }
  func.func @transform_3(%arg0: i32) -> (i32, i32) {
    %c0_i32 = arith.constant 0 : i32
    %c0_i32_0 = arith.constant 0 : i32
    %c0_i32_1 = arith.constant 0 : i32
    return %c0_i32, %c0_i32_0 : i32, i32
  }
  func.func @transform_4(%arg0: i32) -> (i32, i32) {
    %c0_i32 = arith.constant 0 : i32
    %c0_i32_0 = arith.constant 0 : i32
    %c0_i32_1 = arith.constant 0 : i32
    return %c0_i32, %c0_i32_0 : i32, i32
  }
  func.func @transform_5(%arg0: i32) -> (i32, i32) {
    %c0_i32 = arith.constant 0 : i32
    %c0_i32_0 = arith.constant 0 : i32
    %c0_i32_1 = arith.constant 0 : i32
    return %c0_i32, %c0_i32_0 : i32, i32
  }
  func.func @transform_6(%arg0: i32) -> (i32, i32) {
    %c0_i32 = arith.constant 0 : i32
    %c0_i32_0 = arith.constant 0 : i32
    %c0_i32_1 = arith.constant 0 : i32
    return %c0_i32, %c0_i32_0 : i32, i32
  }
  func.func @transform_7(%arg0: i32) -> (i32, i32, i32) {
    %c0_i32 = arith.constant 0 : i32
    %c0_i32_0 = arith.constant 0 : i32
    %c0_i32_1 = arith.constant 0 : i32
    %c0_i32_2 = arith.constant 0 : i32
    return %c0_i32, %c0_i32_0, %c0_i32_1 : i32, i32, i32
  }
  func.func @transform_8(%arg0: i32) -> (i32, i32, i32) {
    %c0_i32 = arith.constant 0 : i32
    %c0_i32_0 = arith.constant 0 : i32
    %c0_i32_1 = arith.constant 0 : i32
    %c0_i32_2 = arith.constant 0 : i32
    return %c0_i32, %c0_i32_0, %c0_i32_1 : i32, i32, i32
  }
  func.func @transform_9(%arg0: i32) -> (i32, i32) {
    %c0_i32 = arith.constant 0 : i32
    %c0_i32_0 = arith.constant 0 : i32
    %c0_i32_1 = arith.constant 0 : i32
    return %c0_i32, %c0_i32_0 : i32, i32
  }
  func.func @transform_10(%arg0: i32) -> (i32, i32, i32) {
    %c0_i32 = arith.constant 0 : i32
    %c0_i32_0 = arith.constant 0 : i32
    %c0_i32_1 = arith.constant 0 : i32
    %c0_i32_2 = arith.constant 0 : i32
    return %c0_i32, %c0_i32_0, %c0_i32_1 : i32, i32, i32
  }
  func.func @transform_11(%arg0: i32) -> (i32, i32) {
    %c0_i32 = arith.constant 0 : i32
    %c0_i32_0 = arith.constant 0 : i32
    %c0_i32_1 = arith.constant 0 : i32
    return %c0_i32, %c0_i32_0 : i32, i32
  }
  func.func @transform_12(%arg0: i32) -> (i32, i32) {
    %c0_i32 = arith.constant 0 : i32
    %c0_i32_0 = arith.constant 0 : i32
    %c0_i32_1 = arith.constant 0 : i32
    return %c0_i32, %c0_i32_0 : i32, i32
  }
  func.func @transform_13(%arg0: i32) -> (i32, i32) {
    %c0_i32 = arith.constant 0 : i32
    %c0_i32_0 = arith.constant 0 : i32
    %c0_i32_1 = arith.constant 0 : i32
    return %c0_i32, %c0_i32_0 : i32, i32
  }
  func.func @transform_14(%arg0: i32) -> (i32, i32, i32) {
    %c0_i32 = arith.constant 0 : i32
    %c0_i32_0 = arith.constant 0 : i32
    %c0_i32_1 = arith.constant 0 : i32
    return %arg0, %c0_i32, %c0_i32_0 : i32, i32, i32
  }
}

module attributes {stable_mosaic.version = 11 : i64} {
  func.func @_mm_kernel(%arg0: i32, %arg1: i32, %arg2: i32, %arg3: memref<8x512xbf16, #tpu.memory_space<vmem>>, %arg4: memref<512x64xbf16, #tpu.memory_space<vmem>>, %arg5: memref<1x64xf32, #tpu.memory_space<vmem>>, %arg6: memref<8x64xbf16, #tpu.memory_space<vmem>>, %arg7: memref<8x64xf32, #tpu.memory_space<vmem>>) attributes {dimension_semantics = [#tpu.dimension_semantics<parallel>, #tpu.dimension_semantics<parallel>, #tpu.dimension_semantics<arbitrary>], iteration_bounds = array<i64: 1, 1, 1>, scalar_prefetch = 0 : i64, scratch_operands = 1 : i64, tpu.core_type = #tpu.core_type<tc>, window_params = [{transform_indices = @transform_0, window_bounds = array<i64: 8, 512>}, {transform_indices = @transform_1, window_bounds = array<i64: 512, 64>}, {transform_indices = @transform_2, window_bounds = array<i64: 1, 64>}, {transform_indices = @transform_3, window_bounds = array<i64: 8, 64>}]} {
    %c0_i32 = arith.constant 0 : i32
    %0 = arith.cmpi eq, %arg2, %c0_i32 : i32
    %1 = arith.extui %0 : i1 to i32
    %c0_i32_0 = arith.constant 0 : i32
    %2 = arith.cmpi ne, %1, %c0_i32_0 : i32
    scf.if %2 {
      %cst_10 = arith.constant 0.000000e+00 : f32
      %12 = vector.broadcast %cst_10 : f32 to vector<8x64xf32>
      %c0_11 = arith.constant 0 : index
      %c0_12 = arith.constant 0 : index
      %13 = vector.load %arg7[%c0_11, %c0_12] : memref<8x64xf32, #tpu.memory_space<vmem>>, vector<8x64xf32>
      tpu.vector_store %arg7[%c0_11, %c0_12], %12 {strides = array<i32>} : memref<8x64xf32, #tpu.memory_space<vmem>>, vector<8x64xf32>,
    } else {
    }
    %c0 = arith.constant 0 : index
    %c0_1 = arith.constant 0 : index
    %3 = vector.load %arg7[%c0, %c0_1] : memref<8x64xf32, #tpu.memory_space<vmem>>, vector<8x64xf32>
    %c0_2 = arith.constant 0 : index
    %c0_3 = arith.constant 0 : index
    %4 = vector.load %arg3[%c0_2, %c0_3] : memref<8x512xbf16, #tpu.memory_space<vmem>>, vector<8x512xbf16>
    %c0_4 = arith.constant 0 : index
    %c0_5 = arith.constant 0 : index
    %5 = vector.load %arg4[%c0_4, %c0_5] : memref<512x64xbf16, #tpu.memory_space<vmem>>, vector<512x64xbf16>
    %cst = arith.constant dense<0.000000e+00> : vector<8x64xf32>
    %6 = tpu.matmul %4, %5, %cst {dimension_numbers = #tpu.dot_dimension_numbers<[1], [0], [0], [1], [0, 0, 1, 1], [], []>} : vector<8x512xbf16>, vector<512x64xbf16>, vector<8x64xf32> -> vector<8x64xf32>
    %7 = arith.addf %3, %6 : vector<8x64xf32>
    %c0_6 = arith.constant 0 : index
    %c0_7 = arith.constant 0 : index
    %8 = vector.load %arg7[%c0_6, %c0_7] : memref<8x64xf32, #tpu.memory_space<vmem>>, vector<8x64xf32>
    tpu.vector_store %arg7[%c0_6, %c0_7], %7 {strides = array<i32>} : memref<8x64xf32, #tpu.memory_space<vmem>>, vector<8x64xf32>,
    %c0_i32_8 = arith.constant 0 : i32
    %9 = arith.cmpi eq, %arg2, %c0_i32_8 : i32
    %10 = arith.extui %9 : i1 to i32
    %c0_i32_9 = arith.constant 0 : i32
    %11 = arith.cmpi ne, %10, %c0_i32_9 : i32
    scf.if %11 {
      %c0_10 = arith.constant 0 : index
      %c0_11 = arith.constant 0 : index
      %12 = vector.load %arg7[%c0_10, %c0_11] : memref<8x64xf32, #tpu.memory_space<vmem>>, vector<8x64xf32>
      %c0_12 = arith.constant 0 : index
      %c0_13 = arith.constant 0 : index
      %13 = vector.load %arg5[%c0_12, %c0_13] : memref<1x64xf32, #tpu.memory_space<vmem>>, vector<1x64xf32>
      %14 = vector.broadcast %13 : vector<1x64xf32> to vector<8x64xf32>
      %15 = arith.addf %12, %14 : vector<8x64xf32>
      %cst_14 = arith.constant 0.000000e+00 : f32
      %16 = vector.broadcast %cst_14 : f32 to vector<8x64xf32>
      %17 = arith.maximumf %15, %16 : vector<8x64xf32>
      %18 = arith.truncf %17 : vector<8x64xf32> to vector<8x64xbf16>
      %c0_15 = arith.constant 0 : index
      %c0_16 = arith.constant 0 : index
      %19 = vector.load %arg6[%c0_15, %c0_16] : memref<8x64xbf16, #tpu.memory_space<vmem>>, vector<8x64xbf16>
      tpu.vector_store %arg6[%c0_15, %c0_16], %18 {strides = array<i32>} : memref<8x64xbf16, #tpu.memory_space<vmem>>, vector<8x64xbf16>,
    } else {
    }
    return
  }
  func.func @transform_0(%arg0: i32, %arg1: i32, %arg2: i32) -> (i32, i32) {
    %c0_i32 = arith.constant 0 : i32
    return %arg0, %arg2 : i32, i32
  }
  func.func @transform_1(%arg0: i32, %arg1: i32, %arg2: i32) -> (i32, i32) {
    %c0_i32 = arith.constant 0 : i32
    return %arg2, %arg1 : i32, i32
  }
  func.func @transform_2(%arg0: i32, %arg1: i32, %arg2: i32) -> (i32, i32) {
    %c0_i32 = arith.constant 0 : i32
    %c0_i32_0 = arith.constant 0 : i32
    return %c0_i32, %arg1 : i32, i32
  }
  func.func @transform_3(%arg0: i32, %arg1: i32, %arg2: i32) -> (i32, i32) {
    %c0_i32 = arith.constant 0 : i32
    return %arg0, %arg1 : i32, i32
  }
}

module attributes {stable_mosaic.version = 11 : i64} {
  func.func @_bam_kernel(%arg0: i32, %arg1: memref<1x4x64xbf16, #tpu.memory_space<vmem>>, %arg2: memref<64x4xf32, #tpu.memory_space<vmem>>, %arg3: memref<1x4xf32, #tpu.memory_space<vmem>>, %arg4: memref<4x64xf32, #tpu.memory_space<vmem>>, %arg5: memref<1x64xf32, #tpu.memory_space<vmem>>, %arg6: memref<64x4xf32, #tpu.memory_space<vmem>>, %arg7: memref<1x4xf32, #tpu.memory_space<vmem>>, %arg8: memref<1x4x4xf32, #tpu.memory_space<vmem>>, %arg9: memref<1x4x4xf32, #tpu.memory_space<vmem>>, %arg10: memref<1x4xf32, #tpu.memory_space<vmem>>, %arg11: memref<1x4x4xf32, #tpu.memory_space<vmem>>, %arg12: memref<1x4xf32, #tpu.memory_space<vmem>>, %arg13: memref<1x4xf32, #tpu.memory_space<vmem>>, %arg14: memref<1x1xf32, #tpu.memory_space<vmem>>, %arg15: memref<1x4x64xbf16, #tpu.memory_space<vmem>>) attributes {dimension_semantics = [#tpu.dimension_semantics<parallel>], iteration_bounds = array<i64: 2>, scalar_prefetch = 0 : i64, scratch_operands = 0 : i64, tpu.core_type = #tpu.core_type<tc>, window_params = [{transform_indices = @transform_0, window_bounds = array<i64: 1, 4, 64>}, {pipeline_mode = #tpu.pipeline_mode<synchronous>, transform_indices = @transform_1, window_bounds = array<i64: 64, 4>}, {pipeline_mode = #tpu.pipeline_mode<synchronous>, transform_indices = @transform_2, window_bounds = array<i64: 1, 4>}, {pipeline_mode = #tpu.pipeline_mode<synchronous>, transform_indices = @transform_3, window_bounds = array<i64: 4, 64>}, {pipeline_mode = #tpu.pipeline_mode<synchronous>, transform_indices = @transform_4, window_bounds = array<i64: 1, 64>}, {pipeline_mode = #tpu.pipeline_mode<synchronous>, transform_indices = @transform_5, window_bounds = array<i64: 64, 4>}, {pipeline_mode = #tpu.pipeline_mode<synchronous>, transform_indices = @transform_6, window_bounds = array<i64: 1, 4>}, {pipeline_mode = #tpu.pipeline_mode<synchronous>, transform_indices = @transform_7, window_bounds = array<i64: 1, 4, 4>}, {pipeline_mode = #tpu.pipeline_mode<synchronous>, transform_indices = @transform_8, window_bounds = array<i64: 1, 4, 4>}, {pipeline_mode = #tpu.pipeline_mode<synchronous>, transform_indices = @transform_9, window_bounds = array<i64: 1, 4>}, {pipeline_mode = #tpu.pipeline_mode<synchronous>, transform_indices = @transform_10, window_bounds = array<i64: 1, 4, 4>}, {pipeline_mode = #tpu.pipeline_mode<synchronous>, transform_indices = @transform_11, window_bounds = array<i64: 1, 4>}, {pipeline_mode = #tpu.pipeline_mode<synchronous>, transform_indices = @transform_12, window_bounds = array<i64: 1, 4>}, {pipeline_mode = #tpu.pipeline_mode<synchronous>, transform_indices = @transform_13, window_bounds = array<i64: 1, 1>}, {transform_indices = @transform_14, window_bounds = array<i64: 1, 4, 64>}]} {
    %c0 = arith.constant 0 : index
    %c0_0 = arith.constant 0 : index
    %c0_1 = arith.constant 0 : index
    %0 = vector.load %arg1[%c0, %c0_0, %c0_1] : memref<1x4x64xbf16, #tpu.memory_space<vmem>>, vector<1x4x64xbf16>
    %1 = vector.shape_cast %0 : vector<1x4x64xbf16> to vector<4x64xbf16>
    %2 = arith.extf %1 : vector<4x64xbf16> to vector<4x64xf32>
    %cst = arith.constant dense<0.000000e+00> : vector<64xf32>
    %3 = vector.multi_reduction <add>, %2, %cst [0] : vector<4x64xf32> to vector<64xf32>
    %4 = vector.shape_cast %3 : vector<64xf32> to vector<1x64xf32>
    %cst_2 = arith.constant 2.500000e-01 : f32
    %5 = vector.broadcast %cst_2 : f32 to vector<1x64xf32>
    %6 = arith.mulf %4, %5 : vector<1x64xf32>
    %c0_3 = arith.constant 0 : index
    %c0_4 = arith.constant 0 : index
    %7 = vector.load %arg2[%c0_3, %c0_4] : memref<64x4xf32, #tpu.memory_space<vmem>>, vector<64x4xf32>
    %cst_5 = arith.constant dense<0.000000e+00> : vector<1x4xf32>
    %8 = tpu.matmul %6, %7, %cst_5 {dimension_numbers = #tpu.dot_dimension_numbers<[1], [0], [0], [1], [0, 0, 1, 1], [], []>} : vector<1x64xf32>, vector<64x4xf32>, vector<1x4xf32> -> vector<1x4xf32>
    %c0_6 = arith.constant 0 : index
    %c0_7 = arith.constant 0 : index
    %9 = vector.load %arg3[%c0_6, %c0_7] : memref<1x4xf32, #tpu.memory_space<vmem>>, vector<1x4xf32>
    %10 = arith.addf %8, %9 : vector<1x4xf32>
    %cst_8 = arith.constant 0.000000e+00 : f32
    %11 = vector.broadcast %cst_8 : f32 to vector<1x4xf32>
    %12 = arith.maximumf %10, %11 : vector<1x4xf32>
    %c0_9 = arith.constant 0 : index
    %c0_10 = arith.constant 0 : index
    %13 = vector.load %arg4[%c0_9, %c0_10] : memref<4x64xf32, #tpu.memory_space<vmem>>, vector<4x64xf32>
    %cst_11 = arith.constant dense<0.000000e+00> : vector<1x64xf32>
    %14 = tpu.matmul %12, %13, %cst_11 {dimension_numbers = #tpu.dot_dimension_numbers<[1], [0], [0], [1], [0, 0, 1, 1], [], []>} : vector<1x4xf32>, vector<4x64xf32>, vector<1x64xf32> -> vector<1x64xf32>
    %c0_12 = arith.constant 0 : index
    %c0_13 = arith.constant 0 : index
    %15 = vector.load %arg5[%c0_12, %c0_13] : memref<1x64xf32, #tpu.memory_space<vmem>>, vector<1x64xf32>
    %16 = arith.addf %14, %15 : vector<1x64xf32>
    %c0_14 = arith.constant 0 : index
    %c0_15 = arith.constant 0 : index
    %17 = vector.load %arg6[%c0_14, %c0_15] : memref<64x4xf32, #tpu.memory_space<vmem>>, vector<64x4xf32>
    %cst_16 = arith.constant dense<0.000000e+00> : vector<4x4xf32>
    %18 = tpu.matmul %2, %17, %cst_16 {dimension_numbers = #tpu.dot_dimension_numbers<[1], [0], [0], [1], [0, 0, 1, 1], [], []>} : vector<4x64xf32>, vector<64x4xf32>, vector<4x4xf32> -> vector<4x4xf32>
    %c0_17 = arith.constant 0 : index
    %c0_18 = arith.constant 0 : index
    %19 = vector.load %arg7[%c0_17, %c0_18] : memref<1x4xf32, #tpu.memory_space<vmem>>, vector<1x4xf32>
    %20 = vector.broadcast %19 : vector<1x4xf32> to vector<4x4xf32>
    %21 = arith.addf %18, %20 : vector<4x4xf32>
    %cst_19 = arith.constant 0.000000e+00 : f32
    %22 = vector.broadcast %cst_19 : f32 to vector<4x4xf32>
    %23 = arith.maximumf %21, %22 : vector<4x4xf32>
    %cst_20 = arith.constant 0.000000e+00 : f32
    %24 = vector.broadcast %cst_20 : f32 to vector<4x4xf32>
    %c0_21 = arith.constant 0 : index
    %c0_22 = arith.constant 0 : index
    %25 = vector.load %arg10[%c0_21, %c0_22] : memref<1x4xf32, #tpu.memory_space<vmem>>, vector<1x4xf32>
    %26 = vector.broadcast %25 : vector<1x4xf32> to vector<4x4xf32>
    %27 = arith.addf %24, %26 : vector<4x4xf32>
    %c0_23 = arith.constant 0 : index
    %c0_24 = arith.constant 0 : index
    %c0_25 = arith.constant 0 : index
    %28 = vector.load %arg8[%c0_23, %c0_24, %c0_25] : memref<1x4x4xf32, #tpu.memory_space<vmem>>, vector<1x4x4xf32>
    %29 = vector.shape_cast %28 : vector<1x4x4xf32> to vector<4x4xf32>
    %cst_26 = arith.constant dense<0.000000e+00> : vector<4x4xf32>
    %30 = tpu.matmul %29, %23, %cst_26 {dimension_numbers = #tpu.dot_dimension_numbers<[1], [0], [0], [1], [0, 0, 1, 1], [], []>} : vector<4x4xf32>, vector<4x4xf32>, vector<4x4xf32> -> vector<4x4xf32>
    %c0_27 = arith.constant 0 : index
    %c0_28 = arith.constant 0 : index
    %c0_29 = arith.constant 0 : index
    %31 = vector.load %arg9[%c0_27, %c0_28, %c0_29] : memref<1x4x4xf32, #tpu.memory_space<vmem>>, vector<1x4x4xf32>
    %32 = vector.shape_cast %31 : vector<1x4x4xf32> to vector<4x4xf32>
    %cst_30 = arith.constant dense<0.000000e+00> : vector<4x4xf32>
    %33 = tpu.matmul %30, %32, %cst_30 {dimension_numbers = #tpu.dot_dimension_numbers<[1], [0], [0], [1], [0, 0, 1, 1], [], []>} : vector<4x4xf32>, vector<4x4xf32>, vector<4x4xf32> -> vector<4x4xf32>
    %34 = arith.addf %27, %33 : vector<4x4xf32>
    %cst_31 = arith.constant 0.000000e+00 : f32
    %35 = vector.broadcast %cst_31 : f32 to vector<4x4xf32>
    %36 = arith.maximumf %34, %35 : vector<4x4xf32>
    %cst_32 = arith.constant 0.000000e+00 : f32
    %37 = vector.broadcast %cst_32 : f32 to vector<4x4xf32>
    %c0_33 = arith.constant 0 : index
    %c0_34 = arith.constant 0 : index
    %38 = vector.load %arg12[%c0_33, %c0_34] : memref<1x4xf32, #tpu.memory_space<vmem>>, vector<1x4xf32>
    %39 = vector.broadcast %38 : vector<1x4xf32> to vector<4x4xf32>
    %40 = arith.addf %37, %39 : vector<4x4xf32>
    %c0_35 = arith.constant 0 : index
    %c0_36 = arith.constant 0 : index
    %c0_37 = arith.constant 0 : index
    %41 = vector.load %arg8[%c0_35, %c0_36, %c0_37] : memref<1x4x4xf32, #tpu.memory_space<vmem>>, vector<1x4x4xf32>
    %42 = vector.shape_cast %41 : vector<1x4x4xf32> to vector<4x4xf32>
    %cst_38 = arith.constant dense<0.000000e+00> : vector<4x4xf32>
    %43 = tpu.matmul %42, %36, %cst_38 {dimension_numbers = #tpu.dot_dimension_numbers<[1], [0], [0], [1], [0, 0, 1, 1], [], []>} : vector<4x4xf32>, vector<4x4xf32>, vector<4x4xf32> -> vector<4x4xf32>
    %c0_39 = arith.constant 0 : index
    %c0_40 = arith.constant 0 : index
    %c0_41 = arith.constant 0 : index
    %44 = vector.load %arg11[%c0_39, %c0_40, %c0_41] : memref<1x4x4xf32, #tpu.memory_space<vmem>>, vector<1x4x4xf32>
    %45 = vector.shape_cast %44 : vector<1x4x4xf32> to vector<4x4xf32>
    %cst_42 = arith.constant dense<0.000000e+00> : vector<4x4xf32>
    %46 = tpu.matmul %43, %45, %cst_42 {dimension_numbers = #tpu.dot_dimension_numbers<[1], [0], [0], [1], [0, 0, 1, 1], [], []>} : vector<4x4xf32>, vector<4x4xf32>, vector<4x4xf32> -> vector<4x4xf32>
    %47 = arith.addf %40, %46 : vector<4x4xf32>
    %cst_43 = arith.constant 0.000000e+00 : f32
    %48 = vector.broadcast %cst_43 : f32 to vector<4x4xf32>
    %49 = arith.maximumf %47, %48 : vector<4x4xf32>
    %c0_44 = arith.constant 0 : index
    %c0_45 = arith.constant 0 : index
    %50 = vector.load %arg13[%c0_44, %c0_45] : memref<1x4xf32, #tpu.memory_space<vmem>>, vector<1x4xf32>
    %51 = vector.broadcast %50 : vector<1x4xf32> to vector<4x4xf32>
    %52 = arith.mulf %49, %51 : vector<4x4xf32>
    %cst_46 = arith.constant dense<0.000000e+00> : vector<4xf32>
    %53 = vector.multi_reduction <add>, %52, %cst_46 [1] : vector<4x4xf32> to vector<4xf32>
    %54 = vector.shape_cast %53 : vector<4xf32> to vector<4x1xf32>
    %c0_47 = arith.constant 0 : index
    %c0_48 = arith.constant 0 : index
    %55 = vector.load %arg14[%c0_47, %c0_48] : memref<1x1xf32, #tpu.memory_space<vmem>>, vector<1x1xf32>
    %56 = vector.broadcast %55 : vector<1x1xf32> to vector<4x1xf32>
    %57 = arith.addf %54, %56 : vector<4x1xf32>
    %58 = vector.broadcast %16 : vector<1x64xf32> to vector<4x64xf32>
    %59 = vector.broadcast %57 : vector<4x1xf32> to vector<4x64xf32>
    %60 = arith.addf %58, %59 : vector<4x64xf32>
    %61 = arith.negf %60 : vector<4x64xf32>
    %62 = math.exp %61 : vector<4x64xf32>
    %cst_49 = arith.constant 1.000000e+00 : f32
    %63 = vector.broadcast %cst_49 : f32 to vector<4x64xf32>
    %64 = arith.addf %63, %62 : vector<4x64xf32>
    %65 = arith.divf %63, %64 : vector<4x64xf32>
    %cst_50 = arith.constant 1.000000e+00 : f32
    %66 = vector.broadcast %cst_50 : f32 to vector<4x64xf32>
    %67 = arith.addf %66, %65 : vector<4x64xf32>
    %68 = arith.mulf %2, %67 : vector<4x64xf32>
    %69 = arith.truncf %68 : vector<4x64xf32> to vector<4x64xbf16>
    %c0_51 = arith.constant 0 : index
    %c0_52 = arith.constant 0 : index
    %c0_53 = arith.constant 0 : index
    %70 = vector.load %arg15[%c0_51, %c0_52, %c0_53] : memref<1x4x64xbf16, #tpu.memory_space<vmem>>, vector<1x4x64xbf16>
    %71 = vector.shape_cast %70 : vector<1x4x64xbf16> to vector<4x64xbf16>
    %72 = vector.shape_cast %69 : vector<4x64xbf16> to vector<1x4x64xbf16>
    tpu.vector_store %arg15[%c0_51, %c0_52, %c0_53], %72 {strides = array<i32>} : memref<1x4x64xbf16, #tpu.memory_space<vmem>>, vector<1x4x64xbf16>,
    return
  }
  func.func @transform_0(%arg0: i32) -> (i32, i32, i32) {
    %c0_i32 = arith.constant 0 : i32
    %c0_i32_0 = arith.constant 0 : i32
    %c0_i32_1 = arith.constant 0 : i32
    return %arg0, %c0_i32, %c0_i32_0 : i32, i32, i32
  }
  func.func @transform_1(%arg0: i32) -> (i32, i32) {
    %c0_i32 = arith.constant 0 : i32
    %c0_i32_0 = arith.constant 0 : i32
    %c0_i32_1 = arith.constant 0 : i32
    return %c0_i32, %c0_i32_0 : i32, i32
  }
  func.func @transform_2(%arg0: i32) -> (i32, i32) {
    %c0_i32 = arith.constant 0 : i32
    %c0_i32_0 = arith.constant 0 : i32
    %c0_i32_1 = arith.constant 0 : i32
    return %c0_i32, %c0_i32_0 : i32, i32
  }
  func.func @transform_3(%arg0: i32) -> (i32, i32) {
    %c0_i32 = arith.constant 0 : i32
    %c0_i32_0 = arith.constant 0 : i32
    %c0_i32_1 = arith.constant 0 : i32
    return %c0_i32, %c0_i32_0 : i32, i32
  }
  func.func @transform_4(%arg0: i32) -> (i32, i32) {
    %c0_i32 = arith.constant 0 : i32
    %c0_i32_0 = arith.constant 0 : i32
    %c0_i32_1 = arith.constant 0 : i32
    return %c0_i32, %c0_i32_0 : i32, i32
  }
  func.func @transform_5(%arg0: i32) -> (i32, i32) {
    %c0_i32 = arith.constant 0 : i32
    %c0_i32_0 = arith.constant 0 : i32
    %c0_i32_1 = arith.constant 0 : i32
    return %c0_i32, %c0_i32_0 : i32, i32
  }
  func.func @transform_6(%arg0: i32) -> (i32, i32) {
    %c0_i32 = arith.constant 0 : i32
    %c0_i32_0 = arith.constant 0 : i32
    %c0_i32_1 = arith.constant 0 : i32
    return %c0_i32, %c0_i32_0 : i32, i32
  }
  func.func @transform_7(%arg0: i32) -> (i32, i32, i32) {
    %c0_i32 = arith.constant 0 : i32
    %c0_i32_0 = arith.constant 0 : i32
    %c0_i32_1 = arith.constant 0 : i32
    %c0_i32_2 = arith.constant 0 : i32
    return %c0_i32, %c0_i32_0, %c0_i32_1 : i32, i32, i32
  }
  func.func @transform_8(%arg0: i32) -> (i32, i32, i32) {
    %c0_i32 = arith.constant 0 : i32
    %c0_i32_0 = arith.constant 0 : i32
    %c0_i32_1 = arith.constant 0 : i32
    %c0_i32_2 = arith.constant 0 : i32
    return %c0_i32, %c0_i32_0, %c0_i32_1 : i32, i32, i32
  }
  func.func @transform_9(%arg0: i32) -> (i32, i32) {
    %c0_i32 = arith.constant 0 : i32
    %c0_i32_0 = arith.constant 0 : i32
    %c0_i32_1 = arith.constant 0 : i32
    return %c0_i32, %c0_i32_0 : i32, i32
  }
  func.func @transform_10(%arg0: i32) -> (i32, i32, i32) {
    %c0_i32 = arith.constant 0 : i32
    %c0_i32_0 = arith.constant 0 : i32
    %c0_i32_1 = arith.constant 0 : i32
    %c0_i32_2 = arith.constant 0 : i32
    return %c0_i32, %c0_i32_0, %c0_i32_1 : i32, i32, i32
  }
  func.func @transform_11(%arg0: i32) -> (i32, i32) {
    %c0_i32 = arith.constant 0 : i32
    %c0_i32_0 = arith.constant 0 : i32
    %c0_i32_1 = arith.constant 0 : i32
    return %c0_i32, %c0_i32_0 : i32, i32
  }
  func.func @transform_12(%arg0: i32) -> (i32, i32) {
    %c0_i32 = arith.constant 0 : i32
    %c0_i32_0 = arith.constant 0 : i32
    %c0_i32_1 = arith.constant 0 : i32
    return %c0_i32, %c0_i32_0 : i32, i32
  }
  func.func @transform_13(%arg0: i32) -> (i32, i32) {
    %c0_i32 = arith.constant 0 : i32
    %c0_i32_0 = arith.constant 0 : i32
    %c0_i32_1 = arith.constant 0 : i32
    return %c0_i32, %c0_i32_0 : i32, i32
  }
  func.func @transform_14(%arg0: i32) -> (i32, i32, i32) {
    %c0_i32 = arith.constant 0 : i32
    %c0_i32_0 = arith.constant 0 : i32
    %c0_i32_1 = arith.constant 0 : i32
    return %arg0, %c0_i32, %c0_i32_0 : i32, i32, i32
  }
}

module attributes {stable_mosaic.version = 11 : i64} {
  func.func @_mm_kernel(%arg0: i32, %arg1: i32, %arg2: i32, %arg3: memref<8x576xbf16, #tpu.memory_space<vmem>>, %arg4: memref<576x64xbf16, #tpu.memory_space<vmem>>, %arg5: memref<1x64xf32, #tpu.memory_space<vmem>>, %arg6: memref<8x64xbf16, #tpu.memory_space<vmem>>, %arg7: memref<8x64xf32, #tpu.memory_space<vmem>>) attributes {dimension_semantics = [#tpu.dimension_semantics<parallel>, #tpu.dimension_semantics<parallel>, #tpu.dimension_semantics<arbitrary>], iteration_bounds = array<i64: 1, 1, 1>, scalar_prefetch = 0 : i64, scratch_operands = 1 : i64, tpu.core_type = #tpu.core_type<tc>, window_params = [{transform_indices = @transform_0, window_bounds = array<i64: 8, 576>}, {transform_indices = @transform_1, window_bounds = array<i64: 576, 64>}, {transform_indices = @transform_2, window_bounds = array<i64: 1, 64>}, {transform_indices = @transform_3, window_bounds = array<i64: 8, 64>}]} {
    %c0_i32 = arith.constant 0 : i32
    %0 = arith.cmpi eq, %arg2, %c0_i32 : i32
    %1 = arith.extui %0 : i1 to i32
    %c0_i32_0 = arith.constant 0 : i32
    %2 = arith.cmpi ne, %1, %c0_i32_0 : i32
    scf.if %2 {
      %cst_10 = arith.constant 0.000000e+00 : f32
      %12 = vector.broadcast %cst_10 : f32 to vector<8x64xf32>
      %c0_11 = arith.constant 0 : index
      %c0_12 = arith.constant 0 : index
      %13 = vector.load %arg7[%c0_11, %c0_12] : memref<8x64xf32, #tpu.memory_space<vmem>>, vector<8x64xf32>
      tpu.vector_store %arg7[%c0_11, %c0_12], %12 {strides = array<i32>} : memref<8x64xf32, #tpu.memory_space<vmem>>, vector<8x64xf32>,
    } else {
    }
    %c0 = arith.constant 0 : index
    %c0_1 = arith.constant 0 : index
    %3 = vector.load %arg7[%c0, %c0_1] : memref<8x64xf32, #tpu.memory_space<vmem>>, vector<8x64xf32>
    %c0_2 = arith.constant 0 : index
    %c0_3 = arith.constant 0 : index
    %4 = vector.load %arg3[%c0_2, %c0_3] : memref<8x576xbf16, #tpu.memory_space<vmem>>, vector<8x576xbf16>
    %c0_4 = arith.constant 0 : index
    %c0_5 = arith.constant 0 : index
    %5 = vector.load %arg4[%c0_4, %c0_5] : memref<576x64xbf16, #tpu.memory_space<vmem>>, vector<576x64xbf16>
    %cst = arith.constant dense<0.000000e+00> : vector<8x64xf32>
    %6 = tpu.matmul %4, %5, %cst {dimension_numbers = #tpu.dot_dimension_numbers<[1], [0], [0], [1], [0, 0, 1, 1], [], []>} : vector<8x576xbf16>, vector<576x64xbf16>, vector<8x64xf32> -> vector<8x64xf32>
    %7 = arith.addf %3, %6 : vector<8x64xf32>
    %c0_6 = arith.constant 0 : index
    %c0_7 = arith.constant 0 : index
    %8 = vector.load %arg7[%c0_6, %c0_7] : memref<8x64xf32, #tpu.memory_space<vmem>>, vector<8x64xf32>
    tpu.vector_store %arg7[%c0_6, %c0_7], %7 {strides = array<i32>} : memref<8x64xf32, #tpu.memory_space<vmem>>, vector<8x64xf32>,
    %c0_i32_8 = arith.constant 0 : i32
    %9 = arith.cmpi eq, %arg2, %c0_i32_8 : i32
    %10 = arith.extui %9 : i1 to i32
    %c0_i32_9 = arith.constant 0 : i32
    %11 = arith.cmpi ne, %10, %c0_i32_9 : i32
    scf.if %11 {
      %c0_10 = arith.constant 0 : index
      %c0_11 = arith.constant 0 : index
      %12 = vector.load %arg7[%c0_10, %c0_11] : memref<8x64xf32, #tpu.memory_space<vmem>>, vector<8x64xf32>
      %c0_12 = arith.constant 0 : index
      %c0_13 = arith.constant 0 : index
      %13 = vector.load %arg5[%c0_12, %c0_13] : memref<1x64xf32, #tpu.memory_space<vmem>>, vector<1x64xf32>
      %14 = vector.broadcast %13 : vector<1x64xf32> to vector<8x64xf32>
      %15 = arith.addf %12, %14 : vector<8x64xf32>
      %cst_14 = arith.constant 0.000000e+00 : f32
      %16 = vector.broadcast %cst_14 : f32 to vector<8x64xf32>
      %17 = arith.maximumf %15, %16 : vector<8x64xf32>
      %18 = arith.truncf %17 : vector<8x64xf32> to vector<8x64xbf16>
      %c0_15 = arith.constant 0 : index
      %c0_16 = arith.constant 0 : index
      %19 = vector.load %arg6[%c0_15, %c0_16] : memref<8x64xbf16, #tpu.memory_space<vmem>>, vector<8x64xbf16>
      tpu.vector_store %arg6[%c0_15, %c0_16], %18 {strides = array<i32>} : memref<8x64xbf16, #tpu.memory_space<vmem>>, vector<8x64xbf16>,
    } else {
    }
    return
  }
  func.func @transform_0(%arg0: i32, %arg1: i32, %arg2: i32) -> (i32, i32) {
    %c0_i32 = arith.constant 0 : i32
    return %arg0, %arg2 : i32, i32
  }
  func.func @transform_1(%arg0: i32, %arg1: i32, %arg2: i32) -> (i32, i32) {
    %c0_i32 = arith.constant 0 : i32
    return %arg2, %arg1 : i32, i32
  }
  func.func @transform_2(%arg0: i32, %arg1: i32, %arg2: i32) -> (i32, i32) {
    %c0_i32 = arith.constant 0 : i32
    %c0_i32_0 = arith.constant 0 : i32
    return %c0_i32, %arg1 : i32, i32
  }
  func.func @transform_3(%arg0: i32, %arg1: i32, %arg2: i32) -> (i32, i32) {
    %c0_i32 = arith.constant 0 : i32
    return %arg0, %arg1 : i32, i32
  }
}

module attributes {stable_mosaic.version = 11 : i64} {
  func.func @_mm_kernel(%arg0: i32, %arg1: i32, %arg2: i32, %arg3: memref<2x256xbf16, #tpu.memory_space<vmem>>, %arg4: memref<256x256xbf16, #tpu.memory_space<vmem>>, %arg5: memref<1x256xf32, #tpu.memory_space<vmem>>, %arg6: memref<2x256xbf16, #tpu.memory_space<vmem>>, %arg7: memref<2x256xf32, #tpu.memory_space<vmem>>) attributes {dimension_semantics = [#tpu.dimension_semantics<parallel>, #tpu.dimension_semantics<parallel>, #tpu.dimension_semantics<arbitrary>], iteration_bounds = array<i64: 1, 2, 1>, scalar_prefetch = 0 : i64, scratch_operands = 1 : i64, tpu.core_type = #tpu.core_type<tc>, window_params = [{transform_indices = @transform_0, window_bounds = array<i64: 2, 256>}, {transform_indices = @transform_1, window_bounds = array<i64: 256, 256>}, {transform_indices = @transform_2, window_bounds = array<i64: 1, 256>}, {transform_indices = @transform_3, window_bounds = array<i64: 2, 256>}]} {
    %c0_i32 = arith.constant 0 : i32
    %0 = arith.cmpi eq, %arg2, %c0_i32 : i32
    %1 = arith.extui %0 : i1 to i32
    %c0_i32_0 = arith.constant 0 : i32
    %2 = arith.cmpi ne, %1, %c0_i32_0 : i32
    scf.if %2 {
      %cst_10 = arith.constant 0.000000e+00 : f32
      %12 = vector.broadcast %cst_10 : f32 to vector<2x256xf32>
      %c0_11 = arith.constant 0 : index
      %c0_12 = arith.constant 0 : index
      %13 = vector.load %arg7[%c0_11, %c0_12] : memref<2x256xf32, #tpu.memory_space<vmem>>, vector<2x256xf32>
      tpu.vector_store %arg7[%c0_11, %c0_12], %12 {strides = array<i32>} : memref<2x256xf32, #tpu.memory_space<vmem>>, vector<2x256xf32>,
    } else {
    }
    %c0 = arith.constant 0 : index
    %c0_1 = arith.constant 0 : index
    %3 = vector.load %arg7[%c0, %c0_1] : memref<2x256xf32, #tpu.memory_space<vmem>>, vector<2x256xf32>
    %c0_2 = arith.constant 0 : index
    %c0_3 = arith.constant 0 : index
    %4 = vector.load %arg3[%c0_2, %c0_3] : memref<2x256xbf16, #tpu.memory_space<vmem>>, vector<2x256xbf16>
    %c0_4 = arith.constant 0 : index
    %c0_5 = arith.constant 0 : index
    %5 = vector.load %arg4[%c0_4, %c0_5] : memref<256x256xbf16, #tpu.memory_space<vmem>>, vector<256x256xbf16>
    %cst = arith.constant dense<0.000000e+00> : vector<2x256xf32>
    %6 = tpu.matmul %4, %5, %cst {dimension_numbers = #tpu.dot_dimension_numbers<[1], [0], [0], [1], [0, 0, 1, 1], [], []>} : vector<2x256xbf16>, vector<256x256xbf16>, vector<2x256xf32> -> vector<2x256xf32>
    %7 = arith.addf %3, %6 : vector<2x256xf32>
    %c0_6 = arith.constant 0 : index
    %c0_7 = arith.constant 0 : index
    %8 = vector.load %arg7[%c0_6, %c0_7] : memref<2x256xf32, #tpu.memory_space<vmem>>, vector<2x256xf32>
    tpu.vector_store %arg7[%c0_6, %c0_7], %7 {strides = array<i32>} : memref<2x256xf32, #tpu.memory_space<vmem>>, vector<2x256xf32>,
    %c0_i32_8 = arith.constant 0 : i32
    %9 = arith.cmpi eq, %arg2, %c0_i32_8 : i32
    %10 = arith.extui %9 : i1 to i32
    %c0_i32_9 = arith.constant 0 : i32
    %11 = arith.cmpi ne, %10, %c0_i32_9 : i32
    scf.if %11 {
      %c0_10 = arith.constant 0 : index
      %c0_11 = arith.constant 0 : index
      %12 = vector.load %arg7[%c0_10, %c0_11] : memref<2x256xf32, #tpu.memory_space<vmem>>, vector<2x256xf32>
      %c0_12 = arith.constant 0 : index
      %c0_13 = arith.constant 0 : index
      %13 = vector.load %arg5[%c0_12, %c0_13] : memref<1x256xf32, #tpu.memory_space<vmem>>, vector<1x256xf32>
      %14 = vector.broadcast %13 : vector<1x256xf32> to vector<2x256xf32>
      %15 = arith.addf %12, %14 : vector<2x256xf32>
      %cst_14 = arith.constant 0.000000e+00 : f32
      %16 = vector.broadcast %cst_14 : f32 to vector<2x256xf32>
      %17 = arith.maximumf %15, %16 : vector<2x256xf32>
      %18 = arith.truncf %17 : vector<2x256xf32> to vector<2x256xbf16>
      %c0_15 = arith.constant 0 : index
      %c0_16 = arith.constant 0 : index
      %19 = vector.load %arg6[%c0_15, %c0_16] : memref<2x256xbf16, #tpu.memory_space<vmem>>, vector<2x256xbf16>
      tpu.vector_store %arg6[%c0_15, %c0_16], %18 {strides = array<i32>} : memref<2x256xbf16, #tpu.memory_space<vmem>>, vector<2x256xbf16>,
    } else {
    }
    return
  }
  func.func @transform_0(%arg0: i32, %arg1: i32, %arg2: i32) -> (i32, i32) {
    %c0_i32 = arith.constant 0 : i32
    return %arg0, %arg2 : i32, i32
  }
  func.func @transform_1(%arg0: i32, %arg1: i32, %arg2: i32) -> (i32, i32) {
    %c0_i32 = arith.constant 0 : i32
    return %arg2, %arg1 : i32, i32
  }
  func.func @transform_2(%arg0: i32, %arg1: i32, %arg2: i32) -> (i32, i32) {
    %c0_i32 = arith.constant 0 : i32
    %c0_i32_0 = arith.constant 0 : i32
    return %c0_i32, %arg1 : i32, i32
  }
  func.func @transform_3(%arg0: i32, %arg1: i32, %arg2: i32) -> (i32, i32) {
    %c0_i32 = arith.constant 0 : i32
    return %arg0, %arg1 : i32, i32
  }
}

module attributes {stable_mosaic.version = 11 : i64} {
  func.func @_mm_kernel(%arg0: i32, %arg1: i32, %arg2: i32, %arg3: memref<2x512xbf16, #tpu.memory_space<vmem>>, %arg4: memref<512x6xbf16, #tpu.memory_space<vmem>>, %arg5: memref<1x6xf32, #tpu.memory_space<vmem>>, %arg6: memref<2x6xf32, #tpu.memory_space<vmem>>, %arg7: memref<2x6xf32, #tpu.memory_space<vmem>>) attributes {dimension_semantics = [#tpu.dimension_semantics<parallel>, #tpu.dimension_semantics<parallel>, #tpu.dimension_semantics<arbitrary>], iteration_bounds = array<i64: 1, 1, 1>, scalar_prefetch = 0 : i64, scratch_operands = 1 : i64, tpu.core_type = #tpu.core_type<tc>, window_params = [{transform_indices = @transform_0, window_bounds = array<i64: 2, 512>}, {transform_indices = @transform_1, window_bounds = array<i64: 512, 6>}, {transform_indices = @transform_2, window_bounds = array<i64: 1, 6>}, {transform_indices = @transform_3, window_bounds = array<i64: 2, 6>}]} {
    %c0_i32 = arith.constant 0 : i32
    %0 = arith.cmpi eq, %arg2, %c0_i32 : i32
    %1 = arith.extui %0 : i1 to i32
    %c0_i32_0 = arith.constant 0 : i32
    %2 = arith.cmpi ne, %1, %c0_i32_0 : i32
    scf.if %2 {
      %cst_10 = arith.constant 0.000000e+00 : f32
      %12 = vector.broadcast %cst_10 : f32 to vector<2x6xf32>
      %c0_11 = arith.constant 0 : index
      %c0_12 = arith.constant 0 : index
      %13 = vector.load %arg7[%c0_11, %c0_12] : memref<2x6xf32, #tpu.memory_space<vmem>>, vector<2x6xf32>
      tpu.vector_store %arg7[%c0_11, %c0_12], %12 {strides = array<i32>} : memref<2x6xf32, #tpu.memory_space<vmem>>, vector<2x6xf32>,
    } else {
    }
    %c0 = arith.constant 0 : index
    %c0_1 = arith.constant 0 : index
    %3 = vector.load %arg7[%c0, %c0_1] : memref<2x6xf32, #tpu.memory_space<vmem>>, vector<2x6xf32>
    %c0_2 = arith.constant 0 : index
    %c0_3 = arith.constant 0 : index
    %4 = vector.load %arg3[%c0_2, %c0_3] : memref<2x512xbf16, #tpu.memory_space<vmem>>, vector<2x512xbf16>
    %c0_4 = arith.constant 0 : index
    %c0_5 = arith.constant 0 : index
    %5 = vector.load %arg4[%c0_4, %c0_5] : memref<512x6xbf16, #tpu.memory_space<vmem>>, vector<512x6xbf16>
    %cst = arith.constant dense<0.000000e+00> : vector<2x6xf32>
    %6 = tpu.matmul %4, %5, %cst {dimension_numbers = #tpu.dot_dimension_numbers<[1], [0], [0], [1], [0, 0, 1, 1], [], []>} : vector<2x512xbf16>, vector<512x6xbf16>, vector<2x6xf32> -> vector<2x6xf32>
    %7 = arith.addf %3, %6 : vector<2x6xf32>
    %c0_6 = arith.constant 0 : index
    %c0_7 = arith.constant 0 : index
    %8 = vector.load %arg7[%c0_6, %c0_7] : memref<2x6xf32, #tpu.memory_space<vmem>>, vector<2x6xf32>
    tpu.vector_store %arg7[%c0_6, %c0_7], %7 {strides = array<i32>} : memref<2x6xf32, #tpu.memory_space<vmem>>, vector<2x6xf32>,
    %c0_i32_8 = arith.constant 0 : i32
    %9 = arith.cmpi eq, %arg2, %c0_i32_8 : i32
    %10 = arith.extui %9 : i1 to i32
    %c0_i32_9 = arith.constant 0 : i32
    %11 = arith.cmpi ne, %10, %c0_i32_9 : i32
    scf.if %11 {
      %c0_10 = arith.constant 0 : index
      %c0_11 = arith.constant 0 : index
      %12 = vector.load %arg7[%c0_10, %c0_11] : memref<2x6xf32, #tpu.memory_space<vmem>>, vector<2x6xf32>
      %c0_12 = arith.constant 0 : index
      %c0_13 = arith.constant 0 : index
      %13 = vector.load %arg5[%c0_12, %c0_13] : memref<1x6xf32, #tpu.memory_space<vmem>>, vector<1x6xf32>
      %14 = vector.broadcast %13 : vector<1x6xf32> to vector<2x6xf32>
      %15 = arith.addf %12, %14 : vector<2x6xf32>
      %c0_14 = arith.constant 0 : index
      %c0_15 = arith.constant 0 : index
      %16 = vector.load %arg6[%c0_14, %c0_15] : memref<2x6xf32, #tpu.memory_space<vmem>>, vector<2x6xf32>
      tpu.vector_store %arg6[%c0_14, %c0_15], %15 {strides = array<i32>} : memref<2x6xf32, #tpu.memory_space<vmem>>, vector<2x6xf32>,
    } else {
    }
    return
  }
  func.func @transform_0(%arg0: i32, %arg1: i32, %arg2: i32) -> (i32, i32) {
    %c0_i32 = arith.constant 0 : i32
    return %arg0, %arg2 : i32, i32
  }
  func.func @transform_1(%arg0: i32, %arg1: i32, %arg2: i32) -> (i32, i32) {
    %c0_i32 = arith.constant 0 : i32
    return %arg2, %arg1 : i32, i32
  }
  func.func @transform_2(%arg0: i32, %arg1: i32, %arg2: i32) -> (i32, i32) {
    %c0_i32 = arith.constant 0 : i32
    %c0_i32_0 = arith.constant 0 : i32
    return %c0_i32, %arg1 : i32, i32
  }
  func.func @transform_3(%arg0: i32, %arg1: i32, %arg2: i32) -> (i32, i32) {
    %c0_i32 = arith.constant 0 : i32
    return %arg0, %arg1 : i32, i32
  }
}

</mosaic_0001>

<llo_original>
// kernel: dqn_forward.7
$region0: #{dqn_forward.7}
  #allocation0 [shape = 'u32[]', space=smem, size = 0x4, offset = 0x4, fixed_abs, tag = 'smem constant byte address 0x4 - core index']
  #allocation1 [shape = 'u32[144,128]{1,0:T(1,128)}', space=vmem, size = 0x12000, scoped, tag = 'internal scratch']
  #allocation2 [shape = 'f32[32,32]{1,0:T(8,128)}', space=vmem, size = 0x4000, scoped, tag = 'scratch operand']
  %s0 = inlined_call_operand.vmem [shape: bf16[32,256], index: 0, kind: input, shape index: {}]
  %s1 = inlined_call_operand.vmem [shape: bf16[256,32], index: 1, kind: input, shape index: {}]
  %s2 = inlined_call_operand.vmem [shape: f32[1,32], index: 2, kind: input, shape index: {}]
  %s3 = inlined_call_operand.vmem [shape: bf16[32,32], index: 3, kind: output, shape index: {}]
  %s4 = sld [smem:[#allocation0]]
  $region30: #{dqn_forward.7} parent=0
    _
  %s6 = ssub.s32 1, %s4
  %s7 = scalar_select 0, %s6, %s4
  // Predicated region
  $region2: #{dqn_forward.7} parent=0 // pred_check
    _
  $region3: #{dqn_forward.7} parent=0 // pred_check_branch
    %9 = sbr.rel (0) target = $region5
  $region4: #{dqn_forward.7} parent=0 // pred_region
    _
  $region5: #{dqn_forward.7} parent=0 // pred_fallthru
    _
  // Predicated region
  $region6: #{dqn_forward.7} parent=0 // pred_check
    _
  $region7: #{dqn_forward.7} parent=0 // pred_check_branch
    %11 = sbr.rel (0) target = $region9
  $region8: #{dqn_forward.7} parent=0 // pred_region
    _
  $region9: #{dqn_forward.7} parent=0 // pred_fallthru
    _
  // Predicated region
  $region10: #{dqn_forward.7} parent=0 // pred_check
    _
  $region11: #{dqn_forward.7} parent=0 // pred_check_branch
    %13 = sbr.rel (0) target = $region13
  $region12: #{dqn_forward.7} parent=0 // pred_region
    _
  $region13: #{dqn_forward.7} parent=0 // pred_fallthru
    _
  %p15 = scmp.eq.s32.totalorder 0, 0
  // Predicated region
  $region14: #{dqn_forward.7} parent=0 // pred_check
    %p16 = pneg %p15
  $region15: #{dqn_forward.7} parent=0 // pred_check_branch
    %18 = sbr.rel (%p16) target = $region17
  $region16: #{dqn_forward.7} parent=0 // pred_region
    %vm19 = vcmask 261120
    %20 = vst.msk [vmem:[#allocation2] sm:$0xff] %vm19, 0.0
    %21 = vst.msk [vmem:[#allocation2 + $0x8] sm:$0xff] %vm19, 0.0
    %22 = vst.msk [vmem:[#allocation2 + $0x10] sm:$0xff] %vm19, 0.0
    %23 = vst.msk [vmem:[#allocation2 + $0x18] sm:$0xff] %vm19, 0.0
  $region17: #{dqn_forward.7} parent=0 // pred_fallthru
    _
  %v24 = vld [vmem:[#allocation2] sm:$0xff]
  %v25 = vld [vmem:[#allocation2 + $0x8] sm:$0xff]
  %v26 = vld [vmem:[#allocation2 + $0x10] sm:$0xff]
  %v27 = vld [vmem:[#allocation2 + $0x18] sm:$0xff]
  %v28 = vld [vmem:[%s0] sm:$0xff]
  %v29 = vld [vmem:[%s0 + $0x8] sm:$0xff]
  %v30 = vld [vmem:[%s0 + $0x10] sm:$0xff]
  %v31 = vld [vmem:[%s0 + $0x18] sm:$0xff]
  %v32 = vld [vmem:[%s1] sm:$0xf]
  %v33 = vld [vmem:[%s1 + $0x4] sm:$0xf]
  %v34 = vld [vmem:[%s1 + $0x8] sm:$0xf]
  %v35 = vld [vmem:[%s1 + $0xc] sm:$0xf]
  %v36 = vld [vmem:[%s1 + $0x10] sm:$0xf]
  %v37 = vld [vmem:[%s1 + $0x14] sm:$0xf]
  %v38 = vld [vmem:[%s1 + $0x18] sm:$0xf]
  %v39 = vld [vmem:[%s1 + $0x1c] sm:$0xf]
  %v40 = vld [vmem:[%s1 + $0x20] sm:$0xf]
  %v41 = vld [vmem:[%s1 + $0x24] sm:$0xf]
  %v42 = vld [vmem:[%s1 + $0x28] sm:$0xf]
  %v43 = vld [vmem:[%s1 + $0x2c] sm:$0xf]
  %v44 = vld [vmem:[%s1 + $0x30] sm:$0xf]
  %v45 = vld [vmem:[%s1 + $0x34] sm:$0xf]
  %v46 = vld [vmem:[%s1 + $0x38] sm:$0xf]
  %v47 = vld [vmem:[%s1 + $0x3c] sm:$0xf]
  %v48 = vld [vmem:[%s1 + $0x40] sm:$0xf]
  %v49 = vld [vmem:[%s1 + $0x44] sm:$0xf]
  %v50 = vld [vmem:[%s1 + $0x48] sm:$0xf]
  %v51 = vld [vmem:[%s1 + $0x4c] sm:$0xf]
  %v52 = vld [vmem:[%s1 + $0x50] sm:$0xf]
  %v53 = vld [vmem:[%s1 + $0x54] sm:$0xf]
  %v54 = vld [vmem:[%s1 + $0x58] sm:$0xf]
  %v55 = vld [vmem:[%s1 + $0x5c] sm:$0xf]
  %v56 = vld [vmem:[%s1 + $0x60] sm:$0xf]
  %v57 = vld [vmem:[%s1 + $0x64] sm:$0xf]
  %v58 = vld [vmem:[%s1 + $0x68] sm:$0xf]
  %v59 = vld [vmem:[%s1 + $0x6c] sm:$0xf]
  %v60 = vld [vmem:[%s1 + $0x70] sm:$0xf]
  %v61 = vld [vmem:[%s1 + $0x74] sm:$0xf]
  %v62 = vld [vmem:[%s1 + $0x78] sm:$0xf]
  %v63 = vld [vmem:[%s1 + $0x7c] sm:$0xf]
  %v68 = vunpack.c.l.b16 %v28
  %v69 = vunpack.c.h.b16 %v28
  %v70 = vunpack.c.l.b16 %v29
  %v71 = vunpack.c.h.b16 %v29
  %v72 = vunpack.c.l.b16 %v30
  %v73 = vunpack.c.h.b16 %v30
  %v74 = vunpack.c.l.b16 %v31
  %v75 = vunpack.c.h.b16 %v31
  %v76 = vpack.c.b16 %v70, %v68
  %v77 = vpack.c.b16 %v71, %v69
  %v78 = vpack.c.b16 %v74, %v72
  %v79 = vpack.c.b16 %v75, %v73
  %v116 = vunpack.c.l.b16 %v32
  %v117 = vunpack.c.l.b16 %v33
  %v118 = vunpack.c.l.b16 %v34
  %v119 = vunpack.c.l.b16 %v35
  %v120 = vunpack.c.l.b16 %v36
  %v121 = vunpack.c.l.b16 %v37
  %v122 = vunpack.c.l.b16 %v38
  %v123 = vunpack.c.l.b16 %v39
  %v124 = vunpack.c.l.b16 %v40
  %v125 = vunpack.c.l.b16 %v41
  %v126 = vunpack.c.l.b16 %v42
  %v127 = vunpack.c.l.b16 %v43
  %v128 = vunpack.c.l.b16 %v44
  %v129 = vunpack.c.l.b16 %v45
  %v130 = vunpack.c.l.b16 %v46
  %v131 = vunpack.c.l.b16 %v47
  %v132 = vunpack.c.l.b16 %v48
  %v133 = vunpack.c.l.b16 %v49
  %v134 = vunpack.c.l.b16 %v50
  %v135 = vunpack.c.l.b16 %v51
  %v136 = vunpack.c.l.b16 %v52
  %v137 = vunpack.c.l.b16 %v53
  %v138 = vunpack.c.l.b16 %v54
  %v139 = vunpack.c.l.b16 %v55
  %v140 = vunpack.c.l.b16 %v56
  %v141 = vunpack.c.l.b16 %v57
  %v142 = vunpack.c.l.b16 %v58
  %v143 = vunpack.c.l.b16 %v59
  %v144 = vunpack.c.l.b16 %v60
  %v145 = vunpack.c.l.b16 %v61
  %v146 = vunpack.c.l.b16 %v62
  %v147 = vunpack.c.l.b16 %v63
  %v148 = vpack.c.b16 %v117, %v116
  %v149 = vpack.c.b16 %v119, %v118
  %v150 = vpack.c.b16 %v121, %v120
  %v151 = vpack.c.b16 %v123, %v122
  %v152 = vpack.c.b16 %v125, %v124
  %v153 = vpack.c.b16 %v127, %v126
  %v154 = vpack.c.b16 %v129, %v128
  %v155 = vpack.c.b16 %v131, %v130
  %v156 = vpack.c.b16 %v133, %v132
  %v157 = vpack.c.b16 %v135, %v134
  %v158 = vpack.c.b16 %v137, %v136
  %v159 = vpack.c.b16 %v139, %v138
  %v160 = vpack.c.b16 %v141, %v140
  %v161 = vpack.c.b16 %v143, %v142
  %v162 = vpack.c.b16 %v145, %v144
  %v163 = vpack.c.b16 %v147, %v146
  %180 = vmatprep.subr.bf16.mxu0 0
  %181 = vmatpush1.bf16.msra.mxu0 %v155
  %182 = vmatprep.subr.bf16.mxu0 0
  %183 = vmatpush1.bf16.msra.mxu0 %v154
  %184 = vmatprep.subr.bf16.mxu0 0
  %185 = vmatpush1.bf16.msra.mxu0 %v153
  %186 = vmatprep.subr.bf16.mxu0 0
  %187 = vmatpush1.bf16.msra.mxu0 %v152
  %188 = vmatprep.subr.bf16.mxu0 0
  %189 = vmatpush1.bf16.msra.mxu0 %v151
  %190 = vmatprep.subr.bf16.mxu0 0
  %191 = vmatpush1.bf16.msra.mxu0 %v150
  %192 = vmatprep.subr.bf16.mxu0 0
  %193 = vmatpush1.bf16.msra.mxu0 %v149
  %194 = vmatprep.subr.bf16.mxu0 0
  %195 = vmatpush1.bf16.msra.mxu0 %v148
  %196 = vmatprep.subr.bf16.mxu0 0
  %197 = vmatpush2.bf16.msra.mxu0 %v163
  %198 = vmatprep.subr.bf16.mxu0 0
  %199 = vmatpush2.bf16.msra.mxu0 %v162
  %200 = vmatprep.subr.bf16.mxu0 0
  %201 = vmatpush2.bf16.msra.mxu0 %v161
  %202 = vmatprep.subr.bf16.mxu0 0
  %203 = vmatpush2.bf16.msra.mxu0 %v160
  %204 = vmatprep.subr.bf16.mxu0 0
  %205 = vmatpush2.bf16.msra.mxu0 %v159
  %206 = vmatprep.subr.bf16.mxu0 0
  %207 = vmatpush2.bf16.msra.mxu0 %v158
  %208 = vmatprep.subr.bf16.mxu0 0
  %209 = vmatpush2.bf16.msra.mxu0 %v157
  %210 = vmatprep.subr.bf16.mxu0 0
  %211 = vmatpush2.bf16.msra.mxu0 %v156
  %212 = vmatprep.mubr.bf16.mxu0 %v77
  %213 = vmatmul.mubr.bf16.gmra.mxu0 %v76
  %v214 = vpop.f32.mrf.mxu0
  %v215 = vadd.f32 0.0, %v214
  %v216 = vpop.f32.mrf.mxu0
  %v217 = vpop.f32.mrf.mxu0
  %v218 = vadd.f32 0.0, %v217
  %v219 = vpop.f32.mrf.mxu0
  %220 = vmatprep.mubr.bf16.mxu0 %v79
  %221 = vmatmul.mubr.bf16.gmra.mxu0 %v78
  %v222 = vpop.f32.mrf.mxu0
  %v223 = vadd.f32 0.0, %v222
  %v224 = vpop.f32.mrf.mxu0
  %v225 = vpop.f32.mrf.mxu0
  %v226 = vadd.f32 0.0, %v225
  %v227 = vpop.f32.mrf.mxu0
  %228 = vdwg.mxu0
  %v229 = vadd.f32 %v24, %v215
  %v230 = vadd.f32 %v25, %v218
  %v231 = vadd.f32 %v26, %v223
  %v232 = vadd.f32 %v27, %v226
  %vm233 = vcmask 261120
  %234 = vst.msk [vmem:[#allocation2] sm:$0xff] %vm233, %v229
  %235 = vst.msk [vmem:[#allocation2 + $0x8] sm:$0xff] %vm233, %v230
  %236 = vst.msk [vmem:[#allocation2 + $0x10] sm:$0xff] %vm233, %v231
  %237 = vst.msk [vmem:[#allocation2 + $0x18] sm:$0xff] %vm233, %v232
  // Predicated region
  $region18: #{dqn_forward.7} parent=0 // pred_check
    %p238 = pneg %p15
  $region19: #{dqn_forward.7} parent=0 // pred_check_branch
    %240 = sbr.rel (%p238) target = $region21
  $region20: #{dqn_forward.7} parent=0 // pred_region
    %v241 = vld [vmem:[#allocation2] sm:$0xff]
    %v242 = vld [vmem:[#allocation2 + $0x8] sm:$0xff]
    %v243 = vld [vmem:[#allocation2 + $0x10] sm:$0xff]
    %v244 = vld [vmem:[#allocation2 + $0x18] sm:$0xff]
    %v245 = vld [vmem:[%s2] sm:$0x1]
    %v247 = vlaneseq
    %v248 = vshrl.u32 %v247, 7
    %v249 = vsub.s32 0, %v248
    %v250 = vrot.slane %v245, %v249
    %v252 = vadd.f32 %v241, %v250
    %v253 = vadd.f32 %v242, %v250
    %v254 = vadd.f32 %v243, %v250
    %v255 = vadd.f32 %v244, %v250
    %v256 = vmax.f32 %v252, 0.0
    %v257 = vmax.f32 %v253, 0.0
    %v258 = vmax.f32 %v254, 0.0
    %v259 = vmax.f32 %v255, 0.0
    %v260 = vpack.c.bf16 %v257, %v256
    %v261 = vpack.c.bf16 %v259, %v258
    %v264 = vunpack.c.l.b16 %v260
    %v265 = vunpack.c.h.b16 %v260
    %v266 = vunpack.c.l.b16 %v261
    %v267 = vunpack.c.h.b16 %v261
    %v268 = vpack.c.b16 %v264, %v264
    %v269 = vpack.c.b16 %v265, %v265
    %v270 = vpack.c.b16 %v266, %v266
    %v271 = vpack.c.b16 %v267, %v267
    %vm276 = vcmask 257024
    %277 = vst.msk [vmem:[%s3] sm:$0xf] %vm276, %v268
    %278 = vst.msk [vmem:[%s3 + $0x4] sm:$0xf] %vm276, %v269
    %279 = vst.msk [vmem:[%s3 + $0x8] sm:$0xf] %vm276, %v270
    %280 = vst.msk [vmem:[%s3 + $0xc] sm:$0xf] %vm276, %v271
  $region21: #{dqn_forward.7} parent=0 // pred_fallthru
    _
  // Predicated region
  $region22: #{dqn_forward.7} parent=0 // pred_check
    _
  $region23: #{dqn_forward.7} parent=0 // pred_check_branch
    %282 = sbr.rel (0) target = $region25
  $region24: #{dqn_forward.7} parent=0 // pred_region
    _
  $region25: #{dqn_forward.7} parent=0 // pred_fallthru
    _
  // Predicated region
  $region26: #{dqn_forward.7} parent=0 // pred_check
    _
  $region27: #{dqn_forward.7} parent=0 // pred_check_branch
    %284 = sbr.rel (0) target = $region29
  $region28: #{dqn_forward.7} parent=0 // pred_region
    _
  $region29: #{dqn_forward.7} parent=0 // pred_fallthru
    _

// kernel: dqn_forward.8
$region0: #{dqn_forward.8}
  #allocation0 [shape = 'u32[]', space=smem, size = 0x4, offset = 0x4, fixed_abs, tag = 'smem constant byte address 0x4 - core index']
  #allocation1 [shape = 'u32[144,128]{1,0:T(1,128)}', space=vmem, size = 0x12000, scoped, tag = 'internal scratch']
  #allocation2 [shape = 'f32[1,1]{1,0:T(1,128)S(1)}', space=vmem, size = 0x200, scoped, tag = 'scoped memory for dqn_forward.8']
  %s0 = inlined_call_operand.vmem [shape: bf16[2,16,32], index: 0, kind: input, shape index: {}]
  %s1 = inlined_call_operand.vmem [shape: f32[32,2], index: 1, kind: input, shape index: {}]
  %s2 = inlined_call_operand.vmem [shape: f32[1,2], index: 2, kind: input, shape index: {}]
  %s3 = inlined_call_operand.vmem [shape: f32[2,32], index: 3, kind: input, shape index: {}]
  %s4 = inlined_call_operand.vmem [shape: f32[1,32], index: 4, kind: input, shape index: {}]
  %s5 = inlined_call_operand.vmem [shape: f32[32,2], index: 5, kind: input, shape index: {}]
  %s6 = inlined_call_operand.vmem [shape: f32[1,2], index: 6, kind: input, shape index: {}]
  %s7 = inlined_call_operand.vmem [shape: f32[1,16,16], index: 7, kind: input, shape index: {}]
  %s8 = inlined_call_operand.vmem [shape: f32[1,2,2], index: 8, kind: input, shape index: {}]
  %s9 = inlined_call_operand.vmem [shape: f32[1,2], index: 9, kind: input, shape index: {}]
  %s10 = inlined_call_operand.vmem [shape: f32[1,2,2], index: 10, kind: input, shape index: {}]
  %s11 = inlined_call_operand.vmem [shape: f32[1,2], index: 11, kind: input, shape index: {}]
  %s12 = inlined_call_operand.vmem [shape: f32[1,2], index: 12, kind: input, shape index: {}]
  %s13 = inlined_call_operand.<no memory space> [shape: f32[1,1], index: 13, kind: input, shape index: {}]
  %s14 = inlined_call_operand.vmem [shape: bf16[2,16,32], index: 14, kind: output, shape index: {}]
  %s15 = sld [smem:[#allocation0]]
  $region89: #{dqn_forward.8} parent=0
    _
  %s17 = ssub.s32 1, %s15
  %s18 = scalar_select 0, %s17, %s15
  %v19 = vstv %s13
  %20 = vst [vmem:[#allocation2] sm:$0x1] %v19
  loop: start=0, step=1, limit=4
  $region2: #{dqn_forward.8} parent=0 // loop_pre_header
    _
  $region3: #{dqn_forward.8} parent=0 // loop_header
    %s22 = sphi 0, %s26
    %p23 = scmp.ge.s32.totalorder %s22, 4
    %s32 = sphi 0, %s34
    %s35 = sphi 0, %s32
    %s36 = sphi 0, %s35
    %s52 = sphi 0, %s36
    %s56 = sphi 0, %s56
    %s58 = sphi 0, %s56
    %s59 = sphi 0, %s58
    %s73 = sphi 0, %s59
    %s77 = sphi 0, %s77
    %s79 = sphi 0, %s77
    %s80 = sphi 0, %s79
    %s94 = sphi 0, %s80
    %s98 = sphi 0, %s98
    %s100 = sphi 0, %s98
    %s101 = sphi 0, %s100
    %s115 = sphi 0, %s101
    %s119 = sphi 0, %s119
    %s121 = sphi 0, %s119
    %s122 = sphi 0, %s121
    %s136 = sphi 0, %s122
    %s140 = sphi 0, %s140
    %s142 = sphi 0, %s140
    %s143 = sphi 0, %s142
    %s157 = sphi 0, %s143
    %s161 = sphi 0, %s161
    %s163 = sphi 0, %s161
    %s164 = sphi 0, %s163
    %s178 = sphi 0, %s164
    %s182 = sphi 0, %s182
    %s184 = sphi 0, %s182
    %s185 = sphi 0, %s184
    %s199 = sphi 0, %s185
    %s203 = sphi 0, %s203
    %s205 = sphi 0, %s203
    %s206 = sphi 0, %s205
    %s220 = sphi 0, %s206
    %s224 = sphi 0, %s224
    %s226 = sphi 0, %s224
    %s227 = sphi 0, %s226
    %s241 = sphi 0, %s227
    %s245 = sphi 0, %s245
    %s247 = sphi 0, %s245
    %s248 = sphi 0, %s247
    %s262 = sphi 0, %s248
    %s266 = sphi 0, %s266
    %s268 = sphi 0, %s266
    %s269 = sphi 0, %s268
    %s283 = sphi 0, %s269
    %s287 = sphi 0, %s287
    %s289 = sphi 0, %s287
    %s290 = sphi 0, %s289
    %s304 = sphi 0, %s290
    %s308 = sphi 0, %s308
    %s310 = sphi 0, %s308
    %s311 = sphi 0, %s310
    %s325 = sphi 0, %s311
    %s331 = sphi 0, %s333
    %s334 = sphi 0, %s331
    %s335 = sphi 0, %s334
    %s351 = sphi 0, %s335
  $region4: #{dqn_forward.8} parent=0 // loop_header_branch
    %25 = sbr.rel (%p23) target = $region8
  $region5: #{dqn_forward.8} parent=0 // loop_body
    %s27 = ssub.s32 %s22, 1
    %s28 = ssub.s32 %s22, 2
    %s29 = sadd.s32 %s22, 1
    %s30 = ssub.s32 %s22, %s29
    %p31 = scmp.eq.s32.totalorder %s30, 0
    %s33 = sadd.s32 %s32, 1
    %s34 = scalar_select %p31, %s32, %s33
    %p37 = pneg %p31
    %p38 = scmp.eq.s32.totalorder %s22, 1
    %p39 = por %p37, %p38
    %p40 = scmp.ne.s32.totalorder %s32, %s35
    %p41 = scmp.eq.s32.totalorder %s22, 0
    %p42 = por %p40, %p41
    %p43 = scmp.ne.s32.totalorder %s32, %s35
    %p44 = scmp.eq.s32.totalorder %s27, 1
    %p45 = por %p43, %p44
    %p46 = scmp.ne.s32.totalorder %s35, %s36
    %p47 = scmp.eq.s32.totalorder %s27, 0
    %p48 = por %p46, %p47
    %p49 = scmp.ne.s32.totalorder %s35, %s36
    %p50 = scmp.eq.s32.totalorder %s28, 1
    %p51 = por %p49, %p50
    %p53 = scmp.ne.s32.totalorder %s36, %s52
    %p54 = scmp.eq.s32.totalorder %s28, 0
    %p55 = por %p53, %p54
    %s57 = sadd.s32 %s56, 1
    %p60 = scmp.eq.s32.totalorder %s22, 1
    %p61 = scmp.ne.s32.totalorder %s56, %s58
    %p62 = scmp.eq.s32.totalorder %s22, 0
    %p63 = por %p61, %p62
    %p64 = scmp.ne.s32.totalorder %s56, %s58
    %p65 = scmp.eq.s32.totalorder %s27, 1
    %p66 = por %p64, %p65
    %p67 = scmp.ne.s32.totalorder %s58, %s59
    %p68 = scmp.eq.s32.totalorder %s27, 0
    %p69 = por %p67, %p68
    %p70 = scmp.ne.s32.totalorder %s58, %s59
    %p71 = scmp.eq.s32.totalorder %s28, 1
    %p72 = por %p70, %p71
    %p74 = scmp.ne.s32.totalorder %s59, %s73
    %p75 = scmp.eq.s32.totalorder %s28, 0
    %p76 = por %p74, %p75
    %s78 = sadd.s32 %s77, 1
    %p81 = scmp.eq.s32.totalorder %s22, 1
    %p82 = scmp.ne.s32.totalorder %s77, %s79
    %p83 = scmp.eq.s32.totalorder %s22, 0
    %p84 = por %p82, %p83
    %p85 = scmp.ne.s32.totalorder %s77, %s79
    %p86 = scmp.eq.s32.totalorder %s27, 1
    %p87 = por %p85, %p86
    %p88 = scmp.ne.s32.totalorder %s79, %s80
    %p89 = scmp.eq.s32.totalorder %s27, 0
    %p90 = por %p88, %p89
    %p91 = scmp.ne.s32.totalorder %s79, %s80
    %p92 = scmp.eq.s32.totalorder %s28, 1
    %p93 = por %p91, %p92
    %p95 = scmp.ne.s32.totalorder %s80, %s94
    %p96 = scmp.eq.s32.totalorder %s28, 0
    %p97 = por %p95, %p96
    %s99 = sadd.s32 %s98, 1
    %p102 = scmp.eq.s32.totalorder %s22, 1
    %p103 = scmp.ne.s32.totalorder %s98, %s100
    %p104 = scmp.eq.s32.totalorder %s22, 0
    %p105 = por %p103, %p104
    %p106 = scmp.ne.s32.totalorder %s98, %s100
    %p107 = scmp.eq.s32.totalorder %s27, 1
    %p108 = por %p106, %p107
    %p109 = scmp.ne.s32.totalorder %s100, %s101
    %p110 = scmp.eq.s32.totalorder %s27, 0
    %p111 = por %p109, %p110
    %p112 = scmp.ne.s32.totalorder %s100, %s101
    %p113 = scmp.eq.s32.totalorder %s28, 1
    %p114 = por %p112, %p113
    %p116 = scmp.ne.s32.totalorder %s101, %s115
    %p117 = scmp.eq.s32.totalorder %s28, 0
    %p118 = por %p116, %p117
    %s120 = sadd.s32 %s119, 1
    %p123 = scmp.eq.s32.totalorder %s22, 1
    %p124 = scmp.ne.s32.totalorder %s119, %s121
    %p125 = scmp.eq.s32.totalorder %s22, 0
    %p126 = por %p124, %p125
    %p127 = scmp.ne.s32.totalorder %s119, %s121
    %p128 = scmp.eq.s32.totalorder %s27, 1
    %p129 = por %p127, %p128
    %p130 = scmp.ne.s32.totalorder %s121, %s122
    %p131 = scmp.eq.s32.totalorder %s27, 0
    %p132 = por %p130, %p131
    %p133 = scmp.ne.s32.totalorder %s121, %s122
    %p134 = scmp.eq.s32.totalorder %s28, 1
    %p135 = por %p133, %p134
    %p137 = scmp.ne.s32.totalorder %s122, %s136
    %p138 = scmp.eq.s32.totalorder %s28, 0
    %p139 = por %p137, %p138
    %s141 = sadd.s32 %s140, 1
    %p144 = scmp.eq.s32.totalorder %s22, 1
    %p145 = scmp.ne.s32.totalorder %s140, %s142
    %p146 = scmp.eq.s32.totalorder %s22, 0
    %p147 = por %p145, %p146
    %p148 = scmp.ne.s32.totalorder %s140, %s142
    %p149 = scmp.eq.s32.totalorder %s27, 1
    %p150 = por %p148, %p149
    %p151 = scmp.ne.s32.totalorder %s142, %s143
    %p152 = scmp.eq.s32.totalorder %s27, 0
    %p153 = por %p151, %p152
    %p154 = scmp.ne.s32.totalorder %s142, %s143
    %p155 = scmp.eq.s32.totalorder %s28, 1
    %p156 = por %p154, %p155
    %p158 = scmp.ne.s32.totalorder %s143, %s157
    %p159 = scmp.eq.s32.totalorder %s28, 0
    %p160 = por %p158, %p159
    %s162 = sadd.s32 %s161, 1
    %p165 = scmp.eq.s32.totalorder %s22, 1
    %p166 = scmp.ne.s32.totalorder %s161, %s163
    %p167 = scmp.eq.s32.totalorder %s22, 0
    %p168 = por %p166, %p167
    %p169 = scmp.ne.s32.totalorder %s161, %s163
    %p170 = scmp.eq.s32.totalorder %s27, 1
    %p171 = por %p169, %p170
    %p172 = scmp.ne.s32.totalorder %s163, %s164
    %p173 = scmp.eq.s32.totalorder %s27, 0
    %p174 = por %p172, %p173
    %p175 = scmp.ne.s32.totalorder %s163, %s164
    %p176 = scmp.eq.s32.totalorder %s28, 1
    %p177 = por %p175, %p176
    %p179 = scmp.ne.s32.totalorder %s164, %s178
    %p180 = scmp.eq.s32.totalorder %s28, 0
    %p181 = por %p179, %p180
    %s183 = sadd.s32 %s182, 1
    %p186 = scmp.eq.s32.totalorder %s22, 1
    %p187 = scmp.ne.s32.totalorder %s182, %s184
    %p188 = scmp.eq.s32.totalorder %s22, 0
    %p189 = por %p187, %p188
    %p190 = scmp.ne.s32.totalorder %s182, %s184
    %p191 = scmp.eq.s32.totalorder %s27, 1
    %p192 = por %p190, %p191
    %p193 = scmp.ne.s32.totalorder %s184, %s185
    %p194 = scmp.eq.s32.totalorder %s27, 0
    %p195 = por %p193, %p194
    %p196 = scmp.ne.s32.totalorder %s184, %s185
    %p197 = scmp.eq.s32.totalorder %s28, 1
    %p198 = por %p196, %p197
    %p200 = scmp.ne.s32.totalorder %s185, %s199
    %p201 = scmp.eq.s32.totalorder %s28, 0
    %p202 = por %p200, %p201
    %s204 = sadd.s32 %s203, 1
    %p207 = scmp.eq.s32.totalorder %s22, 1
    %p208 = scmp.ne.s32.totalorder %s203, %s205
    %p209 = scmp.eq.s32.totalorder %s22, 0
    %p210 = por %p208, %p209
    %p211 = scmp.ne.s32.totalorder %s203, %s205
    %p212 = scmp.eq.s32.totalorder %s27, 1
    %p213 = por %p211, %p212
    %p214 = scmp.ne.s32.totalorder %s205, %s206
    %p215 = scmp.eq.s32.totalorder %s27, 0
    %p216 = por %p214, %p215
    %p217 = scmp.ne.s32.totalorder %s205, %s206
    %p218 = scmp.eq.s32.totalorder %s28, 1
    %p219 = por %p217, %p218
    %p221 = scmp.ne.s32.totalorder %s206, %s220
    %p222 = scmp.eq.s32.totalorder %s28, 0
    %p223 = por %p221, %p222
    %s225 = sadd.s32 %s224, 1
    %p228 = scmp.eq.s32.totalorder %s22, 1
    %p229 = scmp.ne.s32.totalorder %s224, %s226
    %p230 = scmp.eq.s32.totalorder %s22, 0
    %p231 = por %p229, %p230
    %p232 = scmp.ne.s32.totalorder %s224, %s226
    %p233 = scmp.eq.s32.totalorder %s27, 1
    %p234 = por %p232, %p233
    %p235 = scmp.ne.s32.totalorder %s226, %s227
    %p236 = scmp.eq.s32.totalorder %s27, 0
    %p237 = por %p235, %p236
    %p238 = scmp.ne.s32.totalorder %s226, %s227
    %p239 = scmp.eq.s32.totalorder %s28, 1
    %p240 = por %p238, %p239
    %p242 = scmp.ne.s32.totalorder %s227, %s241
    %p243 = scmp.eq.s32.totalorder %s28, 0
    %p244 = por %p242, %p243
    %s246 = sadd.s32 %s245, 1
    %p249 = scmp.eq.s32.totalorder %s22, 1
    %p250 = scmp.ne.s32.totalorder %s245, %s247
    %p251 = scmp.eq.s32.totalorder %s22, 0
    %p252 = por %p250, %p251
    %p253 = scmp.ne.s32.totalorder %s245, %s247
    %p254 = scmp.eq.s32.totalorder %s27, 1
    %p255 = por %p253, %p254
    %p256 = scmp.ne.s32.totalorder %s247, %s248
    %p257 = scmp.eq.s32.totalorder %s27, 0
    %p258 = por %p256, %p257
    %p259 = scmp.ne.s32.totalorder %s247, %s248
    %p260 = scmp.eq.s32.totalorder %s28, 1
    %p261 = por %p259, %p260
    %p263 = scmp.ne.s32.totalorder %s248, %s262
    %p264 = scmp.eq.s32.totalorder %s28, 0
    %p265 = por %p263, %p264
    %s267 = sadd.s32 %s266, 1
    %p270 = scmp.eq.s32.totalorder %s22, 1
    %p271 = scmp.ne.s32.totalorder %s266, %s268
    %p272 = scmp.eq.s32.totalorder %s22, 0
    %p273 = por %p271, %p272
    %p274 = scmp.ne.s32.totalorder %s266, %s268
    %p275 = scmp.eq.s32.totalorder %s27, 1
    %p276 = por %p274, %p275
    %p277 = scmp.ne.s32.totalorder %s268, %s269
    %p278 = scmp.eq.s32.totalorder %s27, 0
    %p279 = por %p277, %p278
    %p280 = scmp.ne.s32.totalorder %s268, %s269
    %p281 = scmp.eq.s32.totalorder %s28, 1
    %p282 = por %p280, %p281
    %p284 = scmp.ne.s32.totalorder %s269, %s283
    %p285 = scmp.eq.s32.totalorder %s28, 0
    %p286 = por %p284, %p285
    %s288 = sadd.s32 %s287, 1
    %p291 = scmp.eq.s32.totalorder %s22, 1
    %p292 = scmp.ne.s32.totalorder %s287, %s289
    %p293 = scmp.eq.s32.totalorder %s22, 0
    %p294 = por %p292, %p293
    %p295 = scmp.ne.s32.totalorder %s287, %s289
    %p296 = scmp.eq.s32.totalorder %s27, 1
    %p297 = por %p295, %p296
    %p298 = scmp.ne.s32.totalorder %s289, %s290
    %p299 = scmp.eq.s32.totalorder %s27, 0
    %p300 = por %p298, %p299
    %p301 = scmp.ne.s32.totalorder %s289, %s290
    %p302 = scmp.eq.s32.totalorder %s28, 1
    %p303 = por %p301, %p302
    %p305 = scmp.ne.s32.totalorder %s290, %s304
    %p306 = scmp.eq.s32.totalorder %s28, 0
    %p307 = por %p305, %p306
    %s309 = sadd.s32 %s308, 1
    %p312 = scmp.eq.s32.totalorder %s22, 1
    %p313 = scmp.ne.s32.totalorder %s308, %s310
    %p314 = scmp.eq.s32.totalorder %s22, 0
    %p315 = por %p313, %p314
    %p316 = scmp.ne.s32.totalorder %s308, %s310
    %p317 = scmp.eq.s32.totalorder %s27, 1
    %p318 = por %p316, %p317
    %p319 = scmp.ne.s32.totalorder %s310, %s311
    %p320 = scmp.eq.s32.totalorder %s27, 0
    %p321 = por %p319, %p320
    %p322 = scmp.ne.s32.totalorder %s310, %s311
    %p323 = scmp.eq.s32.totalorder %s28, 1
    %p324 = por %p322, %p323
    %p326 = scmp.ne.s32.totalorder %s311, %s325
    %p327 = scmp.eq.s32.totalorder %s28, 0
    %p328 = por %p326, %p327
    %s329 = ssub.s32 %s22, %s29
    %p330 = scmp.eq.s32.totalorder %s329, 0
    %s332 = sadd.s32 %s331, 1
    %s333 = scalar_select %p330, %s331, %s332
    %p336 = pneg %p330
    %p337 = scmp.eq.s32.totalorder %s22, 1
    %p338 = por %p336, %p337
    %p339 = scmp.ne.s32.totalorder %s331, %s334
    %p340 = scmp.eq.s32.totalorder %s22, 0
    %p341 = por %p339, %p340
    %p342 = scmp.ne.s32.totalorder %s331, %s334
    %p343 = scmp.eq.s32.totalorder %s27, 1
    %p344 = por %p342, %p343
    %p345 = scmp.ne.s32.totalorder %s334, %s335
    %p346 = scmp.eq.s32.totalorder %s27, 0
    %p347 = por %p345, %p346
    %p348 = scmp.ne.s32.totalorder %s334, %s335
    %p349 = scmp.eq.s32.totalorder %s28, 1
    %p350 = por %p348, %p349
    %p352 = scmp.ne.s32.totalorder %s335, %s351
    %p353 = scmp.eq.s32.totalorder %s28, 0
    %p354 = por %p352, %p353
    %p355 = scmp.le.s32.totalorder 1, %s22
    %p356 = scmp.lt.s32.totalorder %s22, 3
    %p357 = pnand %p355, %p356
    %p358 = pneg %p357
    // Predicated region
    $region9: #{dqn_forward.8} parent=5 // pred_check
      _
    $region10: #{dqn_forward.8} parent=5 // pred_check_branch
      %360 = sbr.rel (%p357) target = $region12
    $region11: #{dqn_forward.8} parent=5 // pred_region
      %s361 = ssub.s32 %s22, 1
      // Predicated region
      $region13: #{dqn_forward.8} parent=11 // pred_check
        %p362 = pneg %p69
      $region14: #{dqn_forward.8} parent=11 // pred_check_branch
        %364 = sbr.rel (%p362) target = $region16
      $region15: #{dqn_forward.8} parent=11 // pred_region
        _
      $region16: #{dqn_forward.8} parent=11 // pred_fallthru
        _
      // Predicated region
      $region17: #{dqn_forward.8} parent=11 // pred_check
        %p365 = pneg %p90
      $region18: #{dqn_forward.8} parent=11 // pred_check_branch
        %367 = sbr.rel (%p365) target = $region20
      $region19: #{dqn_forward.8} parent=11 // pred_region
        _
      $region20: #{dqn_forward.8} parent=11 // pred_fallthru
        _
      // Predicated region
      $region21: #{dqn_forward.8} parent=11 // pred_check
        %p368 = pneg %p111
      $region22: #{dqn_forward.8} parent=11 // pred_check_branch
        %370 = sbr.rel (%p368) target = $region24
      $region23: #{dqn_forward.8} parent=11 // pred_region
        _
      $region24: #{dqn_forward.8} parent=11 // pred_fallthru
        _
      // Predicated region
      $region25: #{dqn_forward.8} parent=11 // pred_check
        %p371 = pneg %p132
      $region26: #{dqn_forward.8} parent=11 // pred_check_branch
        %373 = sbr.rel (%p371) target = $region28
      $region27: #{dqn_forward.8} parent=11 // pred_region
        _
      $region28: #{dqn_forward.8} parent=11 // pred_fallthru
        _
      // Predicated region
      $region29: #{dqn_forward.8} parent=11 // pred_check
        %p374 = pneg %p153
      $region30: #{dqn_forward.8} parent=11 // pred_check_branch
        %376 = sbr.rel (%p374) target = $region32
      $region31: #{dqn_forward.8} parent=11 // pred_region
        _
      $region32: #{dqn_forward.8} parent=11 // pred_fallthru
        _
      // Predicated region
      $region33: #{dqn_forward.8} parent=11 // pred_check
        %p377 = pneg %p174
      $region34: #{dqn_forward.8} parent=11 // pred_check_branch
        %379 = sbr.rel (%p377) target = $region36
      $region35: #{dqn_forward.8} parent=11 // pred_region
        _
      $region36: #{dqn_forward.8} parent=11 // pred_fallthru
        _
      // Predicated region
      $region37: #{dqn_forward.8} parent=11 // pred_check
        %p380 = pneg %p195
      $region38: #{dqn_forward.8} parent=11 // pred_check_branch
        %382 = sbr.rel (%p380) target = $region40
      $region39: #{dqn_forward.8} parent=11 // pred_region
        _
      $region40: #{dqn_forward.8} parent=11 // pred_fallthru
        _
      // Predicated region
      $region41: #{dqn_forward.8} parent=11 // pred_check
        %p383 = pneg %p216
      $region42: #{dqn_forward.8} parent=11 // pred_check_branch
        %385 = sbr.rel (%p383) target = $region44
      $region43: #{dqn_forward.8} parent=11 // pred_region
        _
      $region44: #{dqn_forward.8} parent=11 // pred_fallthru
        _
      // Predicated region
      $region45: #{dqn_forward.8} parent=11 // pred_check
        %p386 = pneg %p237
      $region46: #{dqn_forward.8} parent=11 // pred_check_branch
        %388 = sbr.rel (%p386) target = $region48
      $region47: #{dqn_forward.8} parent=11 // pred_region
        _
      $region48: #{dqn_forward.8} parent=11 // pred_fallthru
        _
      // Predicated region
      $region49: #{dqn_forward.8} parent=11 // pred_check
        %p389 = pneg %p258
      $region50: #{dqn_forward.8} parent=11 // pred_check_branch
        %391 = sbr.rel (%p389) target = $region52
      $region51: #{dqn_forward.8} parent=11 // pred_region
        _
      $region52: #{dqn_forward.8} parent=11 // pred_fallthru
        _
      // Predicated region
      $region53: #{dqn_forward.8} parent=11 // pred_check
        %p392 = pneg %p279
      $region54: #{dqn_forward.8} parent=11 // pred_check_branch
        %394 = sbr.rel (%p392) target = $region56
      $region55: #{dqn_forward.8} parent=11 // pred_region
        _
      $region56: #{dqn_forward.8} parent=11 // pred_fallthru
        _
      // Predicated region
      $region57: #{dqn_forward.8} parent=11 // pred_check
        %p395 = pneg %p300
      $region58: #{dqn_forward.8} parent=11 // pred_check_branch
        %397 = sbr.rel (%p395) target = $region60
      $region59: #{dqn_forward.8} parent=11 // pred_region
        _
      $region60: #{dqn_forward.8} parent=11 // pred_fallthru
        _
      // Predicated region
      $region61: #{dqn_forward.8} parent=11 // pred_check
        %p398 = pneg %p321
      $region62: #{dqn_forward.8} parent=11 // pred_check_branch
        %400 = sbr.rel (%p398) target = $region64
      $region63: #{dqn_forward.8} parent=11 // pred_region
        _
      $region64: #{dqn_forward.8} parent=11 // pred_fallthru
        _
    $region12: #{dqn_forward.8} parent=5 // pred_fallthru
      _
    %p401 = scmp.lt.s32.totalorder %s22, 2
    // Predicated region
    $region65: #{dqn_forward.8} parent=5 // pred_check
      %p402 = pneg %p401
    $region66: #{dqn_forward.8} parent=5 // pred_check_branch
      %404 = sbr.rel (%p402) target = $region68
    $region67: #{dqn_forward.8} parent=5 // pred_region
      // Predicated region
      $region69: #{dqn_forward.8} parent=67 // pred_check
        %p405 = pneg %p42
      $region70: #{dqn_forward.8} parent=67 // pred_check_branch
        %407 = sbr.rel (%p405) target = $region72
      $region71: #{dqn_forward.8} parent=67 // pred_region
        %p408 = scmp.lt.s32.totalorder %s22, 1
        %s409 = scalar_select %p408, %s22, 1
        %s410 = smul.addr %s409, 2
        %s411 = smul.addr %s410, 4
        %s412 = scalar_lea.vmem %s0, %s411
      $region72: #{dqn_forward.8} parent=67 // pred_fallthru
        _
    $region68: #{dqn_forward.8} parent=5 // pred_fallthru
      _
    %p413 = scmp.le.s32.totalorder 1, %s22
    %p414 = scmp.lt.s32.totalorder %s22, 3
    %p415 = pnand %p413, %p414
    %p416 = pneg %p415
    // Predicated region
    $region73: #{dqn_forward.8} parent=5 // pred_check
      _
    $region74: #{dqn_forward.8} parent=5 // pred_check_branch
      %418 = sbr.rel (%p415) target = $region76
    $region75: #{dqn_forward.8} parent=5 // pred_region
      %s419 = ssub.s32 %s22, 1
      %p420 = scmp.lt.s32.totalorder %s27, 1
      %s421 = scalar_select %p420, %s27, 1
      %s422 = smul.addr %s421, 2
      %s423 = smul.addr %s422, 4
      %s424 = scalar_lea.vmem %s0, %s423
      %p425 = pneg %p48
      %p426 = pneg %p45
      %p427 = pneg %p69
      %p428 = pneg %p66
      %p429 = pneg %p90
      %p430 = pneg %p87
      %p431 = pneg %p111
      %p432 = pneg %p108
      %p433 = pneg %p132
      %p434 = pneg %p129
      %p435 = pneg %p153
      %p436 = pneg %p150
      %p437 = pneg %p174
      %p438 = pneg %p171
      %p439 = pneg %p195
      %p440 = pneg %p192
      %p441 = pneg %p216
      %p442 = pneg %p213
      %p443 = pneg %p237
      %p444 = pneg %p234
      %p445 = pneg %p258
      %p446 = pneg %p255
      %p447 = pneg %p279
      %p448 = pneg %p276
      %p449 = pneg %p300
      %p450 = pneg %p297
      %p451 = pneg %p321
      %p452 = pneg %p318
      %p453 = pneg %p347
      %p454 = pneg %p344
      %p455 = scmp.lt.s32.totalorder %s27, 1
      %s456 = scalar_select %p455, %s27, 1
      %s457 = smul.addr %s456, 2
      %s458 = smul.addr %s457, 4
      %s459 = scalar_lea.vmem %s14, %s458
      %p460 = scmp.lt.s32.totalorder %s27, 1
      %s461 = scalar_select %p460, %s27, 1
      %s462 = smul.addr %s461, 2
      %s463 = smul.addr %s462, 4
      %s464 = scalar_lea.vmem %s0, %s463
      %p465 = scmp.lt.s32.totalorder %s27, 1
      %s466 = scalar_select %p465, %s27, 1
      %s467 = smul.addr %s466, 2
      %s468 = smul.addr %s467, 4
      %s469 = scalar_lea.vmem %s14, %s468
      %v470 = vld [vmem:[%s464] sm:$0xf]
      %v471 = vld [vmem:[%s464 + $0x4] sm:$0xf]
      %v472 = vunpack.c.l.bf16 %v470
      %v473 = vunpack.c.l.bf16 %v471
      %vm474 = vcmask 261120
      %v475 = vsel %vm474, %v472, 0.0
      %v476 = vsel %vm474, %v473, 0.0
      %v477 = vadd.f32 %v475, %v476
      %v478 = vrot.slane %v477, 4
      %v479 = vadd.f32 %v477, %v478
      %v480 = vrot.slane %v479, 2
      %v481 = vadd.f32 %v479, %v480
      %v482 = vrot.slane %v481, 1
      %v483 = vadd.f32 %v481, %v482
      %v484 = vmul.f32 %v483, 0.0625
      %v485 = vld [vmem:[%s1] sm:$0xff]
      %v486 = vld [vmem:[%s1 + $0x8] sm:$0xff]
      %v487 = vld [vmem:[%s1 + $0x10] sm:$0xff]
      %v488 = vld [vmem:[%s1 + $0x18] sm:$0xff]
      %v489 = vld [vmem:[%s2] sm:$0x1]
      %v491 = vsel %vm474, %v484, 0
      %493 = vmatprep.subr.mxu0 0.0
      %494 = vmatpush1.msra.mxu0 0.0
      %495 = vmatprep.subr.mxu0 0.0
      %496 = vmatpush1.msra.mxu0 0.0
      %497 = vmatprep.subr.mxu0 0.0
      %498 = vmatpush1.msra.mxu0 0.0
      %499 = vmatprep.subr.mxu0 0.0
      %500 = vmatpush1.msra.mxu0 0.0
      %501 = vmatprep.subr.mxu0 0.0
      %502 = vmatpush1.msra.mxu0 0.0
      %503 = vmatprep.subr.mxu0 0.0
      %504 = vmatpush1.msra.mxu0 0.0
      %505 = vmatprep.subr.mxu0 0.0
      %506 = vmatpush1.msra.mxu0 0.0
      %507 = vmatprep.subr.mxu0 0.0
      %508 = vmatpush1.msra.mxu0 0.0
      %509 = vmatprep.subr.mxu0 0.0
      %510 = vmatpush1.msra.mxu0 0.0
      %511 = vmatprep.subr.mxu0 0.0
      %512 = vmatpush1.msra.mxu0 0.0
      %513 = vmatprep.subr.mxu0 0.0
      %514 = vmatpush1.msra.mxu0 0.0
      %515 = vmatprep.subr.mxu0 0.0
      %516 = vmatpush1.msra.mxu0 0.0
      %517 = vmatprep.subr.mxu0 0.0
      %518 = vmatpush1.msra.mxu0 %v488
      %519 = vmatprep.subr.mxu0 0.0
      %520 = vmatpush1.msra.mxu0 %v487
      %521 = vmatprep.subr.mxu0 0.0
      %522 = vmatpush1.msra.mxu0 %v486
      %523 = vmatprep.subr.mxu0 0.0
      %524 = vmatpush1.msra.mxu0 %v485
      %525 = vmatprep.subr.mxu0 0.0
      %526 = vmatpush2.msra.mxu0 0.0
      %527 = vmatprep.subr.mxu0 0.0
      %528 = vmatpush2.msra.mxu0 0.0
      %529 = vmatprep.subr.mxu0 0.0
      %530 = vmatpush2.msra.mxu0 0.0
      %531 = vmatprep.subr.mxu0 0.0
      %532 = vmatpush2.msra.mxu0 0.0
      %533 = vmatprep.subr.mxu0 0.0
      %534 = vmatpush2.msra.mxu0 0.0
      %535 = vmatprep.subr.mxu0 0.0
      %536 = vmatpush2.msra.mxu0 0.0
      %537 = vmatprep.subr.mxu0 0.0
      %538 = vmatpush2.msra.mxu0 0.0
      %539 = vmatprep.subr.mxu0 0.0
      %540 = vmatpush2.msra.mxu0 0.0
      %541 = vmatprep.subr.mxu0 0.0
      %542 = vmatpush2.msra.mxu0 0.0
      %543 = vmatprep.subr.mxu0 0.0
      %544 = vmatpush2.msra.mxu0 0.0
      %545 = vmatprep.subr.mxu0 0.0
      %546 = vmatpush2.msra.mxu0 0.0
      %547 = vmatprep.subr.mxu0 0.0
      %548 = vmatpush2.msra.mxu0 0.0
      %549 = vmatprep.subr.mxu0 0.0
      %550 = vmatpush2.msra.mxu0 0.0
      %551 = vmatprep.subr.mxu0 0.0
      %552 = vmatpush2.msra.mxu0 0.0
      %553 = vmatprep.subr.mxu0 0.0
      %554 = vmatpush2.msra.mxu0 0.0
      %555 = vmatprep.subr.mxu0 0.0
      %556 = vmatpush2.msra.mxu0 0.0
      %557 = vmatprep.mubr.f32.mxu0 0.0
      %558 = vmatmul.mubr.f32.gmra.mxu0 %v491
      %v559 = vpop.f32.mrf.mxu0
      %v560 = vadd.f32 %v489, %v559
      %v561 = vpop.f32.mrf.mxu0
      %562 = vdwg.mxu0
      %v563 = vmax.f32 %v560, 0.0
      %v564 = vld [vmem:[%s3] sm:$0x3]
      %v565 = vld [vmem:[%s4] sm:$0x1]
      %vm566 = vcmask 15360
      %v568 = vsel %vm566, %v563, 0
      %vm570 = vcmask 1041408
      %v572 = vsel %vm570, %v564, 0
      %574 = vmatprep.subr.mxu0 0.0
      %575 = vmatpush1.msra.mxu0 0.0
      %576 = vmatprep.subr.mxu0 0.0
      %577 = vmatpush1.msra.mxu0 0.0
      %578 = vmatprep.subr.mxu0 0.0
      %579 = vmatpush1.msra.mxu0 0.0
      %580 = vmatprep.subr.mxu0 0.0
      %581 = vmatpush1.msra.mxu0 0.0
      %582 = vmatprep.subr.mxu0 0.0
      %583 = vmatpush1.msra.mxu0 0.0
      %584 = vmatprep.subr.mxu0 0.0
      %585 = vmatpush1.msra.mxu0 0.0
      %586 = vmatprep.subr.mxu0 0.0
      %587 = vmatpush1.msra.mxu0 0.0
      %588 = vmatprep.subr.mxu0 0.0
      %589 = vmatpush1.msra.mxu0 0.0
      %590 = vmatprep.subr.mxu0 0.0
      %591 = vmatpush1.msra.mxu0 0.0
      %592 = vmatprep.subr.mxu0 0.0
      %593 = vmatpush1.msra.mxu0 0.0
      %594 = vmatprep.subr.mxu0 0.0
      %595 = vmatpush1.msra.mxu0 0.0
      %596 = vmatprep.subr.mxu0 0.0
      %597 = vmatpush1.msra.mxu0 0.0
      %598 = vmatprep.subr.mxu0 0.0
      %599 = vmatpush1.msra.mxu0 0.0
      %600 = vmatprep.subr.mxu0 0.0
      %601 = vmatpush1.msra.mxu0 0.0
      %602 = vmatprep.subr.mxu0 0.0
      %603 = vmatpush1.msra.mxu0 0.0
      %604 = vmatprep.subr.mxu0 0.0
      %605 = vmatpush1.msra.mxu0 %v572
      %606 = vmatprep.subr.mxu0 0.0
      %607 = vmatpush2.msra.mxu0 0.0
      %608 = vmatprep.subr.mxu0 0.0
      %609 = vmatpush2.msra.mxu0 0.0
      %610 = vmatprep.subr.mxu0 0.0
      %611 = vmatpush2.msra.mxu0 0.0
      %612 = vmatprep.subr.mxu0 0.0
      %613 = vmatpush2.msra.mxu0 0.0
      %614 = vmatprep.subr.mxu0 0.0
      %615 = vmatpush2.msra.mxu0 0.0
      %616 = vmatprep.subr.mxu0 0.0
      %617 = vmatpush2.msra.mxu0 0.0
      %618 = vmatprep.subr.mxu0 0.0
      %619 = vmatpush2.msra.mxu0 0.0
      %620 = vmatprep.subr.mxu0 0.0
      %621 = vmatpush2.msra.mxu0 0.0
      %622 = vmatprep.subr.mxu0 0.0
      %623 = vmatpush2.msra.mxu0 0.0
      %624 = vmatprep.subr.mxu0 0.0
      %625 = vmatpush2.msra.mxu0 0.0
      %626 = vmatprep.subr.mxu0 0.0
      %627 = vmatpush2.msra.mxu0 0.0
      %628 = vmatprep.subr.mxu0 0.0
      %629 = vmatpush2.msra.mxu0 0.0
      %630 = vmatprep.subr.mxu0 0.0
      %631 = vmatpush2.msra.mxu0 0.0
      %632 = vmatprep.subr.mxu0 0.0
      %633 = vmatpush2.msra.mxu0 0.0
      %634 = vmatprep.subr.mxu0 0.0
      %635 = vmatpush2.msra.mxu0 0.0
      %636 = vmatprep.subr.mxu0 0.0
      %637 = vmatpush2.msra.mxu0 0.0
      %638 = vmatprep.mubr.f32.mxu0 0.0
      %639 = vmatmul.mubr.f32.gmra.mxu0 %v568
      %v640 = vpop.f32.mrf.mxu0
      %v641 = vadd.f32 %v565, %v640
      %v642 = vpop.f32.mrf.mxu0
      %643 = vdwg.mxu0
      %v644 = vld [vmem:[%s5] sm:$0xff]
      %v645 = vld [vmem:[%s5 + $0x8] sm:$0xff]
      %v646 = vld [vmem:[%s5 + $0x10] sm:$0xff]
      %v647 = vld [vmem:[%s5 + $0x18] sm:$0xff]
      %v648 = vld [vmem:[%s6] sm:$0x1]
      %v650 = vlaneseq
      %v651 = vshrl.u32 %v650, 7
      %v652 = vsub.s32 0, %v651
      %v653 = vrot.slane %v648, %v652
      %v656 = vsel %vm474, %v472, 0
      %v659 = vsel %vm474, %v473, 0
      %661 = vmatprep.subr.mxu0 0.0
      %662 = vmatpush1.msra.mxu0 0.0
      %663 = vmatprep.subr.mxu0 0.0
      %664 = vmatpush1.msra.mxu0 0.0
      %665 = vmatprep.subr.mxu0 0.0
      %666 = vmatpush1.msra.mxu0 0.0
      %667 = vmatprep.subr.mxu0 0.0
      %668 = vmatpush1.msra.mxu0 0.0
      %669 = vmatprep.subr.mxu0 0.0
      %670 = vmatpush1.msra.mxu0 0.0
      %671 = vmatprep.subr.mxu0 0.0
      %672 = vmatpush1.msra.mxu0 0.0
      %673 = vmatprep.subr.mxu0 0.0
      %674 = vmatpush1.msra.mxu0 0.0
      %675 = vmatprep.subr.mxu0 0.0
      %676 = vmatpush1.msra.mxu0 0.0
      %677 = vmatprep.subr.mxu0 0.0
      %678 = vmatpush1.msra.mxu0 0.0
      %679 = vmatprep.subr.mxu0 0.0
      %680 = vmatpush1.msra.mxu0 0.0
      %681 = vmatprep.subr.mxu0 0.0
      %682 = vmatpush1.msra.mxu0 0.0
      %683 = vmatprep.subr.mxu0 0.0
      %684 = vmatpush1.msra.mxu0 0.0
      %685 = vmatprep.subr.mxu0 0.0
      %686 = vmatpush1.msra.mxu0 %v647
      %687 = vmatprep.subr.mxu0 0.0
      %688 = vmatpush1.msra.mxu0 %v646
      %689 = vmatprep.subr.mxu0 0.0
      %690 = vmatpush1.msra.mxu0 %v645
      %691 = vmatprep.subr.mxu0 0.0
      %692 = vmatpush1.msra.mxu0 %v644
      %693 = vmatprep.subr.mxu0 0.0
      %694 = vmatpush2.msra.mxu0 0.0
      %695 = vmatprep.subr.mxu0 0.0
      %696 = vmatpush2.msra.mxu0 0.0
      %697 = vmatprep.subr.mxu0 0.0
      %698 = vmatpush2.msra.mxu0 0.0
      %699 = vmatprep.subr.mxu0 0.0
      %700 = vmatpush2.msra.mxu0 0.0
      %701 = vmatprep.subr.mxu0 0.0
      %702 = vmatpush2.msra.mxu0 0.0
      %703 = vmatprep.subr.mxu0 0.0
      %704 = vmatpush2.msra.mxu0 0.0
      %705 = vmatprep.subr.mxu0 0.0
      %706 = vmatpush2.msra.mxu0 0.0
      %707 = vmatprep.subr.mxu0 0.0
      %708 = vmatpush2.msra.mxu0 0.0
      %709 = vmatprep.subr.mxu0 0.0
      %710 = vmatpush2.msra.mxu0 0.0
      %711 = vmatprep.subr.mxu0 0.0
      %712 = vmatpush2.msra.mxu0 0.0
      %713 = vmatprep.subr.mxu0 0.0
      %714 = vmatpush2.msra.mxu0 0.0
      %715 = vmatprep.subr.mxu0 0.0
      %716 = vmatpush2.msra.mxu0 0.0
      %717 = vmatprep.subr.mxu0 0.0
      %718 = vmatpush2.msra.mxu0 0.0
      %719 = vmatprep.subr.mxu0 0.0
      %720 = vmatpush2.msra.mxu0 0.0
      %721 = vmatprep.subr.mxu0 0.0
      %722 = vmatpush2.msra.mxu0 0.0
      %723 = vmatprep.subr.mxu0 0.0
      %724 = vmatpush2.msra.mxu0 0.0
      %725 = vmatprep.mubr.f32.mxu0 0.0
      %726 = vmatmul.mubr.f32.gmra.mxu0 %v656
      %v727 = vpop.f32.mrf.mxu0
      %v728 = vadd.f32 %v653, %v727
      %v729 = vpop.f32.mrf.mxu0
      %730 = vmatprep.mubr.f32.mxu0 0.0
      %731 = vmatmul.mubr.f32.gmra.mxu0 %v659
      %v732 = vpop.f32.mrf.mxu0
      %v733 = vadd.f32 %v653, %v732
      %v734 = vpop.f32.mrf.mxu0
      %735 = vdwg.mxu0
      %v736 = vmax.f32 %v728, 0.0
      %v737 = vmax.f32 %v733, 0.0
      %v738 = vld [vmem:[%s9] sm:$0x1]
      %v740 = vlaneseq
      %v741 = vshrl.u32 %v740, 7
      %v742 = vsub.s32 0, %v741
      %v743 = vrot.slane %v738, %v742
      %v745 = vadd.f32 %v743, 0.0
      %v746 = vld [vmem:[%s7] sm:$0xff]
      %v747 = vld [vmem:[%s7 + $0x8] sm:$0xff]
      %vm748 = vcmask 130048
      %v750 = vsel %vm748, %v746, 0
      %v753 = vsel %vm748, %v747, 0
      %755 = vmatprep.subr.mxu0 0.0
      %756 = vmatpush1.msra.mxu0 0.0
      %757 = vmatprep.subr.mxu0 0.0
      %758 = vmatpush1.msra.mxu0 0.0
      %759 = vmatprep.subr.mxu0 0.0
      %760 = vmatpush1.msra.mxu0 0.0
      %761 = vmatprep.subr.mxu0 0.0
      %762 = vmatpush1.msra.mxu0 0.0
      %763 = vmatprep.subr.mxu0 0.0
      %764 = vmatpush1.msra.mxu0 0.0
      %765 = vmatprep.subr.mxu0 0.0
      %766 = vmatpush1.msra.mxu0 0.0
      %767 = vmatprep.subr.mxu0 0.0
      %768 = vmatpush1.msra.mxu0 0.0
      %769 = vmatprep.subr.mxu0 0.0
      %770 = vmatpush1.msra.mxu0 0.0
      %771 = vmatprep.subr.mxu0 0.0
      %772 = vmatpush1.msra.mxu0 0.0
      %773 = vmatprep.subr.mxu0 0.0
      %774 = vmatpush1.msra.mxu0 0.0
      %775 = vmatprep.subr.mxu0 0.0
      %776 = vmatpush1.msra.mxu0 0.0
      %777 = vmatprep.subr.mxu0 0.0
      %778 = vmatpush1.msra.mxu0 0.0
      %779 = vmatprep.subr.mxu0 0.0
      %780 = vmatpush1.msra.mxu0 0.0
      %781 = vmatprep.subr.mxu0 0.0
      %782 = vmatpush1.msra.mxu0 0.0
      %783 = vmatprep.subr.mxu0 0.0
      %784 = vmatpush1.msra.mxu0 %v737
      %785 = vmatprep.subr.mxu0 0.0
      %786 = vmatpush1.msra.mxu0 %v736
      %787 = vmatprep.subr.mxu0 0.0
      %788 = vmatpush2.msra.mxu0 0.0
      %789 = vmatprep.subr.mxu0 0.0
      %790 = vmatpush2.msra.mxu0 0.0
      %791 = vmatprep.subr.mxu0 0.0
      %792 = vmatpush2.msra.mxu0 0.0
      %793 = vmatprep.subr.mxu0 0.0
      %794 = vmatpush2.msra.mxu0 0.0
      %795 = vmatprep.subr.mxu0 0.0
      %796 = vmatpush2.msra.mxu0 0.0
      %797 = vmatprep.subr.mxu0 0.0
      %798 = vmatpush2.msra.mxu0 0.0
      %799 = vmatprep.subr.mxu0 0.0
      %800 = vmatpush2.msra.mxu0 0.0
      %801 = vmatprep.subr.mxu0 0.0
      %802 = vmatpush2.msra.mxu0 0.0
      %803 = vmatprep.subr.mxu0 0.0
      %804 = vmatpush2.msra.mxu0 0.0
      %805 = vmatprep.subr.mxu0 0.0
      %806 = vmatpush2.msra.mxu0 0.0
      %807 = vmatprep.subr.mxu0 0.0
      %808 = vmatpush2.msra.mxu0 0.0
      %809 = vmatprep.subr.mxu0 0.0
      %810 = vmatpush2.msra.mxu0 0.0
      %811 = vmatprep.subr.mxu0 0.0
      %812 = vmatpush2.msra.mxu0 0.0
      %813 = vmatprep.subr.mxu0 0.0
      %814 = vmatpush2.msra.mxu0 0.0
      %815 = vmatprep.subr.mxu0 0.0
      %816 = vmatpush2.msra.mxu0 0.0
      %817 = vmatprep.subr.mxu0 0.0
      %818 = vmatpush2.msra.mxu0 0.0
      %819 = vmatprep.mubr.f32.mxu0 0.0
      %820 = vmatmul.mubr.f32.gmra.mxu0 %v750
      %v821 = vpop.f32.mrf.mxu0
      %v822 = vadd.f32 0.0, %v821
      %v823 = vpop.f32.mrf.mxu0
      %824 = vmatprep.mubr.f32.mxu0 0.0
      %825 = vmatmul.mubr.f32.gmra.mxu0 %v753
      %v826 = vpop.f32.mrf.mxu0
      %v827 = vadd.f32 0.0, %v826
      %v828 = vpop.f32.mrf.mxu0
      %829 = vdwg.mxu0
      %v830 = vld [vmem:[%s8] sm:$0x3]
      %v832 = vsel %vm566, %v822, 0
      %v835 = vsel %vm566, %v827, 0
      %v838 = vsel %vm570, %v830, 0
      %840 = vmatprep.subr.mxu0 0.0
      %841 = vmatpush1.msra.mxu0 0.0
      %842 = vmatprep.subr.mxu0 0.0
      %843 = vmatpush1.msra.mxu0 0.0
      %844 = vmatprep.subr.mxu0 0.0
      %845 = vmatpush1.msra.mxu0 0.0
      %846 = vmatprep.subr.mxu0 0.0
      %847 = vmatpush1.msra.mxu0 0.0
      %848 = vmatprep.subr.mxu0 0.0
      %849 = vmatpush1.msra.mxu0 0.0
      %850 = vmatprep.subr.mxu0 0.0
      %851 = vmatpush1.msra.mxu0 0.0
      %852 = vmatprep.subr.mxu0 0.0
      %853 = vmatpush1.msra.mxu0 0.0
      %854 = vmatprep.subr.mxu0 0.0
      %855 = vmatpush1.msra.mxu0 0.0
      %856 = vmatprep.subr.mxu0 0.0
      %857 = vmatpush1.msra.mxu0 0.0
      %858 = vmatprep.subr.mxu0 0.0
      %859 = vmatpush1.msra.mxu0 0.0
      %860 = vmatprep.subr.mxu0 0.0
      %861 = vmatpush1.msra.mxu0 0.0
      %862 = vmatprep.subr.mxu0 0.0
      %863 = vmatpush1.msra.mxu0 0.0
      %864 = vmatprep.subr.mxu0 0.0
      %865 = vmatpush1.msra.mxu0 0.0
      %866 = vmatprep.subr.mxu0 0.0
      %867 = vmatpush1.msra.mxu0 0.0
      %868 = vmatprep.subr.mxu0 0.0
      %869 = vmatpush1.msra.mxu0 0.0
      %870 = vmatprep.subr.mxu0 0.0
      %871 = vmatpush1.msra.mxu0 %v838
      %872 = vmatprep.subr.mxu0 0.0
      %873 = vmatpush2.msra.mxu0 0.0
      %874 = vmatprep.subr.mxu0 0.0
      %875 = vmatpush2.msra.mxu0 0.0
      %876 = vmatprep.subr.mxu0 0.0
      %877 = vmatpush2.msra.mxu0 0.0
      %878 = vmatprep.subr.mxu0 0.0
      %879 = vmatpush2.msra.mxu0 0.0
      %880 = vmatprep.subr.mxu0 0.0
      %881 = vmatpush2.msra.mxu0 0.0
      %882 = vmatprep.subr.mxu0 0.0
      %883 = vmatpush2.msra.mxu0 0.0
      %884 = vmatprep.subr.mxu0 0.0
      %885 = vmatpush2.msra.mxu0 0.0
      %886 = vmatprep.subr.mxu0 0.0
      %887 = vmatpush2.msra.mxu0 0.0
      %888 = vmatprep.subr.mxu0 0.0
      %889 = vmatpush2.msra.mxu0 0.0
      %890 = vmatprep.subr.mxu0 0.0
      %891 = vmatpush2.msra.mxu0 0.0
      %892 = vmatprep.subr.mxu0 0.0
      %893 = vmatpush2.msra.mxu0 0.0
      %894 = vmatprep.subr.mxu0 0.0
      %895 = vmatpush2.msra.mxu0 0.0
      %896 = vmatprep.subr.mxu0 0.0
      %897 = vmatpush2.msra.mxu0 0.0
      %898 = vmatprep.subr.mxu0 0.0
      %899 = vmatpush2.msra.mxu0 0.0
      %900 = vmatprep.subr.mxu0 0.0
      %901 = vmatpush2.msra.mxu0 0.0
      %902 = vmatprep.subr.mxu0 0.0
      %903 = vmatpush2.msra.mxu0 0.0
      %904 = vmatprep.mubr.f32.mxu0 0.0
      %905 = vmatmul.mubr.f32.gmra.mxu0 %v832
      %v906 = vpop.f32.mrf.mxu0
      %v907 = vadd.f32 0.0, %v906
      %v908 = vpop.f32.mrf.mxu0
      %909 = vmatprep.mubr.f32.mxu0 0.0
      %910 = vmatmul.mubr.f32.gmra.mxu0 %v835
      %v911 = vpop.f32.mrf.mxu0
      %v912 = vadd.f32 0.0, %v911
      %v913 = vpop.f32.mrf.mxu0
      %914 = vdwg.mxu0
      %v915 = vadd.f32 %v745, %v907
      %v916 = vadd.f32 %v745, %v912
      %v917 = vmax.f32 %v915, 0.0
      %v918 = vmax.f32 %v916, 0.0
      %v919 = vld [vmem:[%s11] sm:$0x1]
      %v921 = vlaneseq
      %v922 = vshrl.u32 %v921, 7
      %v923 = vsub.s32 0, %v922
      %v924 = vrot.slane %v919, %v923
      %v926 = vadd.f32 %v924, 0.0
      %927 = vmatprep.subr.mxu0 0.0
      %928 = vmatpush1.msra.mxu0 0.0
      %929 = vmatprep.subr.mxu0 0.0
      %930 = vmatpush1.msra.mxu0 0.0
      %931 = vmatprep.subr.mxu0 0.0
      %932 = vmatpush1.msra.mxu0 0.0
      %933 = vmatprep.subr.mxu0 0.0
      %934 = vmatpush1.msra.mxu0 0.0
      %935 = vmatprep.subr.mxu0 0.0
      %936 = vmatpush1.msra.mxu0 0.0
      %937 = vmatprep.subr.mxu0 0.0
      %938 = vmatpush1.msra.mxu0 0.0
      %939 = vmatprep.subr.mxu0 0.0
      %940 = vmatpush1.msra.mxu0 0.0
      %941 = vmatprep.subr.mxu0 0.0
      %942 = vmatpush1.msra.mxu0 0.0
      %943 = vmatprep.subr.mxu0 0.0
      %944 = vmatpush1.msra.mxu0 0.0
      %945 = vmatprep.subr.mxu0 0.0
      %946 = vmatpush1.msra.mxu0 0.0
      %947 = vmatprep.subr.mxu0 0.0
      %948 = vmatpush1.msra.mxu0 0.0
      %949 = vmatprep.subr.mxu0 0.0
      %950 = vmatpush1.msra.mxu0 0.0
      %951 = vmatprep.subr.mxu0 0.0
      %952 = vmatpush1.msra.mxu0 0.0
      %953 = vmatprep.subr.mxu0 0.0
      %954 = vmatpush1.msra.mxu0 0.0
      %955 = vmatprep.subr.mxu0 0.0
      %956 = vmatpush1.msra.mxu0 %v918
      %957 = vmatprep.subr.mxu0 0.0
      %958 = vmatpush1.msra.mxu0 %v917
      %959 = vmatprep.subr.mxu0 0.0
      %960 = vmatpush2.msra.mxu0 0.0
      %961 = vmatprep.subr.mxu0 0.0
      %962 = vmatpush2.msra.mxu0 0.0
      %963 = vmatprep.subr.mxu0 0.0
      %964 = vmatpush2.msra.mxu0 0.0
      %965 = vmatprep.subr.mxu0 0.0
      %966 = vmatpush2.msra.mxu0 0.0
      %967 = vmatprep.subr.mxu0 0.0
      %968 = vmatpush2.msra.mxu0 0.0
      %969 = vmatprep.subr.mxu0 0.0
      %970 = vmatpush2.msra.mxu0 0.0
      %971 = vmatprep.subr.mxu0 0.0
      %972 = vmatpush2.msra.mxu0 0.0
      %973 = vmatprep.subr.mxu0 0.0
      %974 = vmatpush2.msra.mxu0 0.0
      %975 = vmatprep.subr.mxu0 0.0
      %976 = vmatpush2.msra.mxu0 0.0
      %977 = vmatprep.subr.mxu0 0.0
      %978 = vmatpush2.msra.mxu0 0.0
      %979 = vmatprep.subr.mxu0 0.0
      %980 = vmatpush2.msra.mxu0 0.0
      %981 = vmatprep.subr.mxu0 0.0
      %982 = vmatpush2.msra.mxu0 0.0
      %983 = vmatprep.subr.mxu0 0.0
      %984 = vmatpush2.msra.mxu0 0.0
      %985 = vmatprep.subr.mxu0 0.0
      %986 = vmatpush2.msra.mxu0 0.0
      %987 = vmatprep.subr.mxu0 0.0
      %988 = vmatpush2.msra.mxu0 0.0
      %989 = vmatprep.subr.mxu0 0.0
      %990 = vmatpush2.msra.mxu0 0.0
      %991 = vmatprep.mubr.f32.mxu0 0.0
      %992 = vmatmul.mubr.f32.gmra.mxu0 %v750
      %v993 = vpop.f32.mrf.mxu0
      %v994 = vadd.f32 0.0, %v993
      %v995 = vpop.f32.mrf.mxu0
      %996 = vmatprep.mubr.f32.mxu0 0.0
      %997 = vmatmul.mubr.f32.gmra.mxu0 %v753
      %v998 = vpop.f32.mrf.mxu0
      %v999 = vadd.f32 0.0, %v998
      %v1000 = vpop.f32.mrf.mxu0
      %1001 = vdwg.mxu0
      %v1002 = vld [vmem:[%s10] sm:$0x3]
      %v1004 = vsel %vm566, %v994, 0
      %v1007 = vsel %vm566, %v999, 0
      %v1010 = vsel %vm570, %v1002, 0
      %1012 = vmatprep.subr.mxu0 0.0
      %1013 = vmatpush1.msra.mxu0 0.0
      %1014 = vmatprep.subr.mxu0 0.0
      %1015 = vmatpush1.msra.mxu0 0.0
      %1016 = vmatprep.subr.mxu0 0.0
      %1017 = vmatpush1.msra.mxu0 0.0
      %1018 = vmatprep.subr.mxu0 0.0
      %1019 = vmatpush1.msra.mxu0 0.0
      %1020 = vmatprep.subr.mxu0 0.0
      %1021 = vmatpush1.msra.mxu0 0.0
      %1022 = vmatprep.subr.mxu0 0.0
      %1023 = vmatpush1.msra.mxu0 0.0
      %1024 = vmatprep.subr.mxu0 0.0
      %1025 = vmatpush1.msra.mxu0 0.0
      %1026 = vmatprep.subr.mxu0 0.0
      %1027 = vmatpush1.msra.mxu0 0.0
      %1028 = vmatprep.subr.mxu0 0.0
      %1029 = vmatpush1.msra.mxu0 0.0
      %1030 = vmatprep.subr.mxu0 0.0
      %1031 = vmatpush1.msra.mxu0 0.0
      %1032 = vmatprep.subr.mxu0 0.0
      %1033 = vmatpush1.msra.mxu0 0.0
      %1034 = vmatprep.subr.mxu0 0.0
      %1035 = vmatpush1.msra.mxu0 0.0
      %1036 = vmatprep.subr.mxu0 0.0
      %1037 = vmatpush1.msra.mxu0 0.0
      %1038 = vmatprep.subr.mxu0 0.0
      %1039 = vmatpush1.msra.mxu0 0.0
      %1040 = vmatprep.subr.mxu0 0.0
      %1041 = vmatpush1.msra.mxu0 0.0
      %1042 = vmatprep.subr.mxu0 0.0
      %1043 = vmatpush1.msra.mxu0 %v1010
      %1044 = vmatprep.subr.mxu0 0.0
      %1045 = vmatpush2.msra.mxu0 0.0
      %1046 = vmatprep.subr.mxu0 0.0
      %1047 = vmatpush2.msra.mxu0 0.0
      %1048 = vmatprep.subr.mxu0 0.0
      %1049 = vmatpush2.msra.mxu0 0.0
      %1050 = vmatprep.subr.mxu0 0.0
      %1051 = vmatpush2.msra.mxu0 0.0
      %1052 = vmatprep.subr.mxu0 0.0
      %1053 = vmatpush2.msra.mxu0 0.0
      %1054 = vmatprep.subr.mxu0 0.0
      %1055 = vmatpush2.msra.mxu0 0.0
      %1056 = vmatprep.subr.mxu0 0.0
      %1057 = vmatpush2.msra.mxu0 0.0
      %1058 = vmatprep.subr.mxu0 0.0
      %1059 = vmatpush2.msra.mxu0 0.0
      %1060 = vmatprep.subr.mxu0 0.0
      %1061 = vmatpush2.msra.mxu0 0.0
      %1062 = vmatprep.subr.mxu0 0.0
      %1063 = vmatpush2.msra.mxu0 0.0
      %1064 = vmatprep.subr.mxu0 0.0
      %1065 = vmatpush2.msra.mxu0 0.0
      %1066 = vmatprep.subr.mxu0 0.0
      %1067 = vmatpush2.msra.mxu0 0.0
      %1068 = vmatprep.subr.mxu0 0.0
      %1069 = vmatpush2.msra.mxu0 0.0
      %1070 = vmatprep.subr.mxu0 0.0
      %1071 = vmatpush2.msra.mxu0 0.0
      %1072 = vmatprep.subr.mxu0 0.0
      %1073 = vmatpush2.msra.mxu0 0.0
      %1074 = vmatprep.subr.mxu0 0.0
      %1075 = vmatpush2.msra.mxu0 0.0
      %1076 = vmatprep.mubr.f32.mxu0 0.0
      %1077 = vmatmul.mubr.f32.gmra.mxu0 %v1004
      %v1078 = vpop.f32.mrf.mxu0
      %v1079 = vadd.f32 0.0, %v1078
      %v1080 = vpop.f32.mrf.mxu0
      %1081 = vmatprep.mubr.f32.mxu0 0.0
      %1082 = vmatmul.mubr.f32.gmra.mxu0 %v1007
      %v1083 = vpop.f32.mrf.mxu0
      %v1084 = vadd.f32 0.0, %v1083
      %v1085 = vpop.f32.mrf.mxu0
      %1086 = vdwg.mxu0
      %v1087 = vadd.f32 %v926, %v1079
      %v1088 = vadd.f32 %v926, %v1084
      %v1089 = vmax.f32 %v1087, 0.0
      %v1090 = vmax.f32 %v1088, 0.0
      %v1091 = vld [vmem:[%s12] sm:$0x1]
      %v1093 = vlaneseq
      %v1094 = vshrl.u32 %v1093, 7
      %v1095 = vsub.s32 0, %v1094
      %v1096 = vrot.slane %v1091, %v1095
      %v1098 = vmul.f32 %v1089, %v1096
      %v1099 = vmul.f32 %v1090, %v1096
      %v1100 = vsel %vm566, %v1098, 0.0
      %1101 = vadd.xlane.f32.xlu0 %v1100
      %v1102 = vpop.xlane.xlu0 %1101
      %v1103 = vsel %vm566, %v1099, 0.0
      %1104 = vadd.xlane.f32.xlu0 %v1103
      %v1105 = vpop.xlane.xlu0 %1104
      %v1106 = vld [vmem:[#allocation2] sm:$0x1]
      %v1108 = vlaneseq
      %v1109 = vshrl.u32 %v1108, 7
      %v1110 = vsub.s32 0, %v1109
      %v1111 = vrot.slane %v1106, %v1110
      %v1113 = vadd.f32 %v1102, %v1111
      %v1114 = vadd.f32 %v1105, %v1111
      %v1115 = vlaneseq
      %v1116 = vshrl.u32 %v1115, 7
      %v1117 = vsub.s32 0, %v1116
      %v1118 = vrot.slane %v641, %v1117
      %1120 = vset.pattern.permute.xlu0 0
      %1121 = vperm.xlu0 %1120, %v1113
      %v1122 = vpop.permute.xlu0 %1121
      %1125 = vset.pattern.permute.xlu0 0
      %1126 = vperm.xlu0 %1125, %v1114
      %v1127 = vpop.permute.xlu0 %1126
      %v1129 = vadd.f32 %v1118, %v1122
      %v1130 = vadd.f32 %v1118, %v1127
      %v1131 = vxor.u32 %v1129, 2147483648
      %v1132 = vxor.u32 %v1130, 2147483648
      %v1133 = vmul.f32 %v1131, 1.442695
      %v1134 = vpow.pop %v1133
      %v1135 = vmul.f32 %v1132, 1.442695
      %v1136 = vpow.pop %v1135
      %v1137 = vadd.f32 %v1134, 1.0
      %v1138 = vadd.f32 %v1136, 1.0
      %v1139 = vrcp.pop %v1137
      %v1140 = vmul.f32 1.0, %v1139
      %v1141 = vrcp.pop %v1138
      %v1142 = vmul.f32 1.0, %v1141
      %v1143 = vadd.f32 %v1140, 1.0
      %v1144 = vadd.f32 %v1142, 1.0
      %v1145 = vmul.f32 %v472, %v1143
      %v1146 = vmul.f32 %v473, %v1144
      %v1147 = vpack.c.bf16 %v1146, %v1145
      %v1149 = vunpack.c.l.b16 %v1147
      %v1150 = vunpack.c.h.b16 %v1147
      %v1151 = vpack.c.b16 %v1149, %v1149
      %v1152 = vpack.c.b16 %v1150, %v1150
      %vm1155 = vcmask 257024
      %1156 = vst.msk [vmem:[%s469] sm:$0xf] %vm1155, %v1151
      %1157 = vst.msk [vmem:[%s469 + $0x4] sm:$0xf] %vm1155, %v1152
      %p1158 = scmp.lt.s32.totalorder %s27, 1
      %s1159 = scalar_select %p1158, %s27, 1
      %s1160 = smul.addr %s1159, 2
      %s1161 = smul.addr %s1160, 4
      %s1162 = scalar_lea.vmem %s14, %s1161
      // Predicated region
      $region77: #{dqn_forward.8} parent=75 // pred_check
        %p1163 = pneg %p344
      $region78: #{dqn_forward.8} parent=75 // pred_check_branch
        %1165 = sbr.rel (%p1163) target = $region80
      $region79: #{dqn_forward.8} parent=75 // pred_region
        _
      $region80: #{dqn_forward.8} parent=75 // pred_fallthru
        _
    $region76: #{dqn_forward.8} parent=5 // pred_fallthru
      _
    %p1166 = scmp.le.s32.totalorder 2, %s22
    // Predicated region
    $region81: #{dqn_forward.8} parent=5 // pred_check
      %p1167 = pneg %p1166
    $region82: #{dqn_forward.8} parent=5 // pred_check_branch
      %1169 = sbr.rel (%p1167) target = $region84
    $region83: #{dqn_forward.8} parent=5 // pred_region
      %s1170 = ssub.s32 %s22, 2
      // Predicated region
      $region85: #{dqn_forward.8} parent=83 // pred_check
        %p1171 = pneg %p350
      $region86: #{dqn_forward.8} parent=83 // pred_check_branch
        %1173 = sbr.rel (%p1171) target = $region88
      $region87: #{dqn_forward.8} parent=83 // pred_region
        %p1174 = scmp.lt.s32.totalorder %s28, 1
        %s1175 = scalar_select %p1174, %s28, 1
        %s1176 = smul.addr %s1175, 2
        %s1177 = smul.addr %s1176, 4
        %s1178 = scalar_lea.vmem %s14, %s1177
      $region88: #{dqn_forward.8} parent=83 // pred_fallthru
        _
    $region84: #{dqn_forward.8} parent=5 // pred_fallthru
      _
  $region6: #{dqn_forward.8} parent=0 // loop_footer
    %s26 = sadd.s32 1, %s22
  $region7: #{dqn_forward.8} parent=0 // loop_footer_branch
    %21 = sbr.rel target = $region3
  $region8: #{dqn_forward.8} parent=0 // loop_exit
    _

// kernel: dqn_forward.9
$region0: #{dqn_forward.9}
  #allocation0 [shape = 'u32[]', space=smem, size = 0x4, offset = 0x4, fixed_abs, tag = 'smem constant byte address 0x4 - core index']
  #allocation1 [shape = 'u32[144,128]{1,0:T(1,128)}', space=vmem, size = 0x12000, scoped, tag = 'internal scratch']
  #allocation2 [shape = 'f32[8,64]{1,0:T(8,128)}', space=vmem, size = 0x1000, scoped, tag = 'scratch operand']
  %s0 = inlined_call_operand.vmem [shape: bf16[8,512], index: 0, kind: input, shape index: {}]
  %s1 = inlined_call_operand.vmem [shape: bf16[512,64], index: 1, kind: input, shape index: {}]
  %s2 = inlined_call_operand.vmem [shape: f32[1,64], index: 2, kind: input, shape index: {}]
  %s3 = inlined_call_operand.vmem [shape: bf16[8,64], index: 3, kind: output, shape index: {}]
  %s4 = sld [smem:[#allocation0]]
  $region30: #{dqn_forward.9} parent=0
    _
  %s6 = ssub.s32 1, %s4
  %s7 = scalar_select 0, %s6, %s4
  // Predicated region
  $region2: #{dqn_forward.9} parent=0 // pred_check
    _
  $region3: #{dqn_forward.9} parent=0 // pred_check_branch
    %9 = sbr.rel (0) target = $region5
  $region4: #{dqn_forward.9} parent=0 // pred_region
    _
  $region5: #{dqn_forward.9} parent=0 // pred_fallthru
    _
  // Predicated region
  $region6: #{dqn_forward.9} parent=0 // pred_check
    _
  $region7: #{dqn_forward.9} parent=0 // pred_check_branch
    %11 = sbr.rel (0) target = $region9
  $region8: #{dqn_forward.9} parent=0 // pred_region
    _
  $region9: #{dqn_forward.9} parent=0 // pred_fallthru
    _
  // Predicated region
  $region10: #{dqn_forward.9} parent=0 // pred_check
    _
  $region11: #{dqn_forward.9} parent=0 // pred_check_branch
    %13 = sbr.rel (0) target = $region13
  $region12: #{dqn_forward.9} parent=0 // pred_region
    _
  $region13: #{dqn_forward.9} parent=0 // pred_fallthru
    _
  %p15 = scmp.eq.s32.totalorder 0, 0
  // Predicated region
  $region14: #{dqn_forward.9} parent=0 // pred_check
    %p16 = pneg %p15
  $region15: #{dqn_forward.9} parent=0 // pred_check_branch
    %18 = sbr.rel (%p16) target = $region17
  $region16: #{dqn_forward.9} parent=0 // pred_region
    %vm19 = vcmask 523264
    %20 = vst.msk [vmem:[#allocation2] sm:$0xff] %vm19, 0.0
  $region17: #{dqn_forward.9} parent=0 // pred_fallthru
    _
  %v21 = vld [vmem:[#allocation2] sm:$0xff]
  %v22 = vld [vmem:[%s0] sm:$0xff]
  %v23 = vld [vmem:[%s0 + $0x8] sm:$0xff]
  %v24 = vld [vmem:[%s1] sm:$0xf]
  %v25 = vld [vmem:[%s1 + $0x4] sm:$0xf]
  %v26 = vld [vmem:[%s1 + $0x8] sm:$0xf]
  %v27 = vld [vmem:[%s1 + $0xc] sm:$0xf]
  %v28 = vld [vmem:[%s1 + $0x10] sm:$0xf]
  %v29 = vld [vmem:[%s1 + $0x14] sm:$0xf]
  %v30 = vld [vmem:[%s1 + $0x18] sm:$0xf]
  %v31 = vld [vmem:[%s1 + $0x1c] sm:$0xf]
  %v32 = vld [vmem:[%s1 + $0x20] sm:$0xf]
  %v33 = vld [vmem:[%s1 + $0x24] sm:$0xf]
  %v34 = vld [vmem:[%s1 + $0x28] sm:$0xf]
  %v35 = vld [vmem:[%s1 + $0x2c] sm:$0xf]
  %v36 = vld [vmem:[%s1 + $0x30] sm:$0xf]
  %v37 = vld [vmem:[%s1 + $0x34] sm:$0xf]
  %v38 = vld [vmem:[%s1 + $0x38] sm:$0xf]
  %v39 = vld [vmem:[%s1 + $0x3c] sm:$0xf]
  %v40 = vld [vmem:[%s1 + $0x40] sm:$0xf]
  %v41 = vld [vmem:[%s1 + $0x44] sm:$0xf]
  %v42 = vld [vmem:[%s1 + $0x48] sm:$0xf]
  %v43 = vld [vmem:[%s1 + $0x4c] sm:$0xf]
  %v44 = vld [vmem:[%s1 + $0x50] sm:$0xf]
  %v45 = vld [vmem:[%s1 + $0x54] sm:$0xf]
  %v46 = vld [vmem:[%s1 + $0x58] sm:$0xf]
  %v47 = vld [vmem:[%s1 + $0x5c] sm:$0xf]
  %v48 = vld [vmem:[%s1 + $0x60] sm:$0xf]
  %v49 = vld [vmem:[%s1 + $0x64] sm:$0xf]
  %v50 = vld [vmem:[%s1 + $0x68] sm:$0xf]
  %v51 = vld [vmem:[%s1 + $0x6c] sm:$0xf]
  %v52 = vld [vmem:[%s1 + $0x70] sm:$0xf]
  %v53 = vld [vmem:[%s1 + $0x74] sm:$0xf]
  %v54 = vld [vmem:[%s1 + $0x78] sm:$0xf]
  %v55 = vld [vmem:[%s1 + $0x7c] sm:$0xf]
  %v56 = vld [vmem:[%s1 + $0x80] sm:$0xf]
  %v57 = vld [vmem:[%s1 + $0x84] sm:$0xf]
  %v58 = vld [vmem:[%s1 + $0x88] sm:$0xf]
  %v59 = vld [vmem:[%s1 + $0x8c] sm:$0xf]
  %v60 = vld [vmem:[%s1 + $0x90] sm:$0xf]
  %v61 = vld [vmem:[%s1 + $0x94] sm:$0xf]
  %v62 = vld [vmem:[%s1 + $0x98] sm:$0xf]
  %v63 = vld [vmem:[%s1 + $0x9c] sm:$0xf]
  %v64 = vld [vmem:[%s1 + $0xa0] sm:$0xf]
  %v65 = vld [vmem:[%s1 + $0xa4] sm:$0xf]
  %v66 = vld [vmem:[%s1 + $0xa8] sm:$0xf]
  %v67 = vld [vmem:[%s1 + $0xac] sm:$0xf]
  %v68 = vld [vmem:[%s1 + $0xb0] sm:$0xf]
  %v69 = vld [vmem:[%s1 + $0xb4] sm:$0xf]
  %v70 = vld [vmem:[%s1 + $0xb8] sm:$0xf]
  %v71 = vld [vmem:[%s1 + $0xbc] sm:$0xf]
  %v72 = vld [vmem:[%s1 + $0xc0] sm:$0xf]
  %v73 = vld [vmem:[%s1 + $0xc4] sm:$0xf]
  %v74 = vld [vmem:[%s1 + $0xc8] sm:$0xf]
  %v75 = vld [vmem:[%s1 + $0xcc] sm:$0xf]
  %v76 = vld [vmem:[%s1 + $0xd0] sm:$0xf]
  %v77 = vld [vmem:[%s1 + $0xd4] sm:$0xf]
  %v78 = vld [vmem:[%s1 + $0xd8] sm:$0xf]
  %v79 = vld [vmem:[%s1 + $0xdc] sm:$0xf]
  %v80 = vld [vmem:[%s1 + $0xe0] sm:$0xf]
  %v81 = vld [vmem:[%s1 + $0xe4] sm:$0xf]
  %v82 = vld [vmem:[%s1 + $0xe8] sm:$0xf]
  %v83 = vld [vmem:[%s1 + $0xec] sm:$0xf]
  %v84 = vld [vmem:[%s1 + $0xf0] sm:$0xf]
  %v85 = vld [vmem:[%s1 + $0xf4] sm:$0xf]
  %v86 = vld [vmem:[%s1 + $0xf8] sm:$0xf]
  %v87 = vld [vmem:[%s1 + $0xfc] sm:$0xf]
  %v90 = vunpack.c.l.b16 %v22
  %v91 = vunpack.c.h.b16 %v22
  %v92 = vunpack.c.l.b16 %v23
  %v93 = vunpack.c.h.b16 %v23
  %v94 = vpack.c.b16 %v90, %v90
  %v95 = vpack.c.b16 %v91, %v91
  %v96 = vpack.c.b16 %v92, %v92
  %v97 = vpack.c.b16 %v93, %v93
  %v166 = vunpack.c.l.b16 %v24
  %v167 = vunpack.c.l.b16 %v25
  %v168 = vunpack.c.l.b16 %v26
  %v169 = vunpack.c.l.b16 %v27
  %v170 = vunpack.c.l.b16 %v28
  %v171 = vunpack.c.l.b16 %v29
  %v172 = vunpack.c.l.b16 %v30
  %v173 = vunpack.c.l.b16 %v31
  %v174 = vunpack.c.l.b16 %v32
  %v175 = vunpack.c.l.b16 %v33
  %v176 = vunpack.c.l.b16 %v34
  %v177 = vunpack.c.l.b16 %v35
  %v178 = vunpack.c.l.b16 %v36
  %v179 = vunpack.c.l.b16 %v37
  %v180 = vunpack.c.l.b16 %v38
  %v181 = vunpack.c.l.b16 %v39
  %v182 = vunpack.c.l.b16 %v40
  %v183 = vunpack.c.l.b16 %v41
  %v184 = vunpack.c.l.b16 %v42
  %v185 = vunpack.c.l.b16 %v43
  %v186 = vunpack.c.l.b16 %v44
  %v187 = vunpack.c.l.b16 %v45
  %v188 = vunpack.c.l.b16 %v46
  %v189 = vunpack.c.l.b16 %v47
  %v190 = vunpack.c.l.b16 %v48
  %v191 = vunpack.c.l.b16 %v49
  %v192 = vunpack.c.l.b16 %v50
  %v193 = vunpack.c.l.b16 %v51
  %v194 = vunpack.c.l.b16 %v52
  %v195 = vunpack.c.l.b16 %v53
  %v196 = vunpack.c.l.b16 %v54
  %v197 = vunpack.c.l.b16 %v55
  %v198 = vunpack.c.l.b16 %v56
  %v199 = vunpack.c.l.b16 %v57
  %v200 = vunpack.c.l.b16 %v58
  %v201 = vunpack.c.l.b16 %v59
  %v202 = vunpack.c.l.b16 %v60
  %v203 = vunpack.c.l.b16 %v61
  %v204 = vunpack.c.l.b16 %v62
  %v205 = vunpack.c.l.b16 %v63
  %v206 = vunpack.c.l.b16 %v64
  %v207 = vunpack.c.l.b16 %v65
  %v208 = vunpack.c.l.b16 %v66
  %v209 = vunpack.c.l.b16 %v67
  %v210 = vunpack.c.l.b16 %v68
  %v211 = vunpack.c.l.b16 %v69
  %v212 = vunpack.c.l.b16 %v70
  %v213 = vunpack.c.l.b16 %v71
  %v214 = vunpack.c.l.b16 %v72
  %v215 = vunpack.c.l.b16 %v73
  %v216 = vunpack.c.l.b16 %v74
  %v217 = vunpack.c.l.b16 %v75
  %v218 = vunpack.c.l.b16 %v76
  %v219 = vunpack.c.l.b16 %v77
  %v220 = vunpack.c.l.b16 %v78
  %v221 = vunpack.c.l.b16 %v79
  %v222 = vunpack.c.l.b16 %v80
  %v223 = vunpack.c.l.b16 %v81
  %v224 = vunpack.c.l.b16 %v82
  %v225 = vunpack.c.l.b16 %v83
  %v226 = vunpack.c.l.b16 %v84
  %v227 = vunpack.c.l.b16 %v85
  %v228 = vunpack.c.l.b16 %v86
  %v229 = vunpack.c.l.b16 %v87
  %v230 = vpack.c.b16 %v167, %v166
  %v231 = vpack.c.b16 %v169, %v168
  %v232 = vpack.c.b16 %v171, %v170
  %v233 = vpack.c.b16 %v173, %v172
  %v234 = vpack.c.b16 %v175, %v174
  %v235 = vpack.c.b16 %v177, %v176
  %v236 = vpack.c.b16 %v179, %v178
  %v237 = vpack.c.b16 %v181, %v180
  %v238 = vpack.c.b16 %v183, %v182
  %v239 = vpack.c.b16 %v185, %v184
  %v240 = vpack.c.b16 %v187, %v186
  %v241 = vpack.c.b16 %v189, %v188
  %v242 = vpack.c.b16 %v191, %v190
  %v243 = vpack.c.b16 %v193, %v192
  %v244 = vpack.c.b16 %v195, %v194
  %v245 = vpack.c.b16 %v197, %v196
  %v246 = vpack.c.b16 %v199, %v198
  %v247 = vpack.c.b16 %v201, %v200
  %v248 = vpack.c.b16 %v203, %v202
  %v249 = vpack.c.b16 %v205, %v204
  %v250 = vpack.c.b16 %v207, %v206
  %v251 = vpack.c.b16 %v209, %v208
  %v252 = vpack.c.b16 %v211, %v210
  %v253 = vpack.c.b16 %v213, %v212
  %v254 = vpack.c.b16 %v215, %v214
  %v255 = vpack.c.b16 %v217, %v216
  %v256 = vpack.c.b16 %v219, %v218
  %v257 = vpack.c.b16 %v221, %v220
  %v258 = vpack.c.b16 %v223, %v222
  %v259 = vpack.c.b16 %v225, %v224
  %v260 = vpack.c.b16 %v227, %v226
  %v261 = vpack.c.b16 %v229, %v228
  %294 = vmatprep.subr.bf16.mxu0 0
  %295 = vmatpush1.bf16.msra.mxu0 %v237
  %296 = vmatprep.subr.bf16.mxu0 0
  %297 = vmatpush1.bf16.msra.mxu0 %v236
  %298 = vmatprep.subr.bf16.mxu0 0
  %299 = vmatpush1.bf16.msra.mxu0 %v235
  %300 = vmatprep.subr.bf16.mxu0 0
  %301 = vmatpush1.bf16.msra.mxu0 %v234
  %302 = vmatprep.subr.bf16.mxu0 0
  %303 = vmatpush1.bf16.msra.mxu0 %v233
  %304 = vmatprep.subr.bf16.mxu0 0
  %305 = vmatpush1.bf16.msra.mxu0 %v232
  %306 = vmatprep.subr.bf16.mxu0 0
  %307 = vmatpush1.bf16.msra.mxu0 %v231
  %308 = vmatprep.subr.bf16.mxu0 0
  %309 = vmatpush1.bf16.msra.mxu0 %v230
  %310 = vmatprep.subr.bf16.mxu0 0
  %311 = vmatpush2.bf16.msra.mxu0 %v245
  %312 = vmatprep.subr.bf16.mxu0 0
  %313 = vmatpush2.bf16.msra.mxu0 %v244
  %314 = vmatprep.subr.bf16.mxu0 0
  %315 = vmatpush2.bf16.msra.mxu0 %v243
  %316 = vmatprep.subr.bf16.mxu0 0
  %317 = vmatpush2.bf16.msra.mxu0 %v242
  %318 = vmatprep.subr.bf16.mxu0 0
  %319 = vmatpush2.bf16.msra.mxu0 %v241
  %320 = vmatprep.subr.bf16.mxu0 0
  %321 = vmatpush2.bf16.msra.mxu0 %v240
  %322 = vmatprep.subr.bf16.mxu0 0
  %323 = vmatpush2.bf16.msra.mxu0 %v239
  %324 = vmatprep.subr.bf16.mxu0 0
  %325 = vmatpush2.bf16.msra.mxu0 %v238
  %326 = vmatprep.mubr.bf16.mxu0 %v95
  %327 = vmatmul.mubr.bf16.gmra.mxu0 %v94
  %v328 = vpop.f32.mrf.mxu0
  %v329 = vadd.f32 0.0, %v328
  %v330 = vpop.f32.mrf.mxu0
  %v331 = vpop.f32.mrf.mxu0
  %v332 = vpop.f32.mrf.mxu0
  %333 = vdwg.mxu0
  %334 = vmatprep.subr.bf16.mxu0 0
  %335 = vmatpush1.bf16.msra.mxu0 %v253
  %336 = vmatprep.subr.bf16.mxu0 0
  %337 = vmatpush1.bf16.msra.mxu0 %v252
  %338 = vmatprep.subr.bf16.mxu0 0
  %339 = vmatpush1.bf16.msra.mxu0 %v251
  %340 = vmatprep.subr.bf16.mxu0 0
  %341 = vmatpush1.bf16.msra.mxu0 %v250
  %342 = vmatprep.subr.bf16.mxu0 0
  %343 = vmatpush1.bf16.msra.mxu0 %v249
  %344 = vmatprep.subr.bf16.mxu0 0
  %345 = vmatpush1.bf16.msra.mxu0 %v248
  %346 = vmatprep.subr.bf16.mxu0 0
  %347 = vmatpush1.bf16.msra.mxu0 %v247
  %348 = vmatprep.subr.bf16.mxu0 0
  %349 = vmatpush1.bf16.msra.mxu0 %v246
  %350 = vmatprep.subr.bf16.mxu0 0
  %351 = vmatpush2.bf16.msra.mxu0 %v261
  %352 = vmatprep.subr.bf16.mxu0 0
  %353 = vmatpush2.bf16.msra.mxu0 %v260
  %354 = vmatprep.subr.bf16.mxu0 0
  %355 = vmatpush2.bf16.msra.mxu0 %v259
  %356 = vmatprep.subr.bf16.mxu0 0
  %357 = vmatpush2.bf16.msra.mxu0 %v258
  %358 = vmatprep.subr.bf16.mxu0 0
  %359 = vmatpush2.bf16.msra.mxu0 %v257
  %360 = vmatprep.subr.bf16.mxu0 0
  %361 = vmatpush2.bf16.msra.mxu0 %v256
  %362 = vmatprep.subr.bf16.mxu0 0
  %363 = vmatpush2.bf16.msra.mxu0 %v255
  %364 = vmatprep.subr.bf16.mxu0 0
  %365 = vmatpush2.bf16.msra.mxu0 %v254
  %366 = vmatprep.mubr.bf16.mxu0 %v97
  %367 = vmatmul.mubr.bf16.gmra.mxu0 %v96
  %v368 = vpop.f32.mrf.mxu0
  %v369 = vadd.f32 %v329, %v368
  %v370 = vpop.f32.mrf.mxu0
  %v371 = vpop.f32.mrf.mxu0
  %v372 = vpop.f32.mrf.mxu0
  %373 = vdwg.mxu0
  %v374 = vadd.f32 %v21, %v369
  %vm375 = vcmask 523264
  %376 = vst.msk [vmem:[#allocation2] sm:$0xff] %vm375, %v374
  // Predicated region
  $region18: #{dqn_forward.9} parent=0 // pred_check
    %p377 = pneg %p15
  $region19: #{dqn_forward.9} parent=0 // pred_check_branch
    %379 = sbr.rel (%p377) target = $region21
  $region20: #{dqn_forward.9} parent=0 // pred_region
    %v380 = vld [vmem:[#allocation2] sm:$0xff]
    %v381 = vld [vmem:[%s2] sm:$0x1]
    %v383 = vlaneseq
    %v384 = vshrl.u32 %v383, 7
    %v385 = vsub.s32 0, %v384
    %v386 = vrot.slane %v381, %v385
    %v388 = vadd.f32 %v380, %v386
    %v389 = vmax.f32 %v388, 0.0
    %v390 = vpack.c.bf16 %v389, %v389
    %vm391 = vcmask 519168
    %392 = vst.msk [vmem:[%s3] sm:$0xf] %vm391, %v390
  $region21: #{dqn_forward.9} parent=0 // pred_fallthru
    _
  // Predicated region
  $region22: #{dqn_forward.9} parent=0 // pred_check
    _
  $region23: #{dqn_forward.9} parent=0 // pred_check_branch
    %394 = sbr.rel (0) target = $region25
  $region24: #{dqn_forward.9} parent=0 // pred_region
    _
  $region25: #{dqn_forward.9} parent=0 // pred_fallthru
    _
  // Predicated region
  $region26: #{dqn_forward.9} parent=0 // pred_check
    _
  $region27: #{dqn_forward.9} parent=0 // pred_check_branch
    %396 = sbr.rel (0) target = $region29
  $region28: #{dqn_forward.9} parent=0 // pred_region
    _
  $region29: #{dqn_forward.9} parent=0 // pred_fallthru
    _

// kernel: dqn_forward.12
$region0: #{dqn_forward.12}
  #allocation0 [shape = 'u32[]', space=smem, size = 0x4, offset = 0x4, fixed_abs, tag = 'smem constant byte address 0x4 - core index']
  #allocation1 [shape = 'u32[144,128]{1,0:T(1,128)}', space=vmem, size = 0x12000, scoped, tag = 'internal scratch']
  #allocation2 [shape = 'f32[2,256]{1,0:T(2,128)}', space=vmem, size = 0x800, scoped, tag = 'scratch operand']
  %s0 = inlined_call_operand.vmem [shape: bf16[2,256], index: 0, kind: input, shape index: {}]
  %s1 = inlined_call_operand.vmem [shape: bf16[256,512], index: 1, kind: input, shape index: {}]
  %s2 = inlined_call_operand.vmem [shape: f32[1,512], index: 2, kind: input, shape index: {}]
  %s3 = inlined_call_operand.vmem [shape: bf16[2,512], index: 3, kind: output, shape index: {}]
  %s4 = sld [smem:[#allocation0]]
  $region91: #{dqn_forward.12} parent=0
    _
  %s6 = ssub.s32 1, %s4
  %s7 = scalar_select 0, %s6, %s4
  $region1: #{dqn_forward.12} parent=0
    #allocation3 [shape = 'u8[262144]{0}', space=vmem, size = 0x40000, scoped, tag = 'input window, operand 1']
    loop: start=0, step=1, limit=4
    $region2: #{dqn_forward.12} parent=1 // loop_pre_header
      _
    $region3: #{dqn_forward.12} parent=1 // loop_header
      %s9 = sphi 0, %s13
      %p10 = scmp.ge.s32.totalorder %s9, 4
      %s16 = sphi 0, %s35
      %s17 = sphi 0, %s31
      %s18 = sphi 0, %s27
      %s19 = sphi 0, %s16
      %s20 = sphi 0, %s17
      %s21 = sphi 0, %s18
      %s22 = sphi 0, %s19
      %s23 = sphi 0, %s20
      %s24 = sphi 0, %s21
      %s40 = sphi 0, %s42
      %s43 = sphi 0, %s40
      %s44 = sphi 0, %s43
      %s60 = sphi 0, %s44
      %s68 = sphi 0, %s70
      %s71 = sphi 0, %s68
      %s72 = sphi 0, %s71
      %s88 = sphi 0, %s72
      %s94 = sphi 0, %s96
      %s97 = sphi 0, %s94
      %s98 = sphi 0, %s97
      %s114 = sphi 0, %s98
      %s122 = sphi 0, %s124
      %s125 = sphi 0, %s122
      %s126 = sphi 0, %s125
      %s142 = sphi 0, %s126
    $region4: #{dqn_forward.12} parent=1 // loop_header_branch
      %12 = sbr.rel (%p10) target = $region8
    $region5: #{dqn_forward.12} parent=1 // loop_body
      %s14 = ssub.s32 %s9, 1
      %s15 = ssub.s32 %s9, 2
      %s25 = sadd.s32 1, %s18
      %p26 = scmp.ge.s32.totalorder %s25, 1
      %s27 = scalar_select %p26, 0, %s25
      %s28 = sadd.s32 1, %s17
      %s29 = scalar_select %p26, %s28, %s17
      %p30 = scmp.ge.s32.totalorder %s29, 2
      %s31 = scalar_select %p30, 0, %s29
      %s32 = sadd.s32 1, %s16
      %s33 = scalar_select %p30, %s32, %s16
      %p34 = scmp.ge.s32.totalorder %s33, 1
      %s35 = scalar_select %p34, 0, %s33
      %s36 = ssub.s32 %s16, %s35
      %s37 = ssub.s32 %s18, %s27
      %s38 = sor.u32 %s36, %s37
      %p39 = scmp.eq.s32.totalorder %s38, 0
      %s41 = sadd.s32 %s40, 1
      %s42 = scalar_select %p39, %s40, %s41
      %p45 = pneg %p39
      %p46 = scmp.eq.s32.totalorder %s9, 1
      %p47 = por %p45, %p46
      %p48 = scmp.ne.s32.totalorder %s40, %s43
      %p49 = scmp.eq.s32.totalorder %s9, 0
      %p50 = por %p48, %p49
      %p51 = scmp.ne.s32.totalorder %s40, %s43
      %p52 = scmp.eq.s32.totalorder %s14, 1
      %p53 = por %p51, %p52
      %p54 = scmp.ne.s32.totalorder %s43, %s44
      %p55 = scmp.eq.s32.totalorder %s14, 0
      %p56 = por %p54, %p55
      %p57 = scmp.ne.s32.totalorder %s43, %s44
      %p58 = scmp.eq.s32.totalorder %s15, 1
      %p59 = por %p57, %p58
      %p61 = scmp.ne.s32.totalorder %s44, %s60
      %p62 = scmp.eq.s32.totalorder %s15, 0
      %p63 = por %p61, %p62
      %s64 = ssub.s32 %s18, %s27
      %s65 = ssub.s32 %s17, %s31
      %s66 = sor.u32 %s64, %s65
      %p67 = scmp.eq.s32.totalorder %s66, 0
      %s69 = sadd.s32 %s68, 1
      %s70 = scalar_select %p67, %s68, %s69
      %p73 = pneg %p67
      %p74 = scmp.eq.s32.totalorder %s9, 1
      %p75 = por %p73, %p74
      %p76 = scmp.ne.s32.totalorder %s68, %s71
      %p77 = scmp.eq.s32.totalorder %s9, 0
      %p78 = por %p76, %p77
      %p79 = scmp.ne.s32.totalorder %s68, %s71
      %p80 = scmp.eq.s32.totalorder %s14, 1
      %p81 = por %p79, %p80
      %p82 = scmp.ne.s32.totalorder %s71, %s72
      %p83 = scmp.eq.s32.totalorder %s14, 0
      %p84 = por %p82, %p83
      %p85 = scmp.ne.s32.totalorder %s71, %s72
      %p86 = scmp.eq.s32.totalorder %s15, 1
      %p87 = por %p85, %p86
      %p89 = scmp.ne.s32.totalorder %s72, %s88
      %p90 = scmp.eq.s32.totalorder %s15, 0
      %p91 = por %p89, %p90
      %s92 = ssub.s32 %s17, %s31
      %p93 = scmp.eq.s32.totalorder %s92, 0
      %s95 = sadd.s32 %s94, 1
      %s96 = scalar_select %p93, %s94, %s95
      %p99 = pneg %p93
      %p100 = scmp.eq.s32.totalorder %s9, 1
      %p101 = por %p99, %p100
      %p102 = scmp.ne.s32.totalorder %s94, %s97
      %p103 = scmp.eq.s32.totalorder %s9, 0
      %p104 = por %p102, %p103
      %p105 = scmp.ne.s32.totalorder %s94, %s97
      %p106 = scmp.eq.s32.totalorder %s14, 1
      %p107 = por %p105, %p106
      %p108 = scmp.ne.s32.totalorder %s97, %s98
      %p109 = scmp.eq.s32.totalorder %s14, 0
      %p110 = por %p108, %p109
      %p111 = scmp.ne.s32.totalorder %s97, %s98
      %p112 = scmp.eq.s32.totalorder %s15, 1
      %p113 = por %p111, %p112
      %p115 = scmp.ne.s32.totalorder %s98, %s114
      %p116 = scmp.eq.s32.totalorder %s15, 0
      %p117 = por %p115, %p116
      %s118 = ssub.s32 %s16, %s35
      %s119 = ssub.s32 %s17, %s31
      %s120 = sor.u32 %s118, %s119
      %p121 = scmp.eq.s32.totalorder %s120, 0
      %s123 = sadd.s32 %s122, 1
      %s124 = scalar_select %p121, %s122, %s123
      %p127 = pneg %p121
      %p128 = scmp.eq.s32.totalorder %s9, 1
      %p129 = por %p127, %p128
      %p130 = scmp.ne.s32.totalorder %s122, %s125
      %p131 = scmp.eq.s32.totalorder %s9, 0
      %p132 = por %p130, %p131
      %p133 = scmp.ne.s32.totalorder %s122, %s125
      %p134 = scmp.eq.s32.totalorder %s14, 1
      %p135 = por %p133, %p134
      %p136 = scmp.ne.s32.totalorder %s125, %s126
      %p137 = scmp.eq.s32.totalorder %s14, 0
      %p138 = por %p136, %p137
      %p139 = scmp.ne.s32.totalorder %s125, %s126
      %p140 = scmp.eq.s32.totalorder %s15, 1
      %p141 = por %p139, %p140
      %p143 = scmp.ne.s32.totalorder %s126, %s142
      %p144 = scmp.eq.s32.totalorder %s15, 0
      %p145 = por %p143, %p144
      %p146 = scmp.le.s32.totalorder 1, %s9
      %p147 = scmp.lt.s32.totalorder %s9, 3
      %p148 = pnand %p146, %p147
      %p149 = pneg %p148
      // Predicated region
      $region9: #{dqn_forward.12} parent=5 // pred_check
        _
      $region10: #{dqn_forward.12} parent=5 // pred_check_branch
        %151 = sbr.rel (%p148) target = $region12
      $region11: #{dqn_forward.12} parent=5 // pred_region
        %s152 = ssub.s32 %s9, 1
        // Predicated region
        $region13: #{dqn_forward.12} parent=11 // pred_check
          %p153 = pneg %p56
        $region14: #{dqn_forward.12} parent=11 // pred_check_branch
          %155 = sbr.rel (%p153) target = $region16
        $region15: #{dqn_forward.12} parent=11 // pred_region
          %s156 = smul.u32 2, %s21
          %p157 = scmp.lt.s32.totalorder %s19, 0
          %s158 = scalar_select %p157, %s19, 0
          %p159 = scmp.lt.s32.totalorder %s156, 1
          %s160 = scalar_select %p159, %s156, 1
          %s161 = smul.addr %s158, 2
          %s162 = sadd.s32 %s160, %s161
          %s163 = scalar_lea.vmem %s0, %s162
          %s164 = smul.u32 2, %s21
        $region16: #{dqn_forward.12} parent=11 // pred_fallthru
          _
      $region12: #{dqn_forward.12} parent=5 // pred_fallthru
        _
      %p165 = scmp.lt.s32.totalorder %s9, 2
      // Predicated region
      $region17: #{dqn_forward.12} parent=5 // pred_check
        %p166 = pneg %p165
      $region18: #{dqn_forward.12} parent=5 // pred_check_branch
        %168 = sbr.rel (%p166) target = $region20
      $region19: #{dqn_forward.12} parent=5 // pred_region
        // Predicated region
        $region21: #{dqn_forward.12} parent=19 // pred_check
          %p169 = pneg %p78
        $region22: #{dqn_forward.12} parent=19 // pred_check_branch
          %171 = sbr.rel (%p169) target = $region24
        $region23: #{dqn_forward.12} parent=19 // pred_region
          %s172 = sand.u32 %s68, 1
          %s173 = sand.u32 %s68, 1
          %s174 = smul.addr %s173, 256
          %s175 = scalar_lea.vmem [#allocation3], %s174
          %s176 = smul.u32 32, %s18
          %s177 = smul.u32 2, %s17
          %s178 = smul.addr %s176, 4
          %s179 = sadd.s32 %s177, %s178
          %s180 = smul.addr %s179, 4
          %s181 = scalar_lea.vmem %s1, %s180
          // Predicated region
          $region25: #{dqn_forward.12} parent=23 // pred_check
            _
          $region26: #{dqn_forward.12} parent=23 // pred_check_branch
            %183 = sbr.rel (0) target = $region28
          $region27: #{dqn_forward.12} parent=23 // pred_region
            // Predicated region
            $region29: #{dqn_forward.12} parent=27 // pred_check
              _
            $region30: #{dqn_forward.12} parent=27 // pred_check_branch
              %185 = sbr.rel (0) target = $region32
            $region31: #{dqn_forward.12} parent=27 // pred_region
              // Predicated region
              $region44: #{dqn_forward.12} parent=31 // pred_check
                _
              $region45: #{dqn_forward.12} parent=31 // pred_check_branch
                %263 = sbr.rel (0) target = $region47
              $region46: #{dqn_forward.12} parent=31 // pred_region
                loop: start=0, step=1, limit=1
                $region48: #{dqn_forward.12} parent=46 // loop_pre_header
                  _
                $region49: #{dqn_forward.12} parent=46 // loop_header
                  %s265 = sphi 0, %s269
                  %p266 = scmp.ge.s32.totalorder %s265, 1
                  %s270 = sphi %s181, %s181
                  %s271 = sphi %s175, %s175
                $region50: #{dqn_forward.12} parent=46 // loop_header_branch
                  %268 = sbr.rel (%p266) target = $region54
                $region51: #{dqn_forward.12} parent=46 // loop_body
                  %v272 = vld [vmem:[%s270] sm:$0xff]
                  %273 = vst [vmem:[%s271] sm:$0xff] %v272
                  %v274 = vld [vmem:[%s270 + $0x10] sm:$0xff]
                  %275 = vst [vmem:[%s271 + $0x8] sm:$0xff] %v274
                  %v276 = vld [vmem:[%s270 + $0x20] sm:$0xff]
                  %277 = vst [vmem:[%s271 + $0x10] sm:$0xff] %v276
                  %v278 = vld [vmem:[%s270 + $0x30] sm:$0xff]
                  %279 = vst [vmem:[%s271 + $0x18] sm:$0xff] %v278
                  %v280 = vld [vmem:[%s270 + $0x40] sm:$0xff]
                  %281 = vst [vmem:[%s271 + $0x20] sm:$0xff] %v280
                  %v282 = vld [vmem:[%s270 + $0x50] sm:$0xff]
                  %283 = vst [vmem:[%s271 + $0x28] sm:$0xff] %v282
                  %v284 = vld [vmem:[%s270 + $0x60] sm:$0xff]
                  %285 = vst [vmem:[%s271 + $0x30] sm:$0xff] %v284
                  %v286 = vld [vmem:[%s270 + $0x70] sm:$0xff]
                  %287 = vst [vmem:[%s271 + $0x38] sm:$0xff] %v286
                  %v288 = vld [vmem:[%s270 + $0x80] sm:$0xff]
                  %289 = vst [vmem:[%s271 + $0x40] sm:$0xff] %v288
                  %v290 = vld [vmem:[%s270 + $0x90] sm:$0xff]
                  %291 = vst [vmem:[%s271 + $0x48] sm:$0xff] %v290
                  %v292 = vld [vmem:[%s270 + $0xa0] sm:$0xff]
                  %293 = vst [vmem:[%s271 + $0x50] sm:$0xff] %v292
                  %v294 = vld [vmem:[%s270 + $0xb0] sm:$0xff]
                  %295 = vst [vmem:[%s271 + $0x58] sm:$0xff] %v294
                  %v296 = vld [vmem:[%s270 + $0xc0] sm:$0xff]
                  %297 = vst [vmem:[%s271 + $0x60] sm:$0xff] %v296
                  %v298 = vld [vmem:[%s270 + $0xd0] sm:$0xff]
                  %299 = vst [vmem:[%s271 + $0x68] sm:$0xff] %v298
                  %v300 = vld [vmem:[%s270 + $0xe0] sm:$0xff]
                  %301 = vst [vmem:[%s271 + $0x70] sm:$0xff] %v300
                  %v302 = vld [vmem:[%s270 + $0xf0] sm:$0xff]
                  %303 = vst [vmem:[%s271 + $0x78] sm:$0xff] %v302
                  %v304 = vld [vmem:[%s270 + $0x100] sm:$0xff]
                  %305 = vst [vmem:[%s271 + $0x80] sm:$0xff] %v304
                  %v306 = vld [vmem:[%s270 + $0x110] sm:$0xff]
                  %307 = vst [vmem:[%s271 + $0x88] sm:$0xff] %v306
                  %v308 = vld [vmem:[%s270 + $0x120] sm:$0xff]
                  %309 = vst [vmem:[%s271 + $0x90] sm:$0xff] %v308
                  %v310 = vld [vmem:[%s270 + $0x130] sm:$0xff]
                  %311 = vst [vmem:[%s271 + $0x98] sm:$0xff] %v310
                  %v312 = vld [vmem:[%s270 + $0x140] sm:$0xff]
                  %313 = vst [vmem:[%s271 + $0xa0] sm:$0xff] %v312
                  %v314 = vld [vmem:[%s270 + $0x150] sm:$0xff]
                  %315 = vst [vmem:[%s271 + $0xa8] sm:$0xff] %v314
                  %v316 = vld [vmem:[%s270 + $0x160] sm:$0xff]
                  %317 = vst [vmem:[%s271 + $0xb0] sm:$0xff] %v316
                  %v318 = vld [vmem:[%s270 + $0x170] sm:$0xff]
                  %319 = vst [vmem:[%s271 + $0xb8] sm:$0xff] %v318
                  %v320 = vld [vmem:[%s270 + $0x180] sm:$0xff]
                  %321 = vst [vmem:[%s271 + $0xc0] sm:$0xff] %v320
                  %v322 = vld [vmem:[%s270 + $0x190] sm:$0xff]
                  %323 = vst [vmem:[%s271 + $0xc8] sm:$0xff] %v322
                  %v324 = vld [vmem:[%s270 + $0x1a0] sm:$0xff]
                  %325 = vst [vmem:[%s271 + $0xd0] sm:$0xff] %v324
                  %v326 = vld [vmem:[%s270 + $0x1b0] sm:$0xff]
                  %327 = vst [vmem:[%s271 + $0xd8] sm:$0xff] %v326
                  %v328 = vld [vmem:[%s270 + $0x1c0] sm:$0xff]
                  %329 = vst [vmem:[%s271 + $0xe0] sm:$0xff] %v328
                  %v330 = vld [vmem:[%s270 + $0x1d0] sm:$0xff]
                  %331 = vst [vmem:[%s271 + $0xe8] sm:$0xff] %v330
                  %v332 = vld [vmem:[%s270 + $0x1e0] sm:$0xff]
                  %333 = vst [vmem:[%s271 + $0xf0] sm:$0xff] %v332
                  %v334 = vld [vmem:[%s270 + $0x1f0] sm:$0xff]
                  %335 = vst [vmem:[%s271 + $0xf8] sm:$0xff] %v334
                $region52: #{dqn_forward.12} parent=46 // loop_footer
                  %s269 = sadd.s32 1, %s265
                $region53: #{dqn_forward.12} parent=46 // loop_footer_branch
                  %264 = sbr.rel target = $region49
                $region54: #{dqn_forward.12} parent=46 // loop_exit
                  _
              $region47: #{dqn_forward.12} parent=31 // pred_fallthru
                _
              // Predicated region
              $region55: #{dqn_forward.12} parent=31 // pred_check
                _
              $region56: #{dqn_forward.12} parent=31 // pred_check_branch
                %337 = sbr.rel target = $region58
              $region57: #{dqn_forward.12} parent=31 // pred_region
                _
              $region58: #{dqn_forward.12} parent=31 // pred_fallthru
                _
            $region32: #{dqn_forward.12} parent=27 // pred_fallthru
              _
            // Predicated region
            $region33: #{dqn_forward.12} parent=27 // pred_check
              _
            $region34: #{dqn_forward.12} parent=27 // pred_check_branch
              %187 = sbr.rel target = $region36
            $region35: #{dqn_forward.12} parent=27 // pred_region
              %s189 = ssub.s32 256, 1
              loop: start=0, step=1, limit=1
              $region37: #{dqn_forward.12} parent=35 // loop_pre_header
                _
              $region38: #{dqn_forward.12} parent=35 // loop_header
                %s191 = sphi 0, %s195
                %p192 = scmp.ge.s32.totalorder %s191, 1
                %s196 = sphi %s181, %s181
                %s197 = sphi %s175, %s175
              $region39: #{dqn_forward.12} parent=35 // loop_header_branch
                %194 = sbr.rel (%p192) target = $region43
              $region40: #{dqn_forward.12} parent=35 // loop_body
                %v198 = vld [vmem:[%s196] sm:%s189]
                %199 = vst [vmem:[%s197] sm:%s189] %v198
                %v200 = vld [vmem:[%s196 + $0x10] sm:%s189]
                %201 = vst [vmem:[%s197 + $0x8] sm:%s189] %v200
                %v202 = vld [vmem:[%s196 + $0x20] sm:%s189]
                %203 = vst [vmem:[%s197 + $0x10] sm:%s189] %v202
                %v204 = vld [vmem:[%s196 + $0x30] sm:%s189]
                %205 = vst [vmem:[%s197 + $0x18] sm:%s189] %v204
                %v206 = vld [vmem:[%s196 + $0x40] sm:%s189]
                %207 = vst [vmem:[%s197 + $0x20] sm:%s189] %v206
                %v208 = vld [vmem:[%s196 + $0x50] sm:%s189]
                %209 = vst [vmem:[%s197 + $0x28] sm:%s189] %v208
                %v210 = vld [vmem:[%s196 + $0x60] sm:%s189]
                %211 = vst [vmem:[%s197 + $0x30] sm:%s189] %v210
                %v212 = vld [vmem:[%s196 + $0x70] sm:%s189]
                %213 = vst [vmem:[%s197 + $0x38] sm:%s189] %v212
                %v214 = vld [vmem:[%s196 + $0x80] sm:%s189]
                %215 = vst [vmem:[%s197 + $0x40] sm:%s189] %v214
                %v216 = vld [vmem:[%s196 + $0x90] sm:%s189]
                %217 = vst [vmem:[%s197 + $0x48] sm:%s189] %v216
                %v218 = vld [vmem:[%s196 + $0xa0] sm:%s189]
                %219 = vst [vmem:[%s197 + $0x50] sm:%s189] %v218
                %v220 = vld [vmem:[%s196 + $0xb0] sm:%s189]
                %221 = vst [vmem:[%s197 + $0x58] sm:%s189] %v220
                %v222 = vld [vmem:[%s196 + $0xc0] sm:%s189]
                %223 = vst [vmem:[%s197 + $0x60] sm:%s189] %v222
                %v224 = vld [vmem:[%s196 + $0xd0] sm:%s189]
                %225 = vst [vmem:[%s197 + $0x68] sm:%s189] %v224
                %v226 = vld [vmem:[%s196 + $0xe0] sm:%s189]
                %227 = vst [vmem:[%s197 + $0x70] sm:%s189] %v226
                %v228 = vld [vmem:[%s196 + $0xf0] sm:%s189]
                %229 = vst [vmem:[%s197 + $0x78] sm:%s189] %v228
                %v230 = vld [vmem:[%s196 + $0x100] sm:%s189]
                %231 = vst [vmem:[%s197 + $0x80] sm:%s189] %v230
                %v232 = vld [vmem:[%s196 + $0x110] sm:%s189]
                %233 = vst [vmem:[%s197 + $0x88] sm:%s189] %v232
                %v234 = vld [vmem:[%s196 + $0x120] sm:%s189]
                %235 = vst [vmem:[%s197 + $0x90] sm:%s189] %v234
                %v236 = vld [vmem:[%s196 + $0x130] sm:%s189]
                %237 = vst [vmem:[%s197 + $0x98] sm:%s189] %v236
                %v238 = vld [vmem:[%s196 + $0x140] sm:%s189]
                %239 = vst [vmem:[%s197 + $0xa0] sm:%s189] %v238
                %v240 = vld [vmem:[%s196 + $0x150] sm:%s189]
                %241 = vst [vmem:[%s197 + $0xa8] sm:%s189] %v240
                %v242 = vld [vmem:[%s196 + $0x160] sm:%s189]
                %243 = vst [vmem:[%s197 + $0xb0] sm:%s189] %v242
                %v244 = vld [vmem:[%s196 + $0x170] sm:%s189]
                %245 = vst [vmem:[%s197 + $0xb8] sm:%s189] %v244
                %v246 = vld [vmem:[%s196 + $0x180] sm:%s189]
                %247 = vst [vmem:[%s197 + $0xc0] sm:%s189] %v246
                %v248 = vld [vmem:[%s196 + $0x190] sm:%s189]
                %249 = vst [vmem:[%s197 + $0xc8] sm:%s189] %v248
                %v250 = vld [vmem:[%s196 + $0x1a0] sm:%s189]
                %251 = vst [vmem:[%s197 + $0xd0] sm:%s189] %v250
                %v252 = vld [vmem:[%s196 + $0x1b0] sm:%s189]
                %253 = vst [vmem:[%s197 + $0xd8] sm:%s189] %v252
                %v254 = vld [vmem:[%s196 + $0x1c0] sm:%s189]
                %255 = vst [vmem:[%s197 + $0xe0] sm:%s189] %v254
                %v256 = vld [vmem:[%s196 + $0x1d0] sm:%s189]
                %257 = vst [vmem:[%s197 + $0xe8] sm:%s189] %v256
                %v258 = vld [vmem:[%s196 + $0x1e0] sm:%s189]
                %259 = vst [vmem:[%s197 + $0xf0] sm:%s189] %v258
                %v260 = vld [vmem:[%s196 + $0x1f0] sm:%s189]
                %261 = vst [vmem:[%s197 + $0xf8] sm:%s189] %v260
              $region41: #{dqn_forward.12} parent=35 // loop_footer
                %s195 = sadd.s32 1, %s191
              $region42: #{dqn_forward.12} parent=35 // loop_footer_branch
                %190 = sbr.rel target = $region38
              $region43: #{dqn_forward.12} parent=35 // loop_exit
                _
            $region36: #{dqn_forward.12} parent=27 // pred_fallthru
              _
          $region28: #{dqn_forward.12} parent=23 // pred_fallthru
            _
          %338 = vnop
        $region24: #{dqn_forward.12} parent=19 // pred_fallthru
          _
        // Predicated region
        $region59: #{dqn_forward.12} parent=19 // pred_check
          %p339 = pneg %p104
        $region60: #{dqn_forward.12} parent=19 // pred_check_branch
          %341 = sbr.rel (%p339) target = $region62
        $region61: #{dqn_forward.12} parent=19 // pred_region
          %s342 = smul.u32 2, %s17
          %p343 = scmp.lt.s32.totalorder %s342, 3
          %s344 = scalar_select %p343, %s342, 3
          %s345 = scalar_lea.vmem %s2, %s344
          %s346 = smul.u32 2, %s17
        $region62: #{dqn_forward.12} parent=19 // pred_fallthru
          _
      $region20: #{dqn_forward.12} parent=5 // pred_fallthru
        _
      %p347 = scmp.le.s32.totalorder 1, %s9
      %p348 = scmp.lt.s32.totalorder %s9, 3
      %p349 = pnand %p347, %p348
      %p350 = pneg %p349
      // Predicated region
      $region63: #{dqn_forward.12} parent=5 // pred_check
        _
      $region64: #{dqn_forward.12} parent=5 // pred_check_branch
        %352 = sbr.rel (%p349) target = $region66
      $region65: #{dqn_forward.12} parent=5 // pred_region
        %s353 = ssub.s32 %s9, 1
        %s354 = sand.u32 %s71, 1
        %s355 = sand.u32 %s71, 1
        %s356 = smul.addr %s355, 256
        %s357 = scalar_lea.vmem [#allocation3], %s356
        // Predicated region
        $region67: #{dqn_forward.12} parent=65 // pred_check
          %p358 = pneg %p84
        $region68: #{dqn_forward.12} parent=65 // pred_check_branch
          %360 = sbr.rel (%p358) target = $region70
        $region69: #{dqn_forward.12} parent=65 // pred_region
          _
        $region70: #{dqn_forward.12} parent=65 // pred_fallthru
          _
        %s361 = smul.u32 2, %s21
        %p362 = scmp.lt.s32.totalorder %s19, 0
        %s363 = scalar_select %p362, %s19, 0
        %p364 = scmp.lt.s32.totalorder %s361, 1
        %s365 = scalar_select %p364, %s361, 1
        %s366 = smul.addr %s363, 2
        %s367 = sadd.s32 %s365, %s366
        %s368 = scalar_lea.vmem %s0, %s367
        %p369 = pneg %p56
        %p370 = pneg %p53
        %s371 = sand.u32 %s71, 1
        %s372 = sand.u32 %s71, 1
        %s373 = smul.addr %s372, 256
        %s374 = scalar_lea.vmem [#allocation3], %s373
        %p375 = pneg %p84
        %p376 = pneg %p81
        %s377 = smul.u32 2, %s20
        %p378 = scmp.lt.s32.totalorder %s377, 3
        %s379 = scalar_select %p378, %s377, 3
        %s380 = scalar_lea.vmem %s2, %s379
        %p381 = pneg %p110
        %p382 = pneg %p107
        %p383 = pneg %p138
        %p384 = pneg %p135
        %s385 = smul.u32 2, %s20
        %p386 = scmp.lt.s32.totalorder %s19, 0
        %s387 = scalar_select %p386, %s19, 0
        %p388 = scmp.lt.s32.totalorder %s385, 3
        %s389 = scalar_select %p388, %s385, 3
        %s390 = smul.addr %s387, 4
        %s391 = sadd.s32 %s389, %s390
        %s392 = scalar_lea.vmem %s3, %s391
        %s393 = smul.u32 2, %s21
        %p394 = scmp.lt.s32.totalorder %s19, 0
        %s395 = scalar_select %p394, %s19, 0
        %p396 = scmp.lt.s32.totalorder %s393, 1
        %s397 = scalar_select %p396, %s393, 1
        %s398 = smul.addr %s395, 2
        %s399 = sadd.s32 %s397, %s398
        %s400 = scalar_lea.vmem %s0, %s399
        %s401 = smul.u32 2, %s21
        %s402 = smul.u32 32, %s21
        %s403 = smul.u32 2, %s20
        %s404 = smul.u32 2, %s20
        %p405 = scmp.lt.s32.totalorder %s404, 3
        %s406 = scalar_select %p405, %s404, 3
        %s407 = scalar_lea.vmem %s2, %s406
        %s408 = smul.u32 2, %s20
        %s409 = smul.u32 2, %s20
        %p410 = scmp.lt.s32.totalorder %s19, 0
        %s411 = scalar_select %p410, %s19, 0
        %p412 = scmp.lt.s32.totalorder %s409, 3
        %s413 = scalar_select %p412, %s409, 3
        %s414 = smul.addr %s411, 4
        %s415 = sadd.s32 %s413, %s414
        %s416 = scalar_lea.vmem %s3, %s415
        %s417 = smul.u32 2, %s20
        %p418 = scmp.eq.s32.totalorder %s21, 0
        // Predicated region
        $region71: #{dqn_forward.12} parent=65 // pred_check
          %p419 = pneg %p418
        $region72: #{dqn_forward.12} parent=65 // pred_check_branch
          %421 = sbr.rel (%p419) target = $region74
        $region73: #{dqn_forward.12} parent=65 // pred_region
          %422 = vst [vmem:[#allocation2] sm:$0xf] 0.0
        $region74: #{dqn_forward.12} parent=65 // pred_fallthru
          _
        %v423 = vld [vmem:[#allocation2] sm:$0xf]
        %v424 = vld [vmem:[%s400] sm:$0x3]
        %v425 = vld [vmem:[%s357] sm:$0xff]
        %v426 = vld [vmem:[%s357 + $0x8] sm:$0xff]
        %v427 = vld [vmem:[%s357 + $0x10] sm:$0xff]
        %v428 = vld [vmem:[%s357 + $0x18] sm:$0xff]
        %v429 = vld [vmem:[%s357 + $0x20] sm:$0xff]
        %v430 = vld [vmem:[%s357 + $0x28] sm:$0xff]
        %v431 = vld [vmem:[%s357 + $0x30] sm:$0xff]
        %v432 = vld [vmem:[%s357 + $0x38] sm:$0xff]
        %v433 = vld [vmem:[%s357 + $0x40] sm:$0xff]
        %v434 = vld [vmem:[%s357 + $0x48] sm:$0xff]
        %v435 = vld [vmem:[%s357 + $0x50] sm:$0xff]
        %v436 = vld [vmem:[%s357 + $0x58] sm:$0xff]
        %v437 = vld [vmem:[%s357 + $0x60] sm:$0xff]
        %v438 = vld [vmem:[%s357 + $0x68] sm:$0xff]
        %v439 = vld [vmem:[%s357 + $0x70] sm:$0xff]
        %v440 = vld [vmem:[%s357 + $0x78] sm:$0xff]
        %v441 = vld [vmem:[%s357 + $0x80] sm:$0xff]
        %v442 = vld [vmem:[%s357 + $0x88] sm:$0xff]
        %v443 = vld [vmem:[%s357 + $0x90] sm:$0xff]
        %v444 = vld [vmem:[%s357 + $0x98] sm:$0xff]
        %v445 = vld [vmem:[%s357 + $0xa0] sm:$0xff]
        %v446 = vld [vmem:[%s357 + $0xa8] sm:$0xff]
        %v447 = vld [vmem:[%s357 + $0xb0] sm:$0xff]
        %v448 = vld [vmem:[%s357 + $0xb8] sm:$0xff]
        %v449 = vld [vmem:[%s357 + $0xc0] sm:$0xff]
        %v450 = vld [vmem:[%s357 + $0xc8] sm:$0xff]
        %v451 = vld [vmem:[%s357 + $0xd0] sm:$0xff]
        %v452 = vld [vmem:[%s357 + $0xd8] sm:$0xff]
        %v453 = vld [vmem:[%s357 + $0xe0] sm:$0xff]
        %v454 = vld [vmem:[%s357 + $0xe8] sm:$0xff]
        %v455 = vld [vmem:[%s357 + $0xf0] sm:$0xff]
        %v456 = vld [vmem:[%s357 + $0xf8] sm:$0xff]
        %v459 = vunpack.c.l.s4 1966171168
        %v460 = vunpack.c.0.s8 %v459
        %v461 = vlaneseq
        %v462 = vshrl.u32 %v461, 7
        %v463 = vsub.s32 %v460, %v462
        %v464 = vrot.slane %v424, %v463
        %v465 = vcombine.high %v464, %v464
        %v467 = vunpack.c.l.s4 1966171168
        %v468 = vunpack.c.0.s8 %v467
        %v469 = vlaneseq
        %v470 = vshrl.u32 %v469, 7
        %v471 = vsub.s32 %v468, %v470
        %v472 = vrot.slane %v464, %v471
        %v474 = vunpack.c.l.s4 1966171168
        %v475 = vunpack.c.0.s8 %v474
        %v476 = vlaneseq
        %v477 = vshrl.u32 %v476, 7
        %v478 = vsub.s32 %v475, %v477
        %v479 = vrot.slane %v465, %v478
        %v514 = vunpack.c.l.b16 %v425
        %v515 = vunpack.c.h.b16 %v425
        %v516 = vunpack.c.l.b16 %v426
        %v517 = vunpack.c.h.b16 %v426
        %v518 = vunpack.c.l.b16 %v427
        %v519 = vunpack.c.h.b16 %v427
        %v520 = vunpack.c.l.b16 %v428
        %v521 = vunpack.c.h.b16 %v428
        %v522 = vunpack.c.l.b16 %v429
        %v523 = vunpack.c.h.b16 %v429
        %v524 = vunpack.c.l.b16 %v430
        %v525 = vunpack.c.h.b16 %v430
        %v526 = vunpack.c.l.b16 %v431
        %v527 = vunpack.c.h.b16 %v431
        %v528 = vunpack.c.l.b16 %v432
        %v529 = vunpack.c.h.b16 %v432
        %v530 = vunpack.c.l.b16 %v433
        %v531 = vunpack.c.h.b16 %v433
        %v532 = vunpack.c.l.b16 %v434
        %v533 = vunpack.c.h.b16 %v434
        %v534 = vunpack.c.l.b16 %v435
        %v535 = vunpack.c.h.b16 %v435
        %v536 = vunpack.c.l.b16 %v436
        %v537 = vunpack.c.h.b16 %v436
        %v538 = vunpack.c.l.b16 %v437
        %v539 = vunpack.c.h.b16 %v437
        %v540 = vunpack.c.l.b16 %v438
        %v541 = vunpack.c.h.b16 %v438
        %v542 = vunpack.c.l.b16 %v439
        %v543 = vunpack.c.h.b16 %v439
        %v544 = vunpack.c.l.b16 %v440
        %v545 = vunpack.c.h.b16 %v440
        %v546 = vunpack.c.l.b16 %v441
        %v547 = vunpack.c.h.b16 %v441
        %v548 = vunpack.c.l.b16 %v442
        %v549 = vunpack.c.h.b16 %v442
        %v550 = vunpack.c.l.b16 %v443
        %v551 = vunpack.c.h.b16 %v443
        %v552 = vunpack.c.l.b16 %v444
        %v553 = vunpack.c.h.b16 %v444
        %v554 = vunpack.c.l.b16 %v445
        %v555 = vunpack.c.h.b16 %v445
        %v556 = vunpack.c.l.b16 %v446
        %v557 = vunpack.c.h.b16 %v446
        %v558 = vunpack.c.l.b16 %v447
        %v559 = vunpack.c.h.b16 %v447
        %v560 = vunpack.c.l.b16 %v448
        %v561 = vunpack.c.h.b16 %v448
        %v562 = vunpack.c.l.b16 %v449
        %v563 = vunpack.c.h.b16 %v449
        %v564 = vunpack.c.l.b16 %v450
        %v565 = vunpack.c.h.b16 %v450
        %v566 = vunpack.c.l.b16 %v451
        %v567 = vunpack.c.h.b16 %v451
        %v568 = vunpack.c.l.b16 %v452
        %v569 = vunpack.c.h.b16 %v452
        %v570 = vunpack.c.l.b16 %v453
        %v571 = vunpack.c.h.b16 %v453
        %v572 = vunpack.c.l.b16 %v454
        %v573 = vunpack.c.h.b16 %v454
        %v574 = vunpack.c.l.b16 %v455
        %v575 = vunpack.c.h.b16 %v455
        %v576 = vunpack.c.l.b16 %v456
        %v577 = vunpack.c.h.b16 %v456
        %v578 = vpack.c.b16 %v516, %v514
        %v579 = vpack.c.b16 %v517, %v515
        %v580 = vpack.c.b16 %v520, %v518
        %v581 = vpack.c.b16 %v521, %v519
        %v582 = vpack.c.b16 %v524, %v522
        %v583 = vpack.c.b16 %v525, %v523
        %v584 = vpack.c.b16 %v528, %v526
        %v585 = vpack.c.b16 %v529, %v527
        %v586 = vpack.c.b16 %v532, %v530
        %v587 = vpack.c.b16 %v533, %v531
        %v588 = vpack.c.b16 %v536, %v534
        %v589 = vpack.c.b16 %v537, %v535
        %v590 = vpack.c.b16 %v540, %v538
        %v591 = vpack.c.b16 %v541, %v539
        %v592 = vpack.c.b16 %v544, %v542
        %v593 = vpack.c.b16 %v545, %v543
        %v594 = vpack.c.b16 %v548, %v546
        %v595 = vpack.c.b16 %v549, %v547
        %v596 = vpack.c.b16 %v552, %v550
        %v597 = vpack.c.b16 %v553, %v551
        %v598 = vpack.c.b16 %v556, %v554
        %v599 = vpack.c.b16 %v557, %v555
        %v600 = vpack.c.b16 %v560, %v558
        %v601 = vpack.c.b16 %v561, %v559
        %v602 = vpack.c.b16 %v564, %v562
        %v603 = vpack.c.b16 %v565, %v563
        %v604 = vpack.c.b16 %v568, %v566
        %v605 = vpack.c.b16 %v569, %v567
        %v606 = vpack.c.b16 %v572, %v570
        %v607 = vpack.c.b16 %v573, %v571
        %v608 = vpack.c.b16 %v576, %v574
        %v609 = vpack.c.b16 %v577, %v575
        %642 = vmatprep.subr.bf16.mxu0 %v593
        %643 = vmatpush1.bf16.msra.mxu0 %v592
        %644 = vmatprep.subr.bf16.mxu0 %v591
        %645 = vmatpush1.bf16.msra.mxu0 %v590
        %646 = vmatprep.subr.bf16.mxu0 %v589
        %647 = vmatpush1.bf16.msra.mxu0 %v588
        %648 = vmatprep.subr.bf16.mxu0 %v587
        %649 = vmatpush1.bf16.msra.mxu0 %v586
        %650 = vmatprep.subr.bf16.mxu0 %v585
        %651 = vmatpush1.bf16.msra.mxu0 %v584
        %652 = vmatprep.subr.bf16.mxu0 %v583
        %653 = vmatpush1.bf16.msra.mxu0 %v582
        %654 = vmatprep.subr.bf16.mxu0 %v581
        %655 = vmatpush1.bf16.msra.mxu0 %v580
        %656 = vmatprep.subr.bf16.mxu0 %v579
        %657 = vmatpush1.bf16.msra.mxu0 %v578
        %658 = vmatprep.subr.bf16.mxu0 %v609
        %659 = vmatpush2.bf16.msra.mxu0 %v608
        %660 = vmatprep.subr.bf16.mxu0 %v607
        %661 = vmatpush2.bf16.msra.mxu0 %v606
        %662 = vmatprep.subr.bf16.mxu0 %v605
        %663 = vmatpush2.bf16.msra.mxu0 %v604
        %664 = vmatprep.subr.bf16.mxu0 %v603
        %665 = vmatpush2.bf16.msra.mxu0 %v602
        %666 = vmatprep.subr.bf16.mxu0 %v601
        %667 = vmatpush2.bf16.msra.mxu0 %v600
        %668 = vmatprep.subr.bf16.mxu0 %v599
        %669 = vmatpush2.bf16.msra.mxu0 %v598
        %670 = vmatprep.subr.bf16.mxu0 %v597
        %671 = vmatpush2.bf16.msra.mxu0 %v596
        %672 = vmatprep.subr.bf16.mxu0 %v595
        %673 = vmatpush2.bf16.msra.mxu0 %v594
        %674 = vmatprep.mubr.bf16.mxu0 %v479
        %675 = vmatmul.mubr.bf16.gmra.mxu0 %v472
        %v676 = vpop.f32.mrf.mxu0
        %v677 = vadd.f32 0.0, %v676
        %v678 = vpop.f32.mrf.mxu0
        %v679 = vadd.f32 0.0, %v678
        %v680 = vpop.f32.mrf.mxu0
        %v681 = vpop.f32.mrf.mxu0
        %682 = vdwg.mxu0
        %v685 = vcombine.low %v677, %v679
        %v687 = vunpack.c.l.s4 1983009808
        %v688 = vunpack.c.0.s8 %v687
        %v689 = vlaneseq
        %v690 = vshrl.u32 %v689, 7
        %v691 = vsub.s32 %v688, %v690
        %v692 = vrot.slane %v685, %v691
        %v694 = vadd.f32 %v423, %v692
        %695 = vst [vmem:[#allocation2] sm:$0xf] %v694
        // Predicated region
        $region75: #{dqn_forward.12} parent=65 // pred_check
          %p696 = pneg %p418
        $region76: #{dqn_forward.12} parent=65 // pred_check_branch
          %698 = sbr.rel (%p696) target = $region78
        $region77: #{dqn_forward.12} parent=65 // pred_region
          %v699 = vld [vmem:[#allocation2] sm:$0xf]
          %v700 = vld [vmem:[%s407] sm:$0x3]
          %v702 = vlaneseq
          %v703 = vshrl.u32 %v702, 7
          %v704 = vsub.s32 0, %v703
          %v705 = vrot.slane %v700, %v704
          %v706 = vlaneseq
          %v707 = vshrl.u32 %v706, 7
          %v708 = vsub.s32 1, %v707
          %v709 = vrot.slane %v700, %v708
          %v710 = vcombine.low %v705, %v709
          %v712 = vunpack.c.l.s4 1983009808
          %v713 = vunpack.c.0.s8 %v712
          %v714 = vlaneseq
          %v715 = vshrl.u32 %v714, 7
          %v716 = vsub.s32 %v713, %v715
          %v717 = vrot.slane %v710, %v716
          %v719 = vadd.f32 %v699, %v717
          %v720 = vmax.f32 %v719, 0.0
          %v723 = vunpack.c.l.s4 1983009808
          %v724 = vunpack.c.0.s8 %v723
          %v725 = vlaneseq
          %v726 = vshrl.u32 %v725, 7
          %v727 = vsub.s32 %v724, %v726
          %v728 = vrot.slane %v720, %v727
          %v729 = vcombine.high %v728, %v728
          %v732 = vpack.c.bf16 %v728, %v728
          %v733 = vpack.c.bf16 %v729, %v729
          %v736 = vcombine.low %v732, %v733
          %v738 = vunpack.c.l.s4 1966171168
          %v739 = vunpack.c.0.s8 %v738
          %v740 = vlaneseq
          %v741 = vshrl.u32 %v740, 7
          %v742 = vsub.s32 %v739, %v741
          %v743 = vrot.slane %v736, %v742
          %v745 = vunpack.c.l.s4 1966171168
          %v746 = vunpack.c.0.s8 %v745
          %v747 = vlaneseq
          %v748 = vshrl.u32 %v747, 7
          %v749 = vsub.s32 %v746, %v748
          %v750 = vrot.slane %v743, %v749
          %752 = vst [vmem:[%s416] sm:$0x3] %v750
        $region78: #{dqn_forward.12} parent=65 // pred_fallthru
          _
        %s753 = smul.u32 2, %s20
        %p754 = scmp.lt.s32.totalorder %s19, 0
        %s755 = scalar_select %p754, %s19, 0
        %p756 = scmp.lt.s32.totalorder %s753, 3
        %s757 = scalar_select %p756, %s753, 3
        %s758 = smul.addr %s755, 4
        %s759 = sadd.s32 %s757, %s758
        %s760 = scalar_lea.vmem %s3, %s759
        // Predicated region
        $region79: #{dqn_forward.12} parent=65 // pred_check
          %p761 = pneg %p135
        $region80: #{dqn_forward.12} parent=65 // pred_check_branch
          %763 = sbr.rel (%p761) target = $region82
        $region81: #{dqn_forward.12} parent=65 // pred_region
          %s764 = smul.u32 2, %s20
        $region82: #{dqn_forward.12} parent=65 // pred_fallthru
          _
      $region66: #{dqn_forward.12} parent=5 // pred_fallthru
        _
      %p765 = scmp.le.s32.totalorder 2, %s9
      // Predicated region
      $region83: #{dqn_forward.12} parent=5 // pred_check
        %p766 = pneg %p765
      $region84: #{dqn_forward.12} parent=5 // pred_check_branch
        %768 = sbr.rel (%p766) target = $region86
      $region85: #{dqn_forward.12} parent=5 // pred_region
        %s769 = ssub.s32 %s9, 2
        // Predicated region
        $region87: #{dqn_forward.12} parent=85 // pred_check
          %p770 = pneg %p141
        $region88: #{dqn_forward.12} parent=85 // pred_check_branch
          %772 = sbr.rel (%p770) target = $region90
        $region89: #{dqn_forward.12} parent=85 // pred_region
          %s773 = smul.u32 2, %s23
          %p774 = scmp.lt.s32.totalorder %s22, 0
          %s775 = scalar_select %p774, %s22, 0
          %p776 = scmp.lt.s32.totalorder %s773, 3
          %s777 = scalar_select %p776, %s773, 3
          %s778 = smul.addr %s775, 4
          %s779 = sadd.s32 %s777, %s778
          %s780 = scalar_lea.vmem %s3, %s779
        $region90: #{dqn_forward.12} parent=85 // pred_fallthru
          _
      $region86: #{dqn_forward.12} parent=5 // pred_fallthru
        _
    $region6: #{dqn_forward.12} parent=1 // loop_footer
      %s13 = sadd.s32 1, %s9
    $region7: #{dqn_forward.12} parent=1 // loop_footer_branch
      %8 = sbr.rel target = $region3
    $region8: #{dqn_forward.12} parent=1 // loop_exit
      _

// kernel: dqn_forward.10
$region0: #{dqn_forward.10}
  #allocation0 [shape = 'u32[]', space=smem, size = 0x4, offset = 0x4, fixed_abs, tag = 'smem constant byte address 0x4 - core index']
  #allocation1 [shape = 'u32[144,128]{1,0:T(1,128)}', space=vmem, size = 0x12000, scoped, tag = 'internal scratch']
  #allocation2 [shape = 'f32[1,1]{1,0:T(1,128)S(1)}', space=vmem, size = 0x200, scoped, tag = 'scoped memory for dqn_forward.10']
  %s0 = inlined_call_operand.vmem [shape: bf16[2,4,64], index: 0, kind: input, shape index: {}]
  %s1 = inlined_call_operand.vmem [shape: f32[64,4], index: 1, kind: input, shape index: {}]
  %s2 = inlined_call_operand.vmem [shape: f32[1,4], index: 2, kind: input, shape index: {}]
  %s3 = inlined_call_operand.vmem [shape: f32[4,64], index: 3, kind: input, shape index: {}]
  %s4 = inlined_call_operand.vmem [shape: f32[1,64], index: 4, kind: input, shape index: {}]
  %s5 = inlined_call_operand.vmem [shape: f32[64,4], index: 5, kind: input, shape index: {}]
  %s6 = inlined_call_operand.vmem [shape: f32[1,4], index: 6, kind: input, shape index: {}]
  %s7 = inlined_call_operand.vmem [shape: f32[1,4,4], index: 7, kind: input, shape index: {}]
  %s8 = inlined_call_operand.vmem [shape: f32[1,4,4], index: 8, kind: input, shape index: {}]
  %s9 = inlined_call_operand.vmem [shape: f32[1,4], index: 9, kind: input, shape index: {}]
  %s10 = inlined_call_operand.vmem [shape: f32[1,4,4], index: 10, kind: input, shape index: {}]
  %s11 = inlined_call_operand.vmem [shape: f32[1,4], index: 11, kind: input, shape index: {}]
  %s12 = inlined_call_operand.vmem [shape: f32[1,4], index: 12, kind: input, shape index: {}]
  %s13 = inlined_call_operand.<no memory space> [shape: f32[1,1], index: 13, kind: input, shape index: {}]
  %s14 = inlined_call_operand.vmem [shape: bf16[2,4,64], index: 14, kind: output, shape index: {}]
  %s15 = sld [smem:[#allocation0]]
  $region89: #{dqn_forward.10} parent=0
    _
  %s17 = ssub.s32 1, %s15
  %s18 = scalar_select 0, %s17, %s15
  %v19 = vstv %s13
  %20 = vst [vmem:[#allocation2] sm:$0x1] %v19
  loop: start=0, step=1, limit=4
  $region2: #{dqn_forward.10} parent=0 // loop_pre_header
    _
  $region3: #{dqn_forward.10} parent=0 // loop_header
    %s22 = sphi 0, %s26
    %p23 = scmp.ge.s32.totalorder %s22, 4
    %s32 = sphi 0, %s34
    %s35 = sphi 0, %s32
    %s36 = sphi 0, %s35
    %s52 = sphi 0, %s36
    %s56 = sphi 0, %s56
    %s58 = sphi 0, %s56
    %s59 = sphi 0, %s58
    %s73 = sphi 0, %s59
    %s77 = sphi 0, %s77
    %s79 = sphi 0, %s77
    %s80 = sphi 0, %s79
    %s94 = sphi 0, %s80
    %s98 = sphi 0, %s98
    %s100 = sphi 0, %s98
    %s101 = sphi 0, %s100
    %s115 = sphi 0, %s101
    %s119 = sphi 0, %s119
    %s121 = sphi 0, %s119
    %s122 = sphi 0, %s121
    %s136 = sphi 0, %s122
    %s140 = sphi 0, %s140
    %s142 = sphi 0, %s140
    %s143 = sphi 0, %s142
    %s157 = sphi 0, %s143
    %s161 = sphi 0, %s161
    %s163 = sphi 0, %s161
    %s164 = sphi 0, %s163
    %s178 = sphi 0, %s164
    %s182 = sphi 0, %s182
    %s184 = sphi 0, %s182
    %s185 = sphi 0, %s184
    %s199 = sphi 0, %s185
    %s203 = sphi 0, %s203
    %s205 = sphi 0, %s203
    %s206 = sphi 0, %s205
    %s220 = sphi 0, %s206
    %s224 = sphi 0, %s224
    %s226 = sphi 0, %s224
    %s227 = sphi 0, %s226
    %s241 = sphi 0, %s227
    %s245 = sphi 0, %s245
    %s247 = sphi 0, %s245
    %s248 = sphi 0, %s247
    %s262 = sphi 0, %s248
    %s266 = sphi 0, %s266
    %s268 = sphi 0, %s266
    %s269 = sphi 0, %s268
    %s283 = sphi 0, %s269
    %s287 = sphi 0, %s287
    %s289 = sphi 0, %s287
    %s290 = sphi 0, %s289
    %s304 = sphi 0, %s290
    %s308 = sphi 0, %s308
    %s310 = sphi 0, %s308
    %s311 = sphi 0, %s310
    %s325 = sphi 0, %s311
    %s331 = sphi 0, %s333
    %s334 = sphi 0, %s331
    %s335 = sphi 0, %s334
    %s351 = sphi 0, %s335
  $region4: #{dqn_forward.10} parent=0 // loop_header_branch
    %25 = sbr.rel (%p23) target = $region8
  $region5: #{dqn_forward.10} parent=0 // loop_body
    %s27 = ssub.s32 %s22, 1
    %s28 = ssub.s32 %s22, 2
    %s29 = sadd.s32 %s22, 1
    %s30 = ssub.s32 %s22, %s29
    %p31 = scmp.eq.s32.totalorder %s30, 0
    %s33 = sadd.s32 %s32, 1
    %s34 = scalar_select %p31, %s32, %s33
    %p37 = pneg %p31
    %p38 = scmp.eq.s32.totalorder %s22, 1
    %p39 = por %p37, %p38
    %p40 = scmp.ne.s32.totalorder %s32, %s35
    %p41 = scmp.eq.s32.totalorder %s22, 0
    %p42 = por %p40, %p41
    %p43 = scmp.ne.s32.totalorder %s32, %s35
    %p44 = scmp.eq.s32.totalorder %s27, 1
    %p45 = por %p43, %p44
    %p46 = scmp.ne.s32.totalorder %s35, %s36
    %p47 = scmp.eq.s32.totalorder %s27, 0
    %p48 = por %p46, %p47
    %p49 = scmp.ne.s32.totalorder %s35, %s36
    %p50 = scmp.eq.s32.totalorder %s28, 1
    %p51 = por %p49, %p50
    %p53 = scmp.ne.s32.totalorder %s36, %s52
    %p54 = scmp.eq.s32.totalorder %s28, 0
    %p55 = por %p53, %p54
    %s57 = sadd.s32 %s56, 1
    %p60 = scmp.eq.s32.totalorder %s22, 1
    %p61 = scmp.ne.s32.totalorder %s56, %s58
    %p62 = scmp.eq.s32.totalorder %s22, 0
    %p63 = por %p61, %p62
    %p64 = scmp.ne.s32.totalorder %s56, %s58
    %p65 = scmp.eq.s32.totalorder %s27, 1
    %p66 = por %p64, %p65
    %p67 = scmp.ne.s32.totalorder %s58, %s59
    %p68 = scmp.eq.s32.totalorder %s27, 0
    %p69 = por %p67, %p68
    %p70 = scmp.ne.s32.totalorder %s58, %s59
    %p71 = scmp.eq.s32.totalorder %s28, 1
    %p72 = por %p70, %p71
    %p74 = scmp.ne.s32.totalorder %s59, %s73
    %p75 = scmp.eq.s32.totalorder %s28, 0
    %p76 = por %p74, %p75
    %s78 = sadd.s32 %s77, 1
    %p81 = scmp.eq.s32.totalorder %s22, 1
    %p82 = scmp.ne.s32.totalorder %s77, %s79
    %p83 = scmp.eq.s32.totalorder %s22, 0
    %p84 = por %p82, %p83
    %p85 = scmp.ne.s32.totalorder %s77, %s79
    %p86 = scmp.eq.s32.totalorder %s27, 1
    %p87 = por %p85, %p86
    %p88 = scmp.ne.s32.totalorder %s79, %s80
    %p89 = scmp.eq.s32.totalorder %s27, 0
    %p90 = por %p88, %p89
    %p91 = scmp.ne.s32.totalorder %s79, %s80
    %p92 = scmp.eq.s32.totalorder %s28, 1
    %p93 = por %p91, %p92
    %p95 = scmp.ne.s32.totalorder %s80, %s94
    %p96 = scmp.eq.s32.totalorder %s28, 0
    %p97 = por %p95, %p96
    %s99 = sadd.s32 %s98, 1
    %p102 = scmp.eq.s32.totalorder %s22, 1
    %p103 = scmp.ne.s32.totalorder %s98, %s100
    %p104 = scmp.eq.s32.totalorder %s22, 0
    %p105 = por %p103, %p104
    %p106 = scmp.ne.s32.totalorder %s98, %s100
    %p107 = scmp.eq.s32.totalorder %s27, 1
    %p108 = por %p106, %p107
    %p109 = scmp.ne.s32.totalorder %s100, %s101
    %p110 = scmp.eq.s32.totalorder %s27, 0
    %p111 = por %p109, %p110
    %p112 = scmp.ne.s32.totalorder %s100, %s101
    %p113 = scmp.eq.s32.totalorder %s28, 1
    %p114 = por %p112, %p113
    %p116 = scmp.ne.s32.totalorder %s101, %s115
    %p117 = scmp.eq.s32.totalorder %s28, 0
    %p118 = por %p116, %p117
    %s120 = sadd.s32 %s119, 1
    %p123 = scmp.eq.s32.totalorder %s22, 1
    %p124 = scmp.ne.s32.totalorder %s119, %s121
    %p125 = scmp.eq.s32.totalorder %s22, 0
    %p126 = por %p124, %p125
    %p127 = scmp.ne.s32.totalorder %s119, %s121
    %p128 = scmp.eq.s32.totalorder %s27, 1
    %p129 = por %p127, %p128
    %p130 = scmp.ne.s32.totalorder %s121, %s122
    %p131 = scmp.eq.s32.totalorder %s27, 0
    %p132 = por %p130, %p131
    %p133 = scmp.ne.s32.totalorder %s121, %s122
    %p134 = scmp.eq.s32.totalorder %s28, 1
    %p135 = por %p133, %p134
    %p137 = scmp.ne.s32.totalorder %s122, %s136
    %p138 = scmp.eq.s32.totalorder %s28, 0
    %p139 = por %p137, %p138
    %s141 = sadd.s32 %s140, 1
    %p144 = scmp.eq.s32.totalorder %s22, 1
    %p145 = scmp.ne.s32.totalorder %s140, %s142
    %p146 = scmp.eq.s32.totalorder %s22, 0
    %p147 = por %p145, %p146
    %p148 = scmp.ne.s32.totalorder %s140, %s142
    %p149 = scmp.eq.s32.totalorder %s27, 1
    %p150 = por %p148, %p149
    %p151 = scmp.ne.s32.totalorder %s142, %s143
    %p152 = scmp.eq.s32.totalorder %s27, 0
    %p153 = por %p151, %p152
    %p154 = scmp.ne.s32.totalorder %s142, %s143
    %p155 = scmp.eq.s32.totalorder %s28, 1
    %p156 = por %p154, %p155
    %p158 = scmp.ne.s32.totalorder %s143, %s157
    %p159 = scmp.eq.s32.totalorder %s28, 0
    %p160 = por %p158, %p159
    %s162 = sadd.s32 %s161, 1
    %p165 = scmp.eq.s32.totalorder %s22, 1
    %p166 = scmp.ne.s32.totalorder %s161, %s163
    %p167 = scmp.eq.s32.totalorder %s22, 0
    %p168 = por %p166, %p167
    %p169 = scmp.ne.s32.totalorder %s161, %s163
    %p170 = scmp.eq.s32.totalorder %s27, 1
    %p171 = por %p169, %p170
    %p172 = scmp.ne.s32.totalorder %s163, %s164
    %p173 = scmp.eq.s32.totalorder %s27, 0
    %p174 = por %p172, %p173
    %p175 = scmp.ne.s32.totalorder %s163, %s164
    %p176 = scmp.eq.s32.totalorder %s28, 1
    %p177 = por %p175, %p176
    %p179 = scmp.ne.s32.totalorder %s164, %s178
    %p180 = scmp.eq.s32.totalorder %s28, 0
    %p181 = por %p179, %p180
    %s183 = sadd.s32 %s182, 1
    %p186 = scmp.eq.s32.totalorder %s22, 1
    %p187 = scmp.ne.s32.totalorder %s182, %s184
    %p188 = scmp.eq.s32.totalorder %s22, 0
    %p189 = por %p187, %p188
    %p190 = scmp.ne.s32.totalorder %s182, %s184
    %p191 = scmp.eq.s32.totalorder %s27, 1
    %p192 = por %p190, %p191
    %p193 = scmp.ne.s32.totalorder %s184, %s185
    %p194 = scmp.eq.s32.totalorder %s27, 0
    %p195 = por %p193, %p194
    %p196 = scmp.ne.s32.totalorder %s184, %s185
    %p197 = scmp.eq.s32.totalorder %s28, 1
    %p198 = por %p196, %p197
    %p200 = scmp.ne.s32.totalorder %s185, %s199
    %p201 = scmp.eq.s32.totalorder %s28, 0
    %p202 = por %p200, %p201
    %s204 = sadd.s32 %s203, 1
    %p207 = scmp.eq.s32.totalorder %s22, 1
    %p208 = scmp.ne.s32.totalorder %s203, %s205
    %p209 = scmp.eq.s32.totalorder %s22, 0
    %p210 = por %p208, %p209
    %p211 = scmp.ne.s32.totalorder %s203, %s205
    %p212 = scmp.eq.s32.totalorder %s27, 1
    %p213 = por %p211, %p212
    %p214 = scmp.ne.s32.totalorder %s205, %s206
    %p215 = scmp.eq.s32.totalorder %s27, 0
    %p216 = por %p214, %p215
    %p217 = scmp.ne.s32.totalorder %s205, %s206
    %p218 = scmp.eq.s32.totalorder %s28, 1
    %p219 = por %p217, %p218
    %p221 = scmp.ne.s32.totalorder %s206, %s220
    %p222 = scmp.eq.s32.totalorder %s28, 0
    %p223 = por %p221, %p222
    %s225 = sadd.s32 %s224, 1
    %p228 = scmp.eq.s32.totalorder %s22, 1
    %p229 = scmp.ne.s32.totalorder %s224, %s226
    %p230 = scmp.eq.s32.totalorder %s22, 0
    %p231 = por %p229, %p230
    %p232 = scmp.ne.s32.totalorder %s224, %s226
    %p233 = scmp.eq.s32.totalorder %s27, 1
    %p234 = por %p232, %p233
    %p235 = scmp.ne.s32.totalorder %s226, %s227
    %p236 = scmp.eq.s32.totalorder %s27, 0
    %p237 = por %p235, %p236
    %p238 = scmp.ne.s32.totalorder %s226, %s227
    %p239 = scmp.eq.s32.totalorder %s28, 1
    %p240 = por %p238, %p239
    %p242 = scmp.ne.s32.totalorder %s227, %s241
    %p243 = scmp.eq.s32.totalorder %s28, 0
    %p244 = por %p242, %p243
    %s246 = sadd.s32 %s245, 1
    %p249 = scmp.eq.s32.totalorder %s22, 1
    %p250 = scmp.ne.s32.totalorder %s245, %s247
    %p251 = scmp.eq.s32.totalorder %s22, 0
    %p252 = por %p250, %p251
    %p253 = scmp.ne.s32.totalorder %s245, %s247
    %p254 = scmp.eq.s32.totalorder %s27, 1
    %p255 = por %p253, %p254
    %p256 = scmp.ne.s32.totalorder %s247, %s248
    %p257 = scmp.eq.s32.totalorder %s27, 0
    %p258 = por %p256, %p257
    %p259 = scmp.ne.s32.totalorder %s247, %s248
    %p260 = scmp.eq.s32.totalorder %s28, 1
    %p261 = por %p259, %p260
    %p263 = scmp.ne.s32.totalorder %s248, %s262
    %p264 = scmp.eq.s32.totalorder %s28, 0
    %p265 = por %p263, %p264
    %s267 = sadd.s32 %s266, 1
    %p270 = scmp.eq.s32.totalorder %s22, 1
    %p271 = scmp.ne.s32.totalorder %s266, %s268
    %p272 = scmp.eq.s32.totalorder %s22, 0
    %p273 = por %p271, %p272
    %p274 = scmp.ne.s32.totalorder %s266, %s268
    %p275 = scmp.eq.s32.totalorder %s27, 1
    %p276 = por %p274, %p275
    %p277 = scmp.ne.s32.totalorder %s268, %s269
    %p278 = scmp.eq.s32.totalorder %s27, 0
    %p279 = por %p277, %p278
    %p280 = scmp.ne.s32.totalorder %s268, %s269
    %p281 = scmp.eq.s32.totalorder %s28, 1
    %p282 = por %p280, %p281
    %p284 = scmp.ne.s32.totalorder %s269, %s283
    %p285 = scmp.eq.s32.totalorder %s28, 0
    %p286 = por %p284, %p285
    %s288 = sadd.s32 %s287, 1
    %p291 = scmp.eq.s32.totalorder %s22, 1
    %p292 = scmp.ne.s32.totalorder %s287, %s289
    %p293 = scmp.eq.s32.totalorder %s22, 0
    %p294 = por %p292, %p293
    %p295 = scmp.ne.s32.totalorder %s287, %s289
    %p296 = scmp.eq.s32.totalorder %s27, 1
    %p297 = por %p295, %p296
    %p298 = scmp.ne.s32.totalorder %s289, %s290
    %p299 = scmp.eq.s32.totalorder %s27, 0
    %p300 = por %p298, %p299
    %p301 = scmp.ne.s32.totalorder %s289, %s290
    %p302 = scmp.eq.s32.totalorder %s28, 1
    %p303 = por %p301, %p302
    %p305 = scmp.ne.s32.totalorder %s290, %s304
    %p306 = scmp.eq.s32.totalorder %s28, 0
    %p307 = por %p305, %p306
    %s309 = sadd.s32 %s308, 1
    %p312 = scmp.eq.s32.totalorder %s22, 1
    %p313 = scmp.ne.s32.totalorder %s308, %s310
    %p314 = scmp.eq.s32.totalorder %s22, 0
    %p315 = por %p313, %p314
    %p316 = scmp.ne.s32.totalorder %s308, %s310
    %p317 = scmp.eq.s32.totalorder %s27, 1
    %p318 = por %p316, %p317
    %p319 = scmp.ne.s32.totalorder %s310, %s311
    %p320 = scmp.eq.s32.totalorder %s27, 0
    %p321 = por %p319, %p320
    %p322 = scmp.ne.s32.totalorder %s310, %s311
    %p323 = scmp.eq.s32.totalorder %s28, 1
    %p324 = por %p322, %p323
    %p326 = scmp.ne.s32.totalorder %s311, %s325
    %p327 = scmp.eq.s32.totalorder %s28, 0
    %p328 = por %p326, %p327
    %s329 = ssub.s32 %s22, %s29
    %p330 = scmp.eq.s32.totalorder %s329, 0
    %s332 = sadd.s32 %s331, 1
    %s333 = scalar_select %p330, %s331, %s332
    %p336 = pneg %p330
    %p337 = scmp.eq.s32.totalorder %s22, 1
    %p338 = por %p336, %p337
    %p339 = scmp.ne.s32.totalorder %s331, %s334
    %p340 = scmp.eq.s32.totalorder %s22, 0
    %p341 = por %p339, %p340
    %p342 = scmp.ne.s32.totalorder %s331, %s334
    %p343 = scmp.eq.s32.totalorder %s27, 1
    %p344 = por %p342, %p343
    %p345 = scmp.ne.s32.totalorder %s334, %s335
    %p346 = scmp.eq.s32.totalorder %s27, 0
    %p347 = por %p345, %p346
    %p348 = scmp.ne.s32.totalorder %s334, %s335
    %p349 = scmp.eq.s32.totalorder %s28, 1
    %p350 = por %p348, %p349
    %p352 = scmp.ne.s32.totalorder %s335, %s351
    %p353 = scmp.eq.s32.totalorder %s28, 0
    %p354 = por %p352, %p353
    %p355 = scmp.le.s32.totalorder 1, %s22
    %p356 = scmp.lt.s32.totalorder %s22, 3
    %p357 = pnand %p355, %p356
    %p358 = pneg %p357
    // Predicated region
    $region9: #{dqn_forward.10} parent=5 // pred_check
      _
    $region10: #{dqn_forward.10} parent=5 // pred_check_branch
      %360 = sbr.rel (%p357) target = $region12
    $region11: #{dqn_forward.10} parent=5 // pred_region
      %s361 = ssub.s32 %s22, 1
      // Predicated region
      $region13: #{dqn_forward.10} parent=11 // pred_check
        %p362 = pneg %p69
      $region14: #{dqn_forward.10} parent=11 // pred_check_branch
        %364 = sbr.rel (%p362) target = $region16
      $region15: #{dqn_forward.10} parent=11 // pred_region
        _
      $region16: #{dqn_forward.10} parent=11 // pred_fallthru
        _
      // Predicated region
      $region17: #{dqn_forward.10} parent=11 // pred_check
        %p365 = pneg %p90
      $region18: #{dqn_forward.10} parent=11 // pred_check_branch
        %367 = sbr.rel (%p365) target = $region20
      $region19: #{dqn_forward.10} parent=11 // pred_region
        _
      $region20: #{dqn_forward.10} parent=11 // pred_fallthru
        _
      // Predicated region
      $region21: #{dqn_forward.10} parent=11 // pred_check
        %p368 = pneg %p111
      $region22: #{dqn_forward.10} parent=11 // pred_check_branch
        %370 = sbr.rel (%p368) target = $region24
      $region23: #{dqn_forward.10} parent=11 // pred_region
        _
      $region24: #{dqn_forward.10} parent=11 // pred_fallthru
        _
      // Predicated region
      $region25: #{dqn_forward.10} parent=11 // pred_check
        %p371 = pneg %p132
      $region26: #{dqn_forward.10} parent=11 // pred_check_branch
        %373 = sbr.rel (%p371) target = $region28
      $region27: #{dqn_forward.10} parent=11 // pred_region
        _
      $region28: #{dqn_forward.10} parent=11 // pred_fallthru
        _
      // Predicated region
      $region29: #{dqn_forward.10} parent=11 // pred_check
        %p374 = pneg %p153
      $region30: #{dqn_forward.10} parent=11 // pred_check_branch
        %376 = sbr.rel (%p374) target = $region32
      $region31: #{dqn_forward.10} parent=11 // pred_region
        _
      $region32: #{dqn_forward.10} parent=11 // pred_fallthru
        _
      // Predicated region
      $region33: #{dqn_forward.10} parent=11 // pred_check
        %p377 = pneg %p174
      $region34: #{dqn_forward.10} parent=11 // pred_check_branch
        %379 = sbr.rel (%p377) target = $region36
      $region35: #{dqn_forward.10} parent=11 // pred_region
        _
      $region36: #{dqn_forward.10} parent=11 // pred_fallthru
        _
      // Predicated region
      $region37: #{dqn_forward.10} parent=11 // pred_check
        %p380 = pneg %p195
      $region38: #{dqn_forward.10} parent=11 // pred_check_branch
        %382 = sbr.rel (%p380) target = $region40
      $region39: #{dqn_forward.10} parent=11 // pred_region
        _
      $region40: #{dqn_forward.10} parent=11 // pred_fallthru
        _
      // Predicated region
      $region41: #{dqn_forward.10} parent=11 // pred_check
        %p383 = pneg %p216
      $region42: #{dqn_forward.10} parent=11 // pred_check_branch
        %385 = sbr.rel (%p383) target = $region44
      $region43: #{dqn_forward.10} parent=11 // pred_region
        _
      $region44: #{dqn_forward.10} parent=11 // pred_fallthru
        _
      // Predicated region
      $region45: #{dqn_forward.10} parent=11 // pred_check
        %p386 = pneg %p237
      $region46: #{dqn_forward.10} parent=11 // pred_check_branch
        %388 = sbr.rel (%p386) target = $region48
      $region47: #{dqn_forward.10} parent=11 // pred_region
        _
      $region48: #{dqn_forward.10} parent=11 // pred_fallthru
        _
      // Predicated region
      $region49: #{dqn_forward.10} parent=11 // pred_check
        %p389 = pneg %p258
      $region50: #{dqn_forward.10} parent=11 // pred_check_branch
        %391 = sbr.rel (%p389) target = $region52
      $region51: #{dqn_forward.10} parent=11 // pred_region
        _
      $region52: #{dqn_forward.10} parent=11 // pred_fallthru
        _
      // Predicated region
      $region53: #{dqn_forward.10} parent=11 // pred_check
        %p392 = pneg %p279
      $region54: #{dqn_forward.10} parent=11 // pred_check_branch
        %394 = sbr.rel (%p392) target = $region56
      $region55: #{dqn_forward.10} parent=11 // pred_region
        _
      $region56: #{dqn_forward.10} parent=11 // pred_fallthru
        _
      // Predicated region
      $region57: #{dqn_forward.10} parent=11 // pred_check
        %p395 = pneg %p300
      $region58: #{dqn_forward.10} parent=11 // pred_check_branch
        %397 = sbr.rel (%p395) target = $region60
      $region59: #{dqn_forward.10} parent=11 // pred_region
        _
      $region60: #{dqn_forward.10} parent=11 // pred_fallthru
        _
      // Predicated region
      $region61: #{dqn_forward.10} parent=11 // pred_check
        %p398 = pneg %p321
      $region62: #{dqn_forward.10} parent=11 // pred_check_branch
        %400 = sbr.rel (%p398) target = $region64
      $region63: #{dqn_forward.10} parent=11 // pred_region
        _
      $region64: #{dqn_forward.10} parent=11 // pred_fallthru
        _
    $region12: #{dqn_forward.10} parent=5 // pred_fallthru
      _
    %p401 = scmp.lt.s32.totalorder %s22, 2
    // Predicated region
    $region65: #{dqn_forward.10} parent=5 // pred_check
      %p402 = pneg %p401
    $region66: #{dqn_forward.10} parent=5 // pred_check_branch
      %404 = sbr.rel (%p402) target = $region68
    $region67: #{dqn_forward.10} parent=5 // pred_region
      // Predicated region
      $region69: #{dqn_forward.10} parent=67 // pred_check
        %p405 = pneg %p42
      $region70: #{dqn_forward.10} parent=67 // pred_check_branch
        %407 = sbr.rel (%p405) target = $region72
      $region71: #{dqn_forward.10} parent=67 // pred_region
        %p408 = scmp.lt.s32.totalorder %s22, 1
        %s409 = scalar_select %p408, %s22, 1
        %s410 = smul.addr %s409, 2
        %s411 = scalar_lea.vmem %s0, %s410
      $region72: #{dqn_forward.10} parent=67 // pred_fallthru
        _
    $region68: #{dqn_forward.10} parent=5 // pred_fallthru
      _
    %p412 = scmp.le.s32.totalorder 1, %s22
    %p413 = scmp.lt.s32.totalorder %s22, 3
    %p414 = pnand %p412, %p413
    %p415 = pneg %p414
    // Predicated region
    $region73: #{dqn_forward.10} parent=5 // pred_check
      _
    $region74: #{dqn_forward.10} parent=5 // pred_check_branch
      %417 = sbr.rel (%p414) target = $region76
    $region75: #{dqn_forward.10} parent=5 // pred_region
      %s418 = ssub.s32 %s22, 1
      %p419 = scmp.lt.s32.totalorder %s27, 1
      %s420 = scalar_select %p419, %s27, 1
      %s421 = smul.addr %s420, 2
      %s422 = scalar_lea.vmem %s0, %s421
      %p423 = pneg %p48
      %p424 = pneg %p45
      %p425 = pneg %p69
      %p426 = pneg %p66
      %p427 = pneg %p90
      %p428 = pneg %p87
      %p429 = pneg %p111
      %p430 = pneg %p108
      %p431 = pneg %p132
      %p432 = pneg %p129
      %p433 = pneg %p153
      %p434 = pneg %p150
      %p435 = pneg %p174
      %p436 = pneg %p171
      %p437 = pneg %p195
      %p438 = pneg %p192
      %p439 = pneg %p216
      %p440 = pneg %p213
      %p441 = pneg %p237
      %p442 = pneg %p234
      %p443 = pneg %p258
      %p444 = pneg %p255
      %p445 = pneg %p279
      %p446 = pneg %p276
      %p447 = pneg %p300
      %p448 = pneg %p297
      %p449 = pneg %p321
      %p450 = pneg %p318
      %p451 = pneg %p347
      %p452 = pneg %p344
      %p453 = scmp.lt.s32.totalorder %s27, 1
      %s454 = scalar_select %p453, %s27, 1
      %s455 = smul.addr %s454, 2
      %s456 = scalar_lea.vmem %s14, %s455
      %p457 = scmp.lt.s32.totalorder %s27, 1
      %s458 = scalar_select %p457, %s27, 1
      %s459 = smul.addr %s458, 2
      %s460 = scalar_lea.vmem %s0, %s459
      %p461 = scmp.lt.s32.totalorder %s27, 1
      %s462 = scalar_select %p461, %s27, 1
      %s463 = smul.addr %s462, 2
      %s464 = scalar_lea.vmem %s14, %s463
      %v465 = vld [vmem:[%s460] sm:$0x3]
      %v466 = vunpack.c.l.bf16 %v465
      %vm467 = vcmask 519168
      %v468 = vsel %vm467, %v466, 0.0
      %v469 = vrot.slane %v468, 4
      %v470 = vadd.f32 %v468, %v469
      %v471 = vrot.slane %v470, 2
      %v472 = vadd.f32 %v470, %v471
      %v473 = vrot.slane %v472, 1
      %v474 = vadd.f32 %v472, %v473
      %v475 = vmul.f32 %v474, 0.25
      %v476 = vld [vmem:[%s1] sm:$0xff]
      %v477 = vld [vmem:[%s1 + $0x8] sm:$0xff]
      %v478 = vld [vmem:[%s1 + $0x10] sm:$0xff]
      %v479 = vld [vmem:[%s1 + $0x18] sm:$0xff]
      %v480 = vld [vmem:[%s1 + $0x20] sm:$0xff]
      %v481 = vld [vmem:[%s1 + $0x28] sm:$0xff]
      %v482 = vld [vmem:[%s1 + $0x30] sm:$0xff]
      %v483 = vld [vmem:[%s1 + $0x38] sm:$0xff]
      %v484 = vld [vmem:[%s2] sm:$0x1]
      %vm485 = vcmask 523264
      %v487 = vsel %vm485, %v475, 0
      %489 = vmatprep.subr.mxu0 0.0
      %490 = vmatpush1.msra.mxu0 0.0
      %491 = vmatprep.subr.mxu0 0.0
      %492 = vmatpush1.msra.mxu0 0.0
      %493 = vmatprep.subr.mxu0 0.0
      %494 = vmatpush1.msra.mxu0 0.0
      %495 = vmatprep.subr.mxu0 0.0
      %496 = vmatpush1.msra.mxu0 0.0
      %497 = vmatprep.subr.mxu0 0.0
      %498 = vmatpush1.msra.mxu0 0.0
      %499 = vmatprep.subr.mxu0 0.0
      %500 = vmatpush1.msra.mxu0 0.0
      %501 = vmatprep.subr.mxu0 0.0
      %502 = vmatpush1.msra.mxu0 0.0
      %503 = vmatprep.subr.mxu0 0.0
      %504 = vmatpush1.msra.mxu0 0.0
      %505 = vmatprep.subr.mxu0 0.0
      %506 = vmatpush1.msra.mxu0 %v483
      %507 = vmatprep.subr.mxu0 0.0
      %508 = vmatpush1.msra.mxu0 %v482
      %509 = vmatprep.subr.mxu0 0.0
      %510 = vmatpush1.msra.mxu0 %v481
      %511 = vmatprep.subr.mxu0 0.0
      %512 = vmatpush1.msra.mxu0 %v480
      %513 = vmatprep.subr.mxu0 0.0
      %514 = vmatpush1.msra.mxu0 %v479
      %515 = vmatprep.subr.mxu0 0.0
      %516 = vmatpush1.msra.mxu0 %v478
      %517 = vmatprep.subr.mxu0 0.0
      %518 = vmatpush1.msra.mxu0 %v477
      %519 = vmatprep.subr.mxu0 0.0
      %520 = vmatpush1.msra.mxu0 %v476
      %521 = vmatprep.subr.mxu0 0.0
      %522 = vmatpush2.msra.mxu0 0.0
      %523 = vmatprep.subr.mxu0 0.0
      %524 = vmatpush2.msra.mxu0 0.0
      %525 = vmatprep.subr.mxu0 0.0
      %526 = vmatpush2.msra.mxu0 0.0
      %527 = vmatprep.subr.mxu0 0.0
      %528 = vmatpush2.msra.mxu0 0.0
      %529 = vmatprep.subr.mxu0 0.0
      %530 = vmatpush2.msra.mxu0 0.0
      %531 = vmatprep.subr.mxu0 0.0
      %532 = vmatpush2.msra.mxu0 0.0
      %533 = vmatprep.subr.mxu0 0.0
      %534 = vmatpush2.msra.mxu0 0.0
      %535 = vmatprep.subr.mxu0 0.0
      %536 = vmatpush2.msra.mxu0 0.0
      %537 = vmatprep.subr.mxu0 0.0
      %538 = vmatpush2.msra.mxu0 0.0
      %539 = vmatprep.subr.mxu0 0.0
      %540 = vmatpush2.msra.mxu0 0.0
      %541 = vmatprep.subr.mxu0 0.0
      %542 = vmatpush2.msra.mxu0 0.0
      %543 = vmatprep.subr.mxu0 0.0
      %544 = vmatpush2.msra.mxu0 0.0
      %545 = vmatprep.subr.mxu0 0.0
      %546 = vmatpush2.msra.mxu0 0.0
      %547 = vmatprep.subr.mxu0 0.0
      %548 = vmatpush2.msra.mxu0 0.0
      %549 = vmatprep.subr.mxu0 0.0
      %550 = vmatpush2.msra.mxu0 0.0
      %551 = vmatprep.subr.mxu0 0.0
      %552 = vmatpush2.msra.mxu0 0.0
      %553 = vmatprep.mubr.f32.mxu0 0.0
      %554 = vmatmul.mubr.f32.gmra.mxu0 %v487
      %v555 = vpop.f32.mrf.mxu0
      %v556 = vadd.f32 %v484, %v555
      %v557 = vpop.f32.mrf.mxu0
      %558 = vdwg.mxu0
      %v559 = vmax.f32 %v556, 0.0
      %v560 = vld [vmem:[%s3] sm:$0xf]
      %v561 = vld [vmem:[%s4] sm:$0x1]
      %vm562 = vcmask 31744
      %v564 = vsel %vm562, %v559, 0
      %vm566 = vcmask 1043456
      %v568 = vsel %vm566, %v560, 0
      %570 = vmatprep.subr.mxu0 0.0
      %571 = vmatpush1.msra.mxu0 0.0
      %572 = vmatprep.subr.mxu0 0.0
      %573 = vmatpush1.msra.mxu0 0.0
      %574 = vmatprep.subr.mxu0 0.0
      %575 = vmatpush1.msra.mxu0 0.0
      %576 = vmatprep.subr.mxu0 0.0
      %577 = vmatpush1.msra.mxu0 0.0
      %578 = vmatprep.subr.mxu0 0.0
      %579 = vmatpush1.msra.mxu0 0.0
      %580 = vmatprep.subr.mxu0 0.0
      %581 = vmatpush1.msra.mxu0 0.0
      %582 = vmatprep.subr.mxu0 0.0
      %583 = vmatpush1.msra.mxu0 0.0
      %584 = vmatprep.subr.mxu0 0.0
      %585 = vmatpush1.msra.mxu0 0.0
      %586 = vmatprep.subr.mxu0 0.0
      %587 = vmatpush1.msra.mxu0 0.0
      %588 = vmatprep.subr.mxu0 0.0
      %589 = vmatpush1.msra.mxu0 0.0
      %590 = vmatprep.subr.mxu0 0.0
      %591 = vmatpush1.msra.mxu0 0.0
      %592 = vmatprep.subr.mxu0 0.0
      %593 = vmatpush1.msra.mxu0 0.0
      %594 = vmatprep.subr.mxu0 0.0
      %595 = vmatpush1.msra.mxu0 0.0
      %596 = vmatprep.subr.mxu0 0.0
      %597 = vmatpush1.msra.mxu0 0.0
      %598 = vmatprep.subr.mxu0 0.0
      %599 = vmatpush1.msra.mxu0 0.0
      %600 = vmatprep.subr.mxu0 0.0
      %601 = vmatpush1.msra.mxu0 %v568
      %602 = vmatprep.subr.mxu0 0.0
      %603 = vmatpush2.msra.mxu0 0.0
      %604 = vmatprep.subr.mxu0 0.0
      %605 = vmatpush2.msra.mxu0 0.0
      %606 = vmatprep.subr.mxu0 0.0
      %607 = vmatpush2.msra.mxu0 0.0
      %608 = vmatprep.subr.mxu0 0.0
      %609 = vmatpush2.msra.mxu0 0.0
      %610 = vmatprep.subr.mxu0 0.0
      %611 = vmatpush2.msra.mxu0 0.0
      %612 = vmatprep.subr.mxu0 0.0
      %613 = vmatpush2.msra.mxu0 0.0
      %614 = vmatprep.subr.mxu0 0.0
      %615 = vmatpush2.msra.mxu0 0.0
      %616 = vmatprep.subr.mxu0 0.0
      %617 = vmatpush2.msra.mxu0 0.0
      %618 = vmatprep.subr.mxu0 0.0
      %619 = vmatpush2.msra.mxu0 0.0
      %620 = vmatprep.subr.mxu0 0.0
      %621 = vmatpush2.msra.mxu0 0.0
      %622 = vmatprep.subr.mxu0 0.0
      %623 = vmatpush2.msra.mxu0 0.0
      %624 = vmatprep.subr.mxu0 0.0
      %625 = vmatpush2.msra.mxu0 0.0
      %626 = vmatprep.subr.mxu0 0.0
      %627 = vmatpush2.msra.mxu0 0.0
      %628 = vmatprep.subr.mxu0 0.0
      %629 = vmatpush2.msra.mxu0 0.0
      %630 = vmatprep.subr.mxu0 0.0
      %631 = vmatpush2.msra.mxu0 0.0
      %632 = vmatprep.subr.mxu0 0.0
      %633 = vmatpush2.msra.mxu0 0.0
      %634 = vmatprep.mubr.f32.mxu0 0.0
      %635 = vmatmul.mubr.f32.gmra.mxu0 %v564
      %v636 = vpop.f32.mrf.mxu0
      %v637 = vadd.f32 %v561, %v636
      %v638 = vpop.f32.mrf.mxu0
      %639 = vdwg.mxu0
      %v640 = vld [vmem:[%s5] sm:$0xff]
      %v641 = vld [vmem:[%s5 + $0x8] sm:$0xff]
      %v642 = vld [vmem:[%s5 + $0x10] sm:$0xff]
      %v643 = vld [vmem:[%s5 + $0x18] sm:$0xff]
      %v644 = vld [vmem:[%s5 + $0x20] sm:$0xff]
      %v645 = vld [vmem:[%s5 + $0x28] sm:$0xff]
      %v646 = vld [vmem:[%s5 + $0x30] sm:$0xff]
      %v647 = vld [vmem:[%s5 + $0x38] sm:$0xff]
      %v648 = vld [vmem:[%s6] sm:$0x1]
      %v650 = vlaneseq
      %v651 = vshrl.u32 %v650, 7
      %v652 = vsub.s32 0, %v651
      %v653 = vrot.slane %v648, %v652
      %v656 = vsel %vm485, %v466, 0
      %658 = vmatprep.subr.mxu0 0.0
      %659 = vmatpush1.msra.mxu0 0.0
      %660 = vmatprep.subr.mxu0 0.0
      %661 = vmatpush1.msra.mxu0 0.0
      %662 = vmatprep.subr.mxu0 0.0
      %663 = vmatpush1.msra.mxu0 0.0
      %664 = vmatprep.subr.mxu0 0.0
      %665 = vmatpush1.msra.mxu0 0.0
      %666 = vmatprep.subr.mxu0 0.0
      %667 = vmatpush1.msra.mxu0 0.0
      %668 = vmatprep.subr.mxu0 0.0
      %669 = vmatpush1.msra.mxu0 0.0
      %670 = vmatprep.subr.mxu0 0.0
      %671 = vmatpush1.msra.mxu0 0.0
      %672 = vmatprep.subr.mxu0 0.0
      %673 = vmatpush1.msra.mxu0 0.0
      %674 = vmatprep.subr.mxu0 0.0
      %675 = vmatpush1.msra.mxu0 %v647
      %676 = vmatprep.subr.mxu0 0.0
      %677 = vmatpush1.msra.mxu0 %v646
      %678 = vmatprep.subr.mxu0 0.0
      %679 = vmatpush1.msra.mxu0 %v645
      %680 = vmatprep.subr.mxu0 0.0
      %681 = vmatpush1.msra.mxu0 %v644
      %682 = vmatprep.subr.mxu0 0.0
      %683 = vmatpush1.msra.mxu0 %v643
      %684 = vmatprep.subr.mxu0 0.0
      %685 = vmatpush1.msra.mxu0 %v642
      %686 = vmatprep.subr.mxu0 0.0
      %687 = vmatpush1.msra.mxu0 %v641
      %688 = vmatprep.subr.mxu0 0.0
      %689 = vmatpush1.msra.mxu0 %v640
      %690 = vmatprep.subr.mxu0 0.0
      %691 = vmatpush2.msra.mxu0 0.0
      %692 = vmatprep.subr.mxu0 0.0
      %693 = vmatpush2.msra.mxu0 0.0
      %694 = vmatprep.subr.mxu0 0.0
      %695 = vmatpush2.msra.mxu0 0.0
      %696 = vmatprep.subr.mxu0 0.0
      %697 = vmatpush2.msra.mxu0 0.0
      %698 = vmatprep.subr.mxu0 0.0
      %699 = vmatpush2.msra.mxu0 0.0
      %700 = vmatprep.subr.mxu0 0.0
      %701 = vmatpush2.msra.mxu0 0.0
      %702 = vmatprep.subr.mxu0 0.0
      %703 = vmatpush2.msra.mxu0 0.0
      %704 = vmatprep.subr.mxu0 0.0
      %705 = vmatpush2.msra.mxu0 0.0
      %706 = vmatprep.subr.mxu0 0.0
      %707 = vmatpush2.msra.mxu0 0.0
      %708 = vmatprep.subr.mxu0 0.0
      %709 = vmatpush2.msra.mxu0 0.0
      %710 = vmatprep.subr.mxu0 0.0
      %711 = vmatpush2.msra.mxu0 0.0
      %712 = vmatprep.subr.mxu0 0.0
      %713 = vmatpush2.msra.mxu0 0.0
      %714 = vmatprep.subr.mxu0 0.0
      %715 = vmatpush2.msra.mxu0 0.0
      %716 = vmatprep.subr.mxu0 0.0
      %717 = vmatpush2.msra.mxu0 0.0
      %718 = vmatprep.subr.mxu0 0.0
      %719 = vmatpush2.msra.mxu0 0.0
      %720 = vmatprep.subr.mxu0 0.0
      %721 = vmatpush2.msra.mxu0 0.0
      %722 = vmatprep.mubr.f32.mxu0 0.0
      %723 = vmatmul.mubr.f32.gmra.mxu0 %v656
      %v724 = vpop.f32.mrf.mxu0
      %v725 = vadd.f32 %v653, %v724
      %v726 = vpop.f32.mrf.mxu0
      %727 = vdwg.mxu0
      %v728 = vmax.f32 %v725, 0.0
      %v729 = vld [vmem:[%s9] sm:$0x1]
      %v731 = vlaneseq
      %v732 = vshrl.u32 %v731, 7
      %v733 = vsub.s32 0, %v732
      %v734 = vrot.slane %v729, %v733
      %v736 = vadd.f32 %v734, 0.0
      %v737 = vld [vmem:[%s7] sm:$0xf]
      %v739 = vsel %vm562, %v737, 0
      %v742 = vsel %vm566, %v728, 0
      %744 = vmatprep.subr.mxu0 0.0
      %745 = vmatpush1.msra.mxu0 0.0
      %746 = vmatprep.subr.mxu0 0.0
      %747 = vmatpush1.msra.mxu0 0.0
      %748 = vmatprep.subr.mxu0 0.0
      %749 = vmatpush1.msra.mxu0 0.0
      %750 = vmatprep.subr.mxu0 0.0
      %751 = vmatpush1.msra.mxu0 0.0
      %752 = vmatprep.subr.mxu0 0.0
      %753 = vmatpush1.msra.mxu0 0.0
      %754 = vmatprep.subr.mxu0 0.0
      %755 = vmatpush1.msra.mxu0 0.0
      %756 = vmatprep.subr.mxu0 0.0
      %757 = vmatpush1.msra.mxu0 0.0
      %758 = vmatprep.subr.mxu0 0.0
      %759 = vmatpush1.msra.mxu0 0.0
      %760 = vmatprep.subr.mxu0 0.0
      %761 = vmatpush1.msra.mxu0 0.0
      %762 = vmatprep.subr.mxu0 0.0
      %763 = vmatpush1.msra.mxu0 0.0
      %764 = vmatprep.subr.mxu0 0.0
      %765 = vmatpush1.msra.mxu0 0.0
      %766 = vmatprep.subr.mxu0 0.0
      %767 = vmatpush1.msra.mxu0 0.0
      %768 = vmatprep.subr.mxu0 0.0
      %769 = vmatpush1.msra.mxu0 0.0
      %770 = vmatprep.subr.mxu0 0.0
      %771 = vmatpush1.msra.mxu0 0.0
      %772 = vmatprep.subr.mxu0 0.0
      %773 = vmatpush1.msra.mxu0 0.0
      %774 = vmatprep.subr.mxu0 0.0
      %775 = vmatpush1.msra.mxu0 %v742
      %776 = vmatprep.subr.mxu0 0.0
      %777 = vmatpush2.msra.mxu0 0.0
      %778 = vmatprep.subr.mxu0 0.0
      %779 = vmatpush2.msra.mxu0 0.0
      %780 = vmatprep.subr.mxu0 0.0
      %781 = vmatpush2.msra.mxu0 0.0
      %782 = vmatprep.subr.mxu0 0.0
      %783 = vmatpush2.msra.mxu0 0.0
      %784 = vmatprep.subr.mxu0 0.0
      %785 = vmatpush2.msra.mxu0 0.0
      %786 = vmatprep.subr.mxu0 0.0
      %787 = vmatpush2.msra.mxu0 0.0
      %788 = vmatprep.subr.mxu0 0.0
      %789 = vmatpush2.msra.mxu0 0.0
      %790 = vmatprep.subr.mxu0 0.0
      %791 = vmatpush2.msra.mxu0 0.0
      %792 = vmatprep.subr.mxu0 0.0
      %793 = vmatpush2.msra.mxu0 0.0
      %794 = vmatprep.subr.mxu0 0.0
      %795 = vmatpush2.msra.mxu0 0.0
      %796 = vmatprep.subr.mxu0 0.0
      %797 = vmatpush2.msra.mxu0 0.0
      %798 = vmatprep.subr.mxu0 0.0
      %799 = vmatpush2.msra.mxu0 0.0
      %800 = vmatprep.subr.mxu0 0.0
      %801 = vmatpush2.msra.mxu0 0.0
      %802 = vmatprep.subr.mxu0 0.0
      %803 = vmatpush2.msra.mxu0 0.0
      %804 = vmatprep.subr.mxu0 0.0
      %805 = vmatpush2.msra.mxu0 0.0
      %806 = vmatprep.subr.mxu0 0.0
      %807 = vmatpush2.msra.mxu0 0.0
      %808 = vmatprep.mubr.f32.mxu0 0.0
      %809 = vmatmul.mubr.f32.gmra.mxu0 %v739
      %v810 = vpop.f32.mrf.mxu0
      %v811 = vadd.f32 0.0, %v810
      %v812 = vpop.f32.mrf.mxu0
      %813 = vdwg.mxu0
      %v814 = vld [vmem:[%s8] sm:$0xf]
      %v816 = vsel %vm562, %v811, 0
      %v819 = vsel %vm566, %v814, 0
      %821 = vmatprep.subr.mxu0 0.0
      %822 = vmatpush1.msra.mxu0 0.0
      %823 = vmatprep.subr.mxu0 0.0
      %824 = vmatpush1.msra.mxu0 0.0
      %825 = vmatprep.subr.mxu0 0.0
      %826 = vmatpush1.msra.mxu0 0.0
      %827 = vmatprep.subr.mxu0 0.0
      %828 = vmatpush1.msra.mxu0 0.0
      %829 = vmatprep.subr.mxu0 0.0
      %830 = vmatpush1.msra.mxu0 0.0
      %831 = vmatprep.subr.mxu0 0.0
      %832 = vmatpush1.msra.mxu0 0.0
      %833 = vmatprep.subr.mxu0 0.0
      %834 = vmatpush1.msra.mxu0 0.0
      %835 = vmatprep.subr.mxu0 0.0
      %836 = vmatpush1.msra.mxu0 0.0
      %837 = vmatprep.subr.mxu0 0.0
      %838 = vmatpush1.msra.mxu0 0.0
      %839 = vmatprep.subr.mxu0 0.0
      %840 = vmatpush1.msra.mxu0 0.0
      %841 = vmatprep.subr.mxu0 0.0
      %842 = vmatpush1.msra.mxu0 0.0
      %843 = vmatprep.subr.mxu0 0.0
      %844 = vmatpush1.msra.mxu0 0.0
      %845 = vmatprep.subr.mxu0 0.0
      %846 = vmatpush1.msra.mxu0 0.0
      %847 = vmatprep.subr.mxu0 0.0
      %848 = vmatpush1.msra.mxu0 0.0
      %849 = vmatprep.subr.mxu0 0.0
      %850 = vmatpush1.msra.mxu0 0.0
      %851 = vmatprep.subr.mxu0 0.0
      %852 = vmatpush1.msra.mxu0 %v819
      %853 = vmatprep.subr.mxu0 0.0
      %854 = vmatpush2.msra.mxu0 0.0
      %855 = vmatprep.subr.mxu0 0.0
      %856 = vmatpush2.msra.mxu0 0.0
      %857 = vmatprep.subr.mxu0 0.0
      %858 = vmatpush2.msra.mxu0 0.0
      %859 = vmatprep.subr.mxu0 0.0
      %860 = vmatpush2.msra.mxu0 0.0
      %861 = vmatprep.subr.mxu0 0.0
      %862 = vmatpush2.msra.mxu0 0.0
      %863 = vmatprep.subr.mxu0 0.0
      %864 = vmatpush2.msra.mxu0 0.0
      %865 = vmatprep.subr.mxu0 0.0
      %866 = vmatpush2.msra.mxu0 0.0
      %867 = vmatprep.subr.mxu0 0.0
      %868 = vmatpush2.msra.mxu0 0.0
      %869 = vmatprep.subr.mxu0 0.0
      %870 = vmatpush2.msra.mxu0 0.0
      %871 = vmatprep.subr.mxu0 0.0
      %872 = vmatpush2.msra.mxu0 0.0
      %873 = vmatprep.subr.mxu0 0.0
      %874 = vmatpush2.msra.mxu0 0.0
      %875 = vmatprep.subr.mxu0 0.0
      %876 = vmatpush2.msra.mxu0 0.0
      %877 = vmatprep.subr.mxu0 0.0
      %878 = vmatpush2.msra.mxu0 0.0
      %879 = vmatprep.subr.mxu0 0.0
      %880 = vmatpush2.msra.mxu0 0.0
      %881 = vmatprep.subr.mxu0 0.0
      %882 = vmatpush2.msra.mxu0 0.0
      %883 = vmatprep.subr.mxu0 0.0
      %884 = vmatpush2.msra.mxu0 0.0
      %885 = vmatprep.mubr.f32.mxu0 0.0
      %886 = vmatmul.mubr.f32.gmra.mxu0 %v816
      %v887 = vpop.f32.mrf.mxu0
      %v888 = vadd.f32 0.0, %v887
      %v889 = vpop.f32.mrf.mxu0
      %890 = vdwg.mxu0
      %v891 = vadd.f32 %v736, %v888
      %v892 = vmax.f32 %v891, 0.0
      %v893 = vld [vmem:[%s11] sm:$0x1]
      %v895 = vlaneseq
      %v896 = vshrl.u32 %v895, 7
      %v897 = vsub.s32 0, %v896
      %v898 = vrot.slane %v893, %v897
      %v900 = vadd.f32 %v898, 0.0
      %v902 = vsel %vm566, %v892, 0
      %904 = vmatprep.subr.mxu0 0.0
      %905 = vmatpush1.msra.mxu0 0.0
      %906 = vmatprep.subr.mxu0 0.0
      %907 = vmatpush1.msra.mxu0 0.0
      %908 = vmatprep.subr.mxu0 0.0
      %909 = vmatpush1.msra.mxu0 0.0
      %910 = vmatprep.subr.mxu0 0.0
      %911 = vmatpush1.msra.mxu0 0.0
      %912 = vmatprep.subr.mxu0 0.0
      %913 = vmatpush1.msra.mxu0 0.0
      %914 = vmatprep.subr.mxu0 0.0
      %915 = vmatpush1.msra.mxu0 0.0
      %916 = vmatprep.subr.mxu0 0.0
      %917 = vmatpush1.msra.mxu0 0.0
      %918 = vmatprep.subr.mxu0 0.0
      %919 = vmatpush1.msra.mxu0 0.0
      %920 = vmatprep.subr.mxu0 0.0
      %921 = vmatpush1.msra.mxu0 0.0
      %922 = vmatprep.subr.mxu0 0.0
      %923 = vmatpush1.msra.mxu0 0.0
      %924 = vmatprep.subr.mxu0 0.0
      %925 = vmatpush1.msra.mxu0 0.0
      %926 = vmatprep.subr.mxu0 0.0
      %927 = vmatpush1.msra.mxu0 0.0
      %928 = vmatprep.subr.mxu0 0.0
      %929 = vmatpush1.msra.mxu0 0.0
      %930 = vmatprep.subr.mxu0 0.0
      %931 = vmatpush1.msra.mxu0 0.0
      %932 = vmatprep.subr.mxu0 0.0
      %933 = vmatpush1.msra.mxu0 0.0
      %934 = vmatprep.subr.mxu0 0.0
      %935 = vmatpush1.msra.mxu0 %v902
      %936 = vmatprep.subr.mxu0 0.0
      %937 = vmatpush2.msra.mxu0 0.0
      %938 = vmatprep.subr.mxu0 0.0
      %939 = vmatpush2.msra.mxu0 0.0
      %940 = vmatprep.subr.mxu0 0.0
      %941 = vmatpush2.msra.mxu0 0.0
      %942 = vmatprep.subr.mxu0 0.0
      %943 = vmatpush2.msra.mxu0 0.0
      %944 = vmatprep.subr.mxu0 0.0
      %945 = vmatpush2.msra.mxu0 0.0
      %946 = vmatprep.subr.mxu0 0.0
      %947 = vmatpush2.msra.mxu0 0.0
      %948 = vmatprep.subr.mxu0 0.0
      %949 = vmatpush2.msra.mxu0 0.0
      %950 = vmatprep.subr.mxu0 0.0
      %951 = vmatpush2.msra.mxu0 0.0
      %952 = vmatprep.subr.mxu0 0.0
      %953 = vmatpush2.msra.mxu0 0.0
      %954 = vmatprep.subr.mxu0 0.0
      %955 = vmatpush2.msra.mxu0 0.0
      %956 = vmatprep.subr.mxu0 0.0
      %957 = vmatpush2.msra.mxu0 0.0
      %958 = vmatprep.subr.mxu0 0.0
      %959 = vmatpush2.msra.mxu0 0.0
      %960 = vmatprep.subr.mxu0 0.0
      %961 = vmatpush2.msra.mxu0 0.0
      %962 = vmatprep.subr.mxu0 0.0
      %963 = vmatpush2.msra.mxu0 0.0
      %964 = vmatprep.subr.mxu0 0.0
      %965 = vmatpush2.msra.mxu0 0.0
      %966 = vmatprep.subr.mxu0 0.0
      %967 = vmatpush2.msra.mxu0 0.0
      %968 = vmatprep.mubr.f32.mxu0 0.0
      %969 = vmatmul.mubr.f32.gmra.mxu0 %v739
      %v970 = vpop.f32.mrf.mxu0
      %v971 = vadd.f32 0.0, %v970
      %v972 = vpop.f32.mrf.mxu0
      %973 = vdwg.mxu0
      %v974 = vld [vmem:[%s10] sm:$0xf]
      %v976 = vsel %vm562, %v971, 0
      %v979 = vsel %vm566, %v974, 0
      %981 = vmatprep.subr.mxu0 0.0
      %982 = vmatpush1.msra.mxu0 0.0
      %983 = vmatprep.subr.mxu0 0.0
      %984 = vmatpush1.msra.mxu0 0.0
      %985 = vmatprep.subr.mxu0 0.0
      %986 = vmatpush1.msra.mxu0 0.0
      %987 = vmatprep.subr.mxu0 0.0
      %988 = vmatpush1.msra.mxu0 0.0
      %989 = vmatprep.subr.mxu0 0.0
      %990 = vmatpush1.msra.mxu0 0.0
      %991 = vmatprep.subr.mxu0 0.0
      %992 = vmatpush1.msra.mxu0 0.0
      %993 = vmatprep.subr.mxu0 0.0
      %994 = vmatpush1.msra.mxu0 0.0
      %995 = vmatprep.subr.mxu0 0.0
      %996 = vmatpush1.msra.mxu0 0.0
      %997 = vmatprep.subr.mxu0 0.0
      %998 = vmatpush1.msra.mxu0 0.0
      %999 = vmatprep.subr.mxu0 0.0
      %1000 = vmatpush1.msra.mxu0 0.0
      %1001 = vmatprep.subr.mxu0 0.0
      %1002 = vmatpush1.msra.mxu0 0.0
      %1003 = vmatprep.subr.mxu0 0.0
      %1004 = vmatpush1.msra.mxu0 0.0
      %1005 = vmatprep.subr.mxu0 0.0
      %1006 = vmatpush1.msra.mxu0 0.0
      %1007 = vmatprep.subr.mxu0 0.0
      %1008 = vmatpush1.msra.mxu0 0.0
      %1009 = vmatprep.subr.mxu0 0.0
      %1010 = vmatpush1.msra.mxu0 0.0
      %1011 = vmatprep.subr.mxu0 0.0
      %1012 = vmatpush1.msra.mxu0 %v979
      %1013 = vmatprep.subr.mxu0 0.0
      %1014 = vmatpush2.msra.mxu0 0.0
      %1015 = vmatprep.subr.mxu0 0.0
      %1016 = vmatpush2.msra.mxu0 0.0
      %1017 = vmatprep.subr.mxu0 0.0
      %1018 = vmatpush2.msra.mxu0 0.0
      %1019 = vmatprep.subr.mxu0 0.0
      %1020 = vmatpush2.msra.mxu0 0.0
      %1021 = vmatprep.subr.mxu0 0.0
      %1022 = vmatpush2.msra.mxu0 0.0
      %1023 = vmatprep.subr.mxu0 0.0
      %1024 = vmatpush2.msra.mxu0 0.0
      %1025 = vmatprep.subr.mxu0 0.0
      %1026 = vmatpush2.msra.mxu0 0.0
      %1027 = vmatprep.subr.mxu0 0.0
      %1028 = vmatpush2.msra.mxu0 0.0
      %1029 = vmatprep.subr.mxu0 0.0
      %1030 = vmatpush2.msra.mxu0 0.0
      %1031 = vmatprep.subr.mxu0 0.0
      %1032 = vmatpush2.msra.mxu0 0.0
      %1033 = vmatprep.subr.mxu0 0.0
      %1034 = vmatpush2.msra.mxu0 0.0
      %1035 = vmatprep.subr.mxu0 0.0
      %1036 = vmatpush2.msra.mxu0 0.0
      %1037 = vmatprep.subr.mxu0 0.0
      %1038 = vmatpush2.msra.mxu0 0.0
      %1039 = vmatprep.subr.mxu0 0.0
      %1040 = vmatpush2.msra.mxu0 0.0
      %1041 = vmatprep.subr.mxu0 0.0
      %1042 = vmatpush2.msra.mxu0 0.0
      %1043 = vmatprep.subr.mxu0 0.0
      %1044 = vmatpush2.msra.mxu0 0.0
      %1045 = vmatprep.mubr.f32.mxu0 0.0
      %1046 = vmatmul.mubr.f32.gmra.mxu0 %v976
      %v1047 = vpop.f32.mrf.mxu0
      %v1048 = vadd.f32 0.0, %v1047
      %v1049 = vpop.f32.mrf.mxu0
      %1050 = vdwg.mxu0
      %v1051 = vadd.f32 %v900, %v1048
      %v1052 = vmax.f32 %v1051, 0.0
      %v1053 = vld [vmem:[%s12] sm:$0x1]
      %v1055 = vlaneseq
      %v1056 = vshrl.u32 %v1055, 7
      %v1057 = vsub.s32 0, %v1056
      %v1058 = vrot.slane %v1053, %v1057
      %v1060 = vmul.f32 %v1052, %v1058
      %vm1061 = vcmask 27648
      %v1062 = vsel %vm1061, %v1060, 0.0
      %1063 = vadd.xlane.f32.xlu0 %v1062
      %v1064 = vpop.xlane.xlu0 %1063
      %v1065 = vld [vmem:[#allocation2] sm:$0x1]
      %v1067 = vlaneseq
      %v1068 = vshrl.u32 %v1067, 7
      %v1069 = vsub.s32 0, %v1068
      %v1070 = vrot.slane %v1065, %v1069
      %v1072 = vadd.f32 %v1064, %v1070
      %v1073 = vlaneseq
      %v1074 = vshrl.u32 %v1073, 7
      %v1075 = vsub.s32 0, %v1074
      %v1076 = vrot.slane %v637, %v1075
      %1078 = vset.pattern.permute.xlu0 0
      %1079 = vperm.xlu0 %1078, %v1072
      %v1080 = vpop.permute.xlu0 %1079
      %v1082 = vadd.f32 %v1076, %v1080
      %v1083 = vxor.u32 %v1082, 2147483648
      %v1084 = vmul.f32 %v1083, 1.442695
      %v1085 = vpow.pop %v1084
      %v1086 = vadd.f32 %v1085, 1.0
      %v1087 = vrcp.pop %v1086
      %v1088 = vmul.f32 1.0, %v1087
      %v1089 = vadd.f32 %v1088, 1.0
      %v1090 = vmul.f32 %v466, %v1089
      %v1091 = vpack.c.bf16 %v1090, %v1090
      %vm1092 = vcmask 517120
      %1093 = vst.msk [vmem:[%s464] sm:$0x3] %vm1092, %v1091
      %p1094 = scmp.lt.s32.totalorder %s27, 1
      %s1095 = scalar_select %p1094, %s27, 1
      %s1096 = smul.addr %s1095, 2
      %s1097 = scalar_lea.vmem %s14, %s1096
      // Predicated region
      $region77: #{dqn_forward.10} parent=75 // pred_check
        %p1098 = pneg %p344
      $region78: #{dqn_forward.10} parent=75 // pred_check_branch
        %1100 = sbr.rel (%p1098) target = $region80
      $region79: #{dqn_forward.10} parent=75 // pred_region
        _
      $region80: #{dqn_forward.10} parent=75 // pred_fallthru
        _
    $region76: #{dqn_forward.10} parent=5 // pred_fallthru
      _
    %p1101 = scmp.le.s32.totalorder 2, %s22
    // Predicated region
    $region81: #{dqn_forward.10} parent=5 // pred_check
      %p1102 = pneg %p1101
    $region82: #{dqn_forward.10} parent=5 // pred_check_branch
      %1104 = sbr.rel (%p1102) target = $region84
    $region83: #{dqn_forward.10} parent=5 // pred_region
      %s1105 = ssub.s32 %s22, 2
      // Predicated region
      $region85: #{dqn_forward.10} parent=83 // pred_check
        %p1106 = pneg %p350
      $region86: #{dqn_forward.10} parent=83 // pred_check_branch
        %1108 = sbr.rel (%p1106) target = $region88
      $region87: #{dqn_forward.10} parent=83 // pred_region
        %p1109 = scmp.lt.s32.totalorder %s28, 1
        %s1110 = scalar_select %p1109, %s28, 1
        %s1111 = smul.addr %s1110, 2
        %s1112 = scalar_lea.vmem %s14, %s1111
      $region88: #{dqn_forward.10} parent=83 // pred_fallthru
        _
    $region84: #{dqn_forward.10} parent=5 // pred_fallthru
      _
  $region6: #{dqn_forward.10} parent=0 // loop_footer
    %s26 = sadd.s32 1, %s22
  $region7: #{dqn_forward.10} parent=0 // loop_footer_branch
    %21 = sbr.rel target = $region3
  $region8: #{dqn_forward.10} parent=0 // loop_exit
    _

// kernel: dqn_forward.11
$region0: #{dqn_forward.11}
  #allocation0 [shape = 'u32[]', space=smem, size = 0x4, offset = 0x4, fixed_abs, tag = 'smem constant byte address 0x4 - core index']
  #allocation1 [shape = 'u32[144,128]{1,0:T(1,128)}', space=vmem, size = 0x12000, scoped, tag = 'internal scratch']
  #allocation2 [shape = 'f32[8,64]{1,0:T(8,128)}', space=vmem, size = 0x1000, scoped, tag = 'scratch operand']
  %s0 = inlined_call_operand.vmem [shape: bf16[8,576], index: 0, kind: input, shape index: {}]
  %s1 = inlined_call_operand.vmem [shape: bf16[576,64], index: 1, kind: input, shape index: {}]
  %s2 = inlined_call_operand.vmem [shape: f32[1,64], index: 2, kind: input, shape index: {}]
  %s3 = inlined_call_operand.vmem [shape: bf16[8,64], index: 3, kind: output, shape index: {}]
  %s4 = sld [smem:[#allocation0]]
  $region30: #{dqn_forward.11} parent=0
    _
  %s6 = ssub.s32 1, %s4
  %s7 = scalar_select 0, %s6, %s4
  // Predicated region
  $region2: #{dqn_forward.11} parent=0 // pred_check
    _
  $region3: #{dqn_forward.11} parent=0 // pred_check_branch
    %9 = sbr.rel (0) target = $region5
  $region4: #{dqn_forward.11} parent=0 // pred_region
    _
  $region5: #{dqn_forward.11} parent=0 // pred_fallthru
    _
  // Predicated region
  $region6: #{dqn_forward.11} parent=0 // pred_check
    _
  $region7: #{dqn_forward.11} parent=0 // pred_check_branch
    %11 = sbr.rel (0) target = $region9
  $region8: #{dqn_forward.11} parent=0 // pred_region
    _
  $region9: #{dqn_forward.11} parent=0 // pred_fallthru
    _
  // Predicated region
  $region10: #{dqn_forward.11} parent=0 // pred_check
    _
  $region11: #{dqn_forward.11} parent=0 // pred_check_branch
    %13 = sbr.rel (0) target = $region13
  $region12: #{dqn_forward.11} parent=0 // pred_region
    _
  $region13: #{dqn_forward.11} parent=0 // pred_fallthru
    _
  %p15 = scmp.eq.s32.totalorder 0, 0
  // Predicated region
  $region14: #{dqn_forward.11} parent=0 // pred_check
    %p16 = pneg %p15
  $region15: #{dqn_forward.11} parent=0 // pred_check_branch
    %18 = sbr.rel (%p16) target = $region17
  $region16: #{dqn_forward.11} parent=0 // pred_region
    %vm19 = vcmask 523264
    %20 = vst.msk [vmem:[#allocation2] sm:$0xff] %vm19, 0.0
  $region17: #{dqn_forward.11} parent=0 // pred_fallthru
    _
  %v21 = vld [vmem:[#allocation2] sm:$0xff]
  %v22 = vld [vmem:[%s0] sm:$0xff]
  %v23 = vld [vmem:[%s0 + $0x8] sm:$0xff]
  %v24 = vld [vmem:[%s0 + $0x10] sm:$0xf]
  %v25 = vld [vmem:[%s1] sm:$0xf]
  %v26 = vld [vmem:[%s1 + $0x4] sm:$0xf]
  %v27 = vld [vmem:[%s1 + $0x8] sm:$0xf]
  %v28 = vld [vmem:[%s1 + $0xc] sm:$0xf]
  %v29 = vld [vmem:[%s1 + $0x10] sm:$0xf]
  %v30 = vld [vmem:[%s1 + $0x14] sm:$0xf]
  %v31 = vld [vmem:[%s1 + $0x18] sm:$0xf]
  %v32 = vld [vmem:[%s1 + $0x1c] sm:$0xf]
  %v33 = vld [vmem:[%s1 + $0x20] sm:$0xf]
  %v34 = vld [vmem:[%s1 + $0x24] sm:$0xf]
  %v35 = vld [vmem:[%s1 + $0x28] sm:$0xf]
  %v36 = vld [vmem:[%s1 + $0x2c] sm:$0xf]
  %v37 = vld [vmem:[%s1 + $0x30] sm:$0xf]
  %v38 = vld [vmem:[%s1 + $0x34] sm:$0xf]
  %v39 = vld [vmem:[%s1 + $0x38] sm:$0xf]
  %v40 = vld [vmem:[%s1 + $0x3c] sm:$0xf]
  %v41 = vld [vmem:[%s1 + $0x40] sm:$0xf]
  %v42 = vld [vmem:[%s1 + $0x44] sm:$0xf]
  %v43 = vld [vmem:[%s1 + $0x48] sm:$0xf]
  %v44 = vld [vmem:[%s1 + $0x4c] sm:$0xf]
  %v45 = vld [vmem:[%s1 + $0x50] sm:$0xf]
  %v46 = vld [vmem:[%s1 + $0x54] sm:$0xf]
  %v47 = vld [vmem:[%s1 + $0x58] sm:$0xf]
  %v48 = vld [vmem:[%s1 + $0x5c] sm:$0xf]
  %v49 = vld [vmem:[%s1 + $0x60] sm:$0xf]
  %v50 = vld [vmem:[%s1 + $0x64] sm:$0xf]
  %v51 = vld [vmem:[%s1 + $0x68] sm:$0xf]
  %v52 = vld [vmem:[%s1 + $0x6c] sm:$0xf]
  %v53 = vld [vmem:[%s1 + $0x70] sm:$0xf]
  %v54 = vld [vmem:[%s1 + $0x74] sm:$0xf]
  %v55 = vld [vmem:[%s1 + $0x78] sm:$0xf]
  %v56 = vld [vmem:[%s1 + $0x7c] sm:$0xf]
  %v57 = vld [vmem:[%s1 + $0x80] sm:$0xf]
  %v58 = vld [vmem:[%s1 + $0x84] sm:$0xf]
  %v59 = vld [vmem:[%s1 + $0x88] sm:$0xf]
  %v60 = vld [vmem:[%s1 + $0x8c] sm:$0xf]
  %v61 = vld [vmem:[%s1 + $0x90] sm:$0xf]
  %v62 = vld [vmem:[%s1 + $0x94] sm:$0xf]
  %v63 = vld [vmem:[%s1 + $0x98] sm:$0xf]
  %v64 = vld [vmem:[%s1 + $0x9c] sm:$0xf]
  %v65 = vld [vmem:[%s1 + $0xa0] sm:$0xf]
  %v66 = vld [vmem:[%s1 + $0xa4] sm:$0xf]
  %v67 = vld [vmem:[%s1 + $0xa8] sm:$0xf]
  %v68 = vld [vmem:[%s1 + $0xac] sm:$0xf]
  %v69 = vld [vmem:[%s1 + $0xb0] sm:$0xf]
  %v70 = vld [vmem:[%s1 + $0xb4] sm:$0xf]
  %v71 = vld [vmem:[%s1 + $0xb8] sm:$0xf]
  %v72 = vld [vmem:[%s1 + $0xbc] sm:$0xf]
  %v73 = vld [vmem:[%s1 + $0xc0] sm:$0xf]
  %v74 = vld [vmem:[%s1 + $0xc4] sm:$0xf]
  %v75 = vld [vmem:[%s1 + $0xc8] sm:$0xf]
  %v76 = vld [vmem:[%s1 + $0xcc] sm:$0xf]
  %v77 = vld [vmem:[%s1 + $0xd0] sm:$0xf]
  %v78 = vld [vmem:[%s1 + $0xd4] sm:$0xf]
  %v79 = vld [vmem:[%s1 + $0xd8] sm:$0xf]
  %v80 = vld [vmem:[%s1 + $0xdc] sm:$0xf]
  %v81 = vld [vmem:[%s1 + $0xe0] sm:$0xf]
  %v82 = vld [vmem:[%s1 + $0xe4] sm:$0xf]
  %v83 = vld [vmem:[%s1 + $0xe8] sm:$0xf]
  %v84 = vld [vmem:[%s1 + $0xec] sm:$0xf]
  %v85 = vld [vmem:[%s1 + $0xf0] sm:$0xf]
  %v86 = vld [vmem:[%s1 + $0xf4] sm:$0xf]
  %v87 = vld [vmem:[%s1 + $0xf8] sm:$0xf]
  %v88 = vld [vmem:[%s1 + $0xfc] sm:$0xf]
  %v89 = vld [vmem:[%s1 + $0x100] sm:$0xf]
  %v90 = vld [vmem:[%s1 + $0x104] sm:$0xf]
  %v91 = vld [vmem:[%s1 + $0x108] sm:$0xf]
  %v92 = vld [vmem:[%s1 + $0x10c] sm:$0xf]
  %v93 = vld [vmem:[%s1 + $0x110] sm:$0xf]
  %v94 = vld [vmem:[%s1 + $0x114] sm:$0xf]
  %v95 = vld [vmem:[%s1 + $0x118] sm:$0xf]
  %v96 = vld [vmem:[%s1 + $0x11c] sm:$0xf]
  %v100 = vunpack.c.l.b16 %v22
  %v101 = vunpack.c.h.b16 %v22
  %v102 = vunpack.c.l.b16 %v23
  %v103 = vunpack.c.h.b16 %v23
  %v104 = vunpack.c.l.b16 %v24
  %v105 = vpack.c.b16 %v100, %v100
  %v106 = vpack.c.b16 %v101, %v101
  %v107 = vpack.c.b16 %v102, %v102
  %v108 = vpack.c.b16 %v103, %v103
  %v109 = vpack.c.b16 %v104, %v104
  %v186 = vunpack.c.l.b16 %v25
  %v187 = vunpack.c.l.b16 %v26
  %v188 = vunpack.c.l.b16 %v27
  %v189 = vunpack.c.l.b16 %v28
  %v190 = vunpack.c.l.b16 %v29
  %v191 = vunpack.c.l.b16 %v30
  %v192 = vunpack.c.l.b16 %v31
  %v193 = vunpack.c.l.b16 %v32
  %v194 = vunpack.c.l.b16 %v33
  %v195 = vunpack.c.l.b16 %v34
  %v196 = vunpack.c.l.b16 %v35
  %v197 = vunpack.c.l.b16 %v36
  %v198 = vunpack.c.l.b16 %v37
  %v199 = vunpack.c.l.b16 %v38
  %v200 = vunpack.c.l.b16 %v39
  %v201 = vunpack.c.l.b16 %v40
  %v202 = vunpack.c.l.b16 %v41
  %v203 = vunpack.c.l.b16 %v42
  %v204 = vunpack.c.l.b16 %v43
  %v205 = vunpack.c.l.b16 %v44
  %v206 = vunpack.c.l.b16 %v45
  %v207 = vunpack.c.l.b16 %v46
  %v208 = vunpack.c.l.b16 %v47
  %v209 = vunpack.c.l.b16 %v48
  %v210 = vunpack.c.l.b16 %v49
  %v211 = vunpack.c.l.b16 %v50
  %v212 = vunpack.c.l.b16 %v51
  %v213 = vunpack.c.l.b16 %v52
  %v214 = vunpack.c.l.b16 %v53
  %v215 = vunpack.c.l.b16 %v54
  %v216 = vunpack.c.l.b16 %v55
  %v217 = vunpack.c.l.b16 %v56
  %v218 = vunpack.c.l.b16 %v57
  %v219 = vunpack.c.l.b16 %v58
  %v220 = vunpack.c.l.b16 %v59
  %v221 = vunpack.c.l.b16 %v60
  %v222 = vunpack.c.l.b16 %v61
  %v223 = vunpack.c.l.b16 %v62
  %v224 = vunpack.c.l.b16 %v63
  %v225 = vunpack.c.l.b16 %v64
  %v226 = vunpack.c.l.b16 %v65
  %v227 = vunpack.c.l.b16 %v66
  %v228 = vunpack.c.l.b16 %v67
  %v229 = vunpack.c.l.b16 %v68
  %v230 = vunpack.c.l.b16 %v69
  %v231 = vunpack.c.l.b16 %v70
  %v232 = vunpack.c.l.b16 %v71
  %v233 = vunpack.c.l.b16 %v72
  %v234 = vunpack.c.l.b16 %v73
  %v235 = vunpack.c.l.b16 %v74
  %v236 = vunpack.c.l.b16 %v75
  %v237 = vunpack.c.l.b16 %v76
  %v238 = vunpack.c.l.b16 %v77
  %v239 = vunpack.c.l.b16 %v78
  %v240 = vunpack.c.l.b16 %v79
  %v241 = vunpack.c.l.b16 %v80
  %v242 = vunpack.c.l.b16 %v81
  %v243 = vunpack.c.l.b16 %v82
  %v244 = vunpack.c.l.b16 %v83
  %v245 = vunpack.c.l.b16 %v84
  %v246 = vunpack.c.l.b16 %v85
  %v247 = vunpack.c.l.b16 %v86
  %v248 = vunpack.c.l.b16 %v87
  %v249 = vunpack.c.l.b16 %v88
  %v250 = vunpack.c.l.b16 %v89
  %v251 = vunpack.c.l.b16 %v90
  %v252 = vunpack.c.l.b16 %v91
  %v253 = vunpack.c.l.b16 %v92
  %v254 = vunpack.c.l.b16 %v93
  %v255 = vunpack.c.l.b16 %v94
  %v256 = vunpack.c.l.b16 %v95
  %v257 = vunpack.c.l.b16 %v96
  %v258 = vpack.c.b16 %v187, %v186
  %v259 = vpack.c.b16 %v189, %v188
  %v260 = vpack.c.b16 %v191, %v190
  %v261 = vpack.c.b16 %v193, %v192
  %v262 = vpack.c.b16 %v195, %v194
  %v263 = vpack.c.b16 %v197, %v196
  %v264 = vpack.c.b16 %v199, %v198
  %v265 = vpack.c.b16 %v201, %v200
  %v266 = vpack.c.b16 %v203, %v202
  %v267 = vpack.c.b16 %v205, %v204
  %v268 = vpack.c.b16 %v207, %v206
  %v269 = vpack.c.b16 %v209, %v208
  %v270 = vpack.c.b16 %v211, %v210
  %v271 = vpack.c.b16 %v213, %v212
  %v272 = vpack.c.b16 %v215, %v214
  %v273 = vpack.c.b16 %v217, %v216
  %v274 = vpack.c.b16 %v219, %v218
  %v275 = vpack.c.b16 %v221, %v220
  %v276 = vpack.c.b16 %v223, %v222
  %v277 = vpack.c.b16 %v225, %v224
  %v278 = vpack.c.b16 %v227, %v226
  %v279 = vpack.c.b16 %v229, %v228
  %v280 = vpack.c.b16 %v231, %v230
  %v281 = vpack.c.b16 %v233, %v232
  %v282 = vpack.c.b16 %v235, %v234
  %v283 = vpack.c.b16 %v237, %v236
  %v284 = vpack.c.b16 %v239, %v238
  %v285 = vpack.c.b16 %v241, %v240
  %v286 = vpack.c.b16 %v243, %v242
  %v287 = vpack.c.b16 %v245, %v244
  %v288 = vpack.c.b16 %v247, %v246
  %v289 = vpack.c.b16 %v249, %v248
  %v290 = vpack.c.b16 %v251, %v250
  %v291 = vpack.c.b16 %v253, %v252
  %v292 = vpack.c.b16 %v255, %v254
  %v293 = vpack.c.b16 %v257, %v256
  %vm330 = vcmask 523264
  %v332 = vsel %vm330, %v109, 0
  %334 = vmatprep.subr.bf16.mxu0 0
  %335 = vmatpush1.bf16.msra.mxu0 %v265
  %336 = vmatprep.subr.bf16.mxu0 0
  %337 = vmatpush1.bf16.msra.mxu0 %v264
  %338 = vmatprep.subr.bf16.mxu0 0
  %339 = vmatpush1.bf16.msra.mxu0 %v263
  %340 = vmatprep.subr.bf16.mxu0 0
  %341 = vmatpush1.bf16.msra.mxu0 %v262
  %342 = vmatprep.subr.bf16.mxu0 0
  %343 = vmatpush1.bf16.msra.mxu0 %v261
  %344 = vmatprep.subr.bf16.mxu0 0
  %345 = vmatpush1.bf16.msra.mxu0 %v260
  %346 = vmatprep.subr.bf16.mxu0 0
  %347 = vmatpush1.bf16.msra.mxu0 %v259
  %348 = vmatprep.subr.bf16.mxu0 0
  %349 = vmatpush1.bf16.msra.mxu0 %v258
  %350 = vmatprep.subr.bf16.mxu0 0
  %351 = vmatpush2.bf16.msra.mxu0 %v273
  %352 = vmatprep.subr.bf16.mxu0 0
  %353 = vmatpush2.bf16.msra.mxu0 %v272
  %354 = vmatprep.subr.bf16.mxu0 0
  %355 = vmatpush2.bf16.msra.mxu0 %v271
  %356 = vmatprep.subr.bf16.mxu0 0
  %357 = vmatpush2.bf16.msra.mxu0 %v270
  %358 = vmatprep.subr.bf16.mxu0 0
  %359 = vmatpush2.bf16.msra.mxu0 %v269
  %360 = vmatprep.subr.bf16.mxu0 0
  %361 = vmatpush2.bf16.msra.mxu0 %v268
  %362 = vmatprep.subr.bf16.mxu0 0
  %363 = vmatpush2.bf16.msra.mxu0 %v267
  %364 = vmatprep.subr.bf16.mxu0 0
  %365 = vmatpush2.bf16.msra.mxu0 %v266
  %366 = vmatprep.mubr.bf16.mxu0 %v106
  %367 = vmatmul.mubr.bf16.gmra.mxu0 %v105
  %v368 = vpop.f32.mrf.mxu0
  %v369 = vadd.f32 0.0, %v368
  %v370 = vpop.f32.mrf.mxu0
  %v371 = vpop.f32.mrf.mxu0
  %v372 = vpop.f32.mrf.mxu0
  %373 = vdwg.mxu0
  %374 = vmatprep.subr.bf16.mxu0 0
  %375 = vmatpush1.bf16.msra.mxu0 %v281
  %376 = vmatprep.subr.bf16.mxu0 0
  %377 = vmatpush1.bf16.msra.mxu0 %v280
  %378 = vmatprep.subr.bf16.mxu0 0
  %379 = vmatpush1.bf16.msra.mxu0 %v279
  %380 = vmatprep.subr.bf16.mxu0 0
  %381 = vmatpush1.bf16.msra.mxu0 %v278
  %382 = vmatprep.subr.bf16.mxu0 0
  %383 = vmatpush1.bf16.msra.mxu0 %v277
  %384 = vmatprep.subr.bf16.mxu0 0
  %385 = vmatpush1.bf16.msra.mxu0 %v276
  %386 = vmatprep.subr.bf16.mxu0 0
  %387 = vmatpush1.bf16.msra.mxu0 %v275
  %388 = vmatprep.subr.bf16.mxu0 0
  %389 = vmatpush1.bf16.msra.mxu0 %v274
  %390 = vmatprep.subr.bf16.mxu0 0
  %391 = vmatpush2.bf16.msra.mxu0 %v289
  %392 = vmatprep.subr.bf16.mxu0 0
  %393 = vmatpush2.bf16.msra.mxu0 %v288
  %394 = vmatprep.subr.bf16.mxu0 0
  %395 = vmatpush2.bf16.msra.mxu0 %v287
  %396 = vmatprep.subr.bf16.mxu0 0
  %397 = vmatpush2.bf16.msra.mxu0 %v286
  %398 = vmatprep.subr.bf16.mxu0 0
  %399 = vmatpush2.bf16.msra.mxu0 %v285
  %400 = vmatprep.subr.bf16.mxu0 0
  %401 = vmatpush2.bf16.msra.mxu0 %v284
  %402 = vmatprep.subr.bf16.mxu0 0
  %403 = vmatpush2.bf16.msra.mxu0 %v283
  %404 = vmatprep.subr.bf16.mxu0 0
  %405 = vmatpush2.bf16.msra.mxu0 %v282
  %406 = vmatprep.mubr.bf16.mxu0 %v108
  %407 = vmatmul.mubr.bf16.gmra.mxu0 %v107
  %v408 = vpop.f32.mrf.mxu0
  %v409 = vadd.f32 %v369, %v408
  %v410 = vpop.f32.mrf.mxu0
  %v411 = vpop.f32.mrf.mxu0
  %v412 = vpop.f32.mrf.mxu0
  %413 = vdwg.mxu0
  %414 = vmatprep.subr.bf16.mxu0 0
  %415 = vmatpush1.bf16.msra.mxu0 0
  %416 = vmatprep.subr.bf16.mxu0 0
  %417 = vmatpush1.bf16.msra.mxu0 0
  %418 = vmatprep.subr.bf16.mxu0 0
  %419 = vmatpush1.bf16.msra.mxu0 0
  %420 = vmatprep.subr.bf16.mxu0 0
  %421 = vmatpush1.bf16.msra.mxu0 0
  %422 = vmatprep.subr.bf16.mxu0 0
  %423 = vmatpush1.bf16.msra.mxu0 %v293
  %424 = vmatprep.subr.bf16.mxu0 0
  %425 = vmatpush1.bf16.msra.mxu0 %v292
  %426 = vmatprep.subr.bf16.mxu0 0
  %427 = vmatpush1.bf16.msra.mxu0 %v291
  %428 = vmatprep.subr.bf16.mxu0 0
  %429 = vmatpush1.bf16.msra.mxu0 %v290
  %430 = vmatprep.subr.bf16.mxu0 0
  %431 = vmatpush2.bf16.msra.mxu0 0
  %432 = vmatprep.subr.bf16.mxu0 0
  %433 = vmatpush2.bf16.msra.mxu0 0
  %434 = vmatprep.subr.bf16.mxu0 0
  %435 = vmatpush2.bf16.msra.mxu0 0
  %436 = vmatprep.subr.bf16.mxu0 0
  %437 = vmatpush2.bf16.msra.mxu0 0
  %438 = vmatprep.subr.bf16.mxu0 0
  %439 = vmatpush2.bf16.msra.mxu0 0
  %440 = vmatprep.subr.bf16.mxu0 0
  %441 = vmatpush2.bf16.msra.mxu0 0
  %442 = vmatprep.subr.bf16.mxu0 0
  %443 = vmatpush2.bf16.msra.mxu0 0
  %444 = vmatprep.subr.bf16.mxu0 0
  %445 = vmatpush2.bf16.msra.mxu0 0
  %446 = vmatprep.mubr.bf16.mxu0 0
  %447 = vmatmul.mubr.bf16.gmra.mxu0 %v332
  %v448 = vpop.f32.mrf.mxu0
  %v449 = vadd.f32 %v409, %v448
  %v450 = vpop.f32.mrf.mxu0
  %v451 = vpop.f32.mrf.mxu0
  %v452 = vpop.f32.mrf.mxu0
  %453 = vdwg.mxu0
  %v454 = vadd.f32 %v21, %v449
  %455 = vst.msk [vmem:[#allocation2] sm:$0xff] %vm330, %v454
  // Predicated region
  $region18: #{dqn_forward.11} parent=0 // pred_check
    %p456 = pneg %p15
  $region19: #{dqn_forward.11} parent=0 // pred_check_branch
    %458 = sbr.rel (%p456) target = $region21
  $region20: #{dqn_forward.11} parent=0 // pred_region
    %v459 = vld [vmem:[#allocation2] sm:$0xff]
    %v460 = vld [vmem:[%s2] sm:$0x1]
    %v462 = vlaneseq
    %v463 = vshrl.u32 %v462, 7
    %v464 = vsub.s32 0, %v463
    %v465 = vrot.slane %v460, %v464
    %v467 = vadd.f32 %v459, %v465
    %v468 = vmax.f32 %v467, 0.0
    %v469 = vpack.c.bf16 %v468, %v468
    %vm470 = vcmask 519168
    %471 = vst.msk [vmem:[%s3] sm:$0xf] %vm470, %v469
  $region21: #{dqn_forward.11} parent=0 // pred_fallthru
    _
  // Predicated region
  $region22: #{dqn_forward.11} parent=0 // pred_check
    _
  $region23: #{dqn_forward.11} parent=0 // pred_check_branch
    %473 = sbr.rel (0) target = $region25
  $region24: #{dqn_forward.11} parent=0 // pred_region
    _
  $region25: #{dqn_forward.11} parent=0 // pred_fallthru
    _
  // Predicated region
  $region26: #{dqn_forward.11} parent=0 // pred_check
    _
  $region27: #{dqn_forward.11} parent=0 // pred_check_branch
    %475 = sbr.rel (0) target = $region29
  $region28: #{dqn_forward.11} parent=0 // pred_region
    _
  $region29: #{dqn_forward.11} parent=0 // pred_fallthru
    _

// kernel: dqn_forward.13
$region0: #{dqn_forward.13}
  #allocation0 [shape = 'u32[]', space=smem, size = 0x4, offset = 0x4, fixed_abs, tag = 'smem constant byte address 0x4 - core index']
  #allocation1 [shape = 'u32[144,128]{1,0:T(1,128)}', space=vmem, size = 0x12000, scoped, tag = 'internal scratch']
  #allocation2 [shape = 'f32[2,6]{1,0:T(2,128)}', space=vmem, size = 0x400, scoped, tag = 'scratch operand']
  %s0 = inlined_call_operand.vmem [shape: bf16[2,512], index: 0, kind: input, shape index: {}]
  %s1 = inlined_call_operand.vmem [shape: bf16[512,6], index: 1, kind: input, shape index: {}]
  %s2 = inlined_call_operand.vmem [shape: f32[1,6], index: 2, kind: input, shape index: {}]
  %s3 = inlined_call_operand.hbm [shape: f32[2,6], index: 3, kind: output, shape index: {}]
  %s4 = sld [smem:[#allocation0]]
  $region30: #{dqn_forward.13} parent=0
    _
  %s6 = ssub.s32 1, %s4
  %s7 = scalar_select 0, %s6, %s4
  $region1: #{dqn_forward.13} parent=0
    #allocation3 [shape = 'u8[1024]{0}', space=vmem, size = 0x400, scoped, tag = 'output window, operand 0, single buffered']
    #allocation4 [shape = 's32[1]{0}', space=sflag, size = 0x4, scoped, tag = 'scoped memory for dqn_forward.13']
    %8 = vsyncpa [#allocation4], 0
    // Predicated region
    $region2: #{dqn_forward.13} parent=1 // pred_check
      _
    $region3: #{dqn_forward.13} parent=1 // pred_check_branch
      %10 = sbr.rel (0) target = $region5
    $region4: #{dqn_forward.13} parent=1 // pred_region
      _
    $region5: #{dqn_forward.13} parent=1 // pred_fallthru
      _
    // Predicated region
    $region6: #{dqn_forward.13} parent=1 // pred_check
      _
    $region7: #{dqn_forward.13} parent=1 // pred_check_branch
      %12 = sbr.rel (0) target = $region9
    $region8: #{dqn_forward.13} parent=1 // pred_region
      _
    $region9: #{dqn_forward.13} parent=1 // pred_fallthru
      _
    // Predicated region
    $region10: #{dqn_forward.13} parent=1 // pred_check
      _
    $region11: #{dqn_forward.13} parent=1 // pred_check_branch
      %14 = sbr.rel (0) target = $region13
    $region12: #{dqn_forward.13} parent=1 // pred_region
      _
    $region13: #{dqn_forward.13} parent=1 // pred_fallthru
      _
    %p16 = scmp.eq.s32.totalorder 0, 0
    // Predicated region
    $region14: #{dqn_forward.13} parent=1 // pred_check
      %p17 = pneg %p16
    $region15: #{dqn_forward.13} parent=1 // pred_check_branch
      %19 = sbr.rel (%p17) target = $region17
    $region16: #{dqn_forward.13} parent=1 // pred_region
      %vm20 = vcmask 41984
      %21 = vst.msk [vmem:[#allocation2] sm:$0x3] %vm20, 0.0
    $region17: #{dqn_forward.13} parent=1 // pred_fallthru
      _
    %v22 = vld [vmem:[#allocation2] sm:$0x3]
    %v23 = vld [vmem:[%s0] sm:$0xf]
    %v24 = vld [vmem:[%s1] sm:$0xf]
    %v25 = vld [vmem:[%s1 + $0x4] sm:$0xf]
    %v26 = vld [vmem:[%s1 + $0x8] sm:$0xf]
    %v27 = vld [vmem:[%s1 + $0xc] sm:$0xf]
    %v28 = vld [vmem:[%s1 + $0x10] sm:$0xf]
    %v29 = vld [vmem:[%s1 + $0x14] sm:$0xf]
    %v30 = vld [vmem:[%s1 + $0x18] sm:$0xf]
    %v31 = vld [vmem:[%s1 + $0x1c] sm:$0xf]
    %v32 = vld [vmem:[%s1 + $0x20] sm:$0xf]
    %v33 = vld [vmem:[%s1 + $0x24] sm:$0xf]
    %v34 = vld [vmem:[%s1 + $0x28] sm:$0xf]
    %v35 = vld [vmem:[%s1 + $0x2c] sm:$0xf]
    %v36 = vld [vmem:[%s1 + $0x30] sm:$0xf]
    %v37 = vld [vmem:[%s1 + $0x34] sm:$0xf]
    %v38 = vld [vmem:[%s1 + $0x38] sm:$0xf]
    %v39 = vld [vmem:[%s1 + $0x3c] sm:$0xf]
    %v40 = vld [vmem:[%s1 + $0x40] sm:$0xf]
    %v41 = vld [vmem:[%s1 + $0x44] sm:$0xf]
    %v42 = vld [vmem:[%s1 + $0x48] sm:$0xf]
    %v43 = vld [vmem:[%s1 + $0x4c] sm:$0xf]
    %v44 = vld [vmem:[%s1 + $0x50] sm:$0xf]
    %v45 = vld [vmem:[%s1 + $0x54] sm:$0xf]
    %v46 = vld [vmem:[%s1 + $0x58] sm:$0xf]
    %v47 = vld [vmem:[%s1 + $0x5c] sm:$0xf]
    %v48 = vld [vmem:[%s1 + $0x60] sm:$0xf]
    %v49 = vld [vmem:[%s1 + $0x64] sm:$0xf]
    %v50 = vld [vmem:[%s1 + $0x68] sm:$0xf]
    %v51 = vld [vmem:[%s1 + $0x6c] sm:$0xf]
    %v52 = vld [vmem:[%s1 + $0x70] sm:$0xf]
    %v53 = vld [vmem:[%s1 + $0x74] sm:$0xf]
    %v54 = vld [vmem:[%s1 + $0x78] sm:$0xf]
    %v55 = vld [vmem:[%s1 + $0x7c] sm:$0xf]
    %v56 = vld [vmem:[%s1 + $0x80] sm:$0xf]
    %v57 = vld [vmem:[%s1 + $0x84] sm:$0xf]
    %v58 = vld [vmem:[%s1 + $0x88] sm:$0xf]
    %v59 = vld [vmem:[%s1 + $0x8c] sm:$0xf]
    %v60 = vld [vmem:[%s1 + $0x90] sm:$0xf]
    %v61 = vld [vmem:[%s1 + $0x94] sm:$0xf]
    %v62 = vld [vmem:[%s1 + $0x98] sm:$0xf]
    %v63 = vld [vmem:[%s1 + $0x9c] sm:$0xf]
    %v64 = vld [vmem:[%s1 + $0xa0] sm:$0xf]
    %v65 = vld [vmem:[%s1 + $0xa4] sm:$0xf]
    %v66 = vld [vmem:[%s1 + $0xa8] sm:$0xf]
    %v67 = vld [vmem:[%s1 + $0xac] sm:$0xf]
    %v68 = vld [vmem:[%s1 + $0xb0] sm:$0xf]
    %v69 = vld [vmem:[%s1 + $0xb4] sm:$0xf]
    %v70 = vld [vmem:[%s1 + $0xb8] sm:$0xf]
    %v71 = vld [vmem:[%s1 + $0xbc] sm:$0xf]
    %v72 = vld [vmem:[%s1 + $0xc0] sm:$0xf]
    %v73 = vld [vmem:[%s1 + $0xc4] sm:$0xf]
    %v74 = vld [vmem:[%s1 + $0xc8] sm:$0xf]
    %v75 = vld [vmem:[%s1 + $0xcc] sm:$0xf]
    %v76 = vld [vmem:[%s1 + $0xd0] sm:$0xf]
    %v77 = vld [vmem:[%s1 + $0xd4] sm:$0xf]
    %v78 = vld [vmem:[%s1 + $0xd8] sm:$0xf]
    %v79 = vld [vmem:[%s1 + $0xdc] sm:$0xf]
    %v80 = vld [vmem:[%s1 + $0xe0] sm:$0xf]
    %v81 = vld [vmem:[%s1 + $0xe4] sm:$0xf]
    %v82 = vld [vmem:[%s1 + $0xe8] sm:$0xf]
    %v83 = vld [vmem:[%s1 + $0xec] sm:$0xf]
    %v84 = vld [vmem:[%s1 + $0xf0] sm:$0xf]
    %v85 = vld [vmem:[%s1 + $0xf4] sm:$0xf]
    %v86 = vld [vmem:[%s1 + $0xf8] sm:$0xf]
    %v87 = vld [vmem:[%s1 + $0xfc] sm:$0xf]
    %v90 = vunpack.c.l.s4 1966171168
    %v91 = vunpack.c.0.s8 %v90
    %v92 = vlaneseq
    %v93 = vshrl.u32 %v92, 7
    %v94 = vsub.s32 %v91, %v93
    %v95 = vrot.slane %v23, %v94
    %v96 = vcombine.high %v95, %v95
    %v98 = vunpack.c.l.s4 1966171168
    %v99 = vunpack.c.0.s8 %v98
    %v100 = vlaneseq
    %v101 = vshrl.u32 %v100, 7
    %v102 = vsub.s32 %v99, %v101
    %v103 = vrot.slane %v95, %v102
    %v105 = vunpack.c.l.s4 1966171168
    %v106 = vunpack.c.0.s8 %v105
    %v107 = vlaneseq
    %v108 = vshrl.u32 %v107, 7
    %v109 = vsub.s32 %v106, %v108
    %v110 = vrot.slane %v96, %v109
    %v111 = vcombine.high %v103, %v103
    %v112 = vcombine.high %v110, %v110
    %v181 = vunpack.c.l.b16 %v24
    %v182 = vunpack.c.l.b16 %v25
    %v183 = vunpack.c.l.b16 %v26
    %v184 = vunpack.c.l.b16 %v27
    %v185 = vunpack.c.l.b16 %v28
    %v186 = vunpack.c.l.b16 %v29
    %v187 = vunpack.c.l.b16 %v30
    %v188 = vunpack.c.l.b16 %v31
    %v189 = vunpack.c.l.b16 %v32
    %v190 = vunpack.c.l.b16 %v33
    %v191 = vunpack.c.l.b16 %v34
    %v192 = vunpack.c.l.b16 %v35
    %v193 = vunpack.c.l.b16 %v36
    %v194 = vunpack.c.l.b16 %v37
    %v195 = vunpack.c.l.b16 %v38
    %v196 = vunpack.c.l.b16 %v39
    %v197 = vunpack.c.l.b16 %v40
    %v198 = vunpack.c.l.b16 %v41
    %v199 = vunpack.c.l.b16 %v42
    %v200 = vunpack.c.l.b16 %v43
    %v201 = vunpack.c.l.b16 %v44
    %v202 = vunpack.c.l.b16 %v45
    %v203 = vunpack.c.l.b16 %v46
    %v204 = vunpack.c.l.b16 %v47
    %v205 = vunpack.c.l.b16 %v48
    %v206 = vunpack.c.l.b16 %v49
    %v207 = vunpack.c.l.b16 %v50
    %v208 = vunpack.c.l.b16 %v51
    %v209 = vunpack.c.l.b16 %v52
    %v210 = vunpack.c.l.b16 %v53
    %v211 = vunpack.c.l.b16 %v54
    %v212 = vunpack.c.l.b16 %v55
    %v213 = vunpack.c.l.b16 %v56
    %v214 = vunpack.c.l.b16 %v57
    %v215 = vunpack.c.l.b16 %v58
    %v216 = vunpack.c.l.b16 %v59
    %v217 = vunpack.c.l.b16 %v60
    %v218 = vunpack.c.l.b16 %v61
    %v219 = vunpack.c.l.b16 %v62
    %v220 = vunpack.c.l.b16 %v63
    %v221 = vunpack.c.l.b16 %v64
    %v222 = vunpack.c.l.b16 %v65
    %v223 = vunpack.c.l.b16 %v66
    %v224 = vunpack.c.l.b16 %v67
    %v225 = vunpack.c.l.b16 %v68
    %v226 = vunpack.c.l.b16 %v69
    %v227 = vunpack.c.l.b16 %v70
    %v228 = vunpack.c.l.b16 %v71
    %v229 = vunpack.c.l.b16 %v72
    %v230 = vunpack.c.l.b16 %v73
    %v231 = vunpack.c.l.b16 %v74
    %v232 = vunpack.c.l.b16 %v75
    %v233 = vunpack.c.l.b16 %v76
    %v234 = vunpack.c.l.b16 %v77
    %v235 = vunpack.c.l.b16 %v78
    %v236 = vunpack.c.l.b16 %v79
    %v237 = vunpack.c.l.b16 %v80
    %v238 = vunpack.c.l.b16 %v81
    %v239 = vunpack.c.l.b16 %v82
    %v240 = vunpack.c.l.b16 %v83
    %v241 = vunpack.c.l.b16 %v84
    %v242 = vunpack.c.l.b16 %v85
    %v243 = vunpack.c.l.b16 %v86
    %v244 = vunpack.c.l.b16 %v87
    %v245 = vpack.c.b16 %v182, %v181
    %v246 = vpack.c.b16 %v184, %v183
    %v247 = vpack.c.b16 %v186, %v185
    %v248 = vpack.c.b16 %v188, %v187
    %v249 = vpack.c.b16 %v190, %v189
    %v250 = vpack.c.b16 %v192, %v191
    %v251 = vpack.c.b16 %v194, %v193
    %v252 = vpack.c.b16 %v196, %v195
    %v253 = vpack.c.b16 %v198, %v197
    %v254 = vpack.c.b16 %v200, %v199
    %v255 = vpack.c.b16 %v202, %v201
    %v256 = vpack.c.b16 %v204, %v203
    %v257 = vpack.c.b16 %v206, %v205
    %v258 = vpack.c.b16 %v208, %v207
    %v259 = vpack.c.b16 %v210, %v209
    %v260 = vpack.c.b16 %v212, %v211
    %v261 = vpack.c.b16 %v214, %v213
    %v262 = vpack.c.b16 %v216, %v215
    %v263 = vpack.c.b16 %v218, %v217
    %v264 = vpack.c.b16 %v220, %v219
    %v265 = vpack.c.b16 %v222, %v221
    %v266 = vpack.c.b16 %v224, %v223
    %v267 = vpack.c.b16 %v226, %v225
    %v268 = vpack.c.b16 %v228, %v227
    %v269 = vpack.c.b16 %v230, %v229
    %v270 = vpack.c.b16 %v232, %v231
    %v271 = vpack.c.b16 %v234, %v233
    %v272 = vpack.c.b16 %v236, %v235
    %v273 = vpack.c.b16 %v238, %v237
    %v274 = vpack.c.b16 %v240, %v239
    %v275 = vpack.c.b16 %v242, %v241
    %v276 = vpack.c.b16 %v244, %v243
    %309 = vmatprep.subr.bf16.mxu0 0
    %310 = vmatpush1.bf16.msra.mxu0 %v252
    %311 = vmatprep.subr.bf16.mxu0 0
    %312 = vmatpush1.bf16.msra.mxu0 %v251
    %313 = vmatprep.subr.bf16.mxu0 0
    %314 = vmatpush1.bf16.msra.mxu0 %v250
    %315 = vmatprep.subr.bf16.mxu0 0
    %316 = vmatpush1.bf16.msra.mxu0 %v249
    %317 = vmatprep.subr.bf16.mxu0 0
    %318 = vmatpush1.bf16.msra.mxu0 %v248
    %319 = vmatprep.subr.bf16.mxu0 0
    %320 = vmatpush1.bf16.msra.mxu0 %v247
    %321 = vmatprep.subr.bf16.mxu0 0
    %322 = vmatpush1.bf16.msra.mxu0 %v246
    %323 = vmatprep.subr.bf16.mxu0 0
    %324 = vmatpush1.bf16.msra.mxu0 %v245
    %325 = vmatprep.subr.bf16.mxu0 0
    %326 = vmatpush2.bf16.msra.mxu0 %v260
    %327 = vmatprep.subr.bf16.mxu0 0
    %328 = vmatpush2.bf16.msra.mxu0 %v259
    %329 = vmatprep.subr.bf16.mxu0 0
    %330 = vmatpush2.bf16.msra.mxu0 %v258
    %331 = vmatprep.subr.bf16.mxu0 0
    %332 = vmatpush2.bf16.msra.mxu0 %v257
    %333 = vmatprep.subr.bf16.mxu0 0
    %334 = vmatpush2.bf16.msra.mxu0 %v256
    %335 = vmatprep.subr.bf16.mxu0 0
    %336 = vmatpush2.bf16.msra.mxu0 %v255
    %337 = vmatprep.subr.bf16.mxu0 0
    %338 = vmatpush2.bf16.msra.mxu0 %v254
    %339 = vmatprep.subr.bf16.mxu0 0
    %340 = vmatpush2.bf16.msra.mxu0 %v253
    %341 = vmatprep.mubr.bf16.mxu0 %v110
    %342 = vmatmul.mubr.bf16.gmra.mxu0 %v103
    %v343 = vpop.f32.mrf.mxu0
    %v344 = vadd.f32 0.0, %v343
    %v345 = vpop.f32.mrf.mxu0
    %v346 = vpop.f32.mrf.mxu0
    %v347 = vpop.f32.mrf.mxu0
    %348 = vdwg.mxu0
    %349 = vmatprep.subr.bf16.mxu0 0
    %350 = vmatpush1.bf16.msra.mxu0 %v268
    %351 = vmatprep.subr.bf16.mxu0 0
    %352 = vmatpush1.bf16.msra.mxu0 %v267
    %353 = vmatprep.subr.bf16.mxu0 0
    %354 = vmatpush1.bf16.msra.mxu0 %v266
    %355 = vmatprep.subr.bf16.mxu0 0
    %356 = vmatpush1.bf16.msra.mxu0 %v265
    %357 = vmatprep.subr.bf16.mxu0 0
    %358 = vmatpush1.bf16.msra.mxu0 %v264
    %359 = vmatprep.subr.bf16.mxu0 0
    %360 = vmatpush1.bf16.msra.mxu0 %v263
    %361 = vmatprep.subr.bf16.mxu0 0
    %362 = vmatpush1.bf16.msra.mxu0 %v262
    %363 = vmatprep.subr.bf16.mxu0 0
    %364 = vmatpush1.bf16.msra.mxu0 %v261
    %365 = vmatprep.subr.bf16.mxu0 0
    %366 = vmatpush2.bf16.msra.mxu0 %v276
    %367 = vmatprep.subr.bf16.mxu0 0
    %368 = vmatpush2.bf16.msra.mxu0 %v275
    %369 = vmatprep.subr.bf16.mxu0 0
    %370 = vmatpush2.bf16.msra.mxu0 %v274
    %371 = vmatprep.subr.bf16.mxu0 0
    %372 = vmatpush2.bf16.msra.mxu0 %v273
    %373 = vmatprep.subr.bf16.mxu0 0
    %374 = vmatpush2.bf16.msra.mxu0 %v272
    %375 = vmatprep.subr.bf16.mxu0 0
    %376 = vmatpush2.bf16.msra.mxu0 %v271
    %377 = vmatprep.subr.bf16.mxu0 0
    %378 = vmatpush2.bf16.msra.mxu0 %v270
    %379 = vmatprep.subr.bf16.mxu0 0
    %380 = vmatpush2.bf16.msra.mxu0 %v269
    %381 = vmatprep.mubr.bf16.mxu0 %v112
    %382 = vmatmul.mubr.bf16.gmra.mxu0 %v111
    %v383 = vpop.f32.mrf.mxu0
    %v384 = vadd.f32 %v344, %v383
    %v385 = vpop.f32.mrf.mxu0
    %v386 = vpop.f32.mrf.mxu0
    %v387 = vpop.f32.mrf.mxu0
    %388 = vdwg.mxu0
    %v389 = vadd.f32 %v22, %v384
    %vm390 = vcmask 41984
    %391 = vst.msk [vmem:[#allocation2] sm:$0x3] %vm390, %v389
    // Predicated region
    $region18: #{dqn_forward.13} parent=1 // pred_check
      %p392 = pneg %p16
    $region19: #{dqn_forward.13} parent=1 // pred_check_branch
      %394 = sbr.rel (%p392) target = $region21
    $region20: #{dqn_forward.13} parent=1 // pred_region
      %v395 = vld [vmem:[#allocation2] sm:$0x3]
      %v396 = vld [vmem:[%s2] sm:$0x1]
      %v398 = vlaneseq
      %v399 = vshrl.u32 %v398, 7
      %v400 = vsub.s32 0, %v399
      %v401 = vrot.slane %v396, %v400
      %v403 = vadd.f32 %v395, %v401
      %404 = vst.msk [vmem:[#allocation3] sm:$0x3] %vm390, %v403
    $region21: #{dqn_forward.13} parent=1 // pred_fallthru
      _
    // Predicated region
    $region22: #{dqn_forward.13} parent=1 // pred_check
      _
    $region23: #{dqn_forward.13} parent=1 // pred_check_branch
      %406 = sbr.rel (0) target = $region25
    $region24: #{dqn_forward.13} parent=1 // pred_region
      %s408 = ssub.s32 32, 32
      %409 = vsyncadd [#allocation4], %s408
      %s411 = sshll.u32 [#allocation3], 4
      %s412 = int_to_ptr.vmem [resolvable:$true] %s411
      %414 = dma.vmem_to_hbm [thread:$0]  %s412, 32, %s3, [#allocation4]
    $region25: #{dqn_forward.13} parent=1 // pred_fallthru
      _
    // Predicated region
    $region26: #{dqn_forward.13} parent=1 // pred_check
      _
    $region27: #{dqn_forward.13} parent=1 // pred_check_branch
      %416 = sbr.rel (0) target = $region29
    $region28: #{dqn_forward.13} parent=1 // pred_region
      %417 = dma.done [#allocation4], 32
    $region29: #{dqn_forward.13} parent=1 // pred_fallthru
      _
    %418 = vsyncpa [#allocation4], 1

</llo_original>
